<compile_context>
chip_gen: v6e
topology: v6e:2x2x1
jax: 0.10.0
libtpu: 0.0.40
codegen_flags: <defaults>
</compile_context>

<pallas_src>
import functools

import jax
import jax.numpy as jnp
from jax import lax
from jax.experimental import pallas as pl
from jax.experimental.pallas import tpu as pltpu


IMG = 32    # padded image height/width (28 + 2*2); also rows per image in every slab
KSZ = 5     # conv kernel size


# ---------------------------------------------------------------------------
# The single fused Pallas kernel
# ---------------------------------------------------------------------------
def _lenet_kernel(xs_ref, bw1_ref, b1_ref, bw2_ref, b2_ref,
                  wf1_ref, bf1_ref, wf2_ref, bf2_ref, wf3_ref, bf3_ref,
                  out_ref,
                  a1_ref, m1_ref, a2_ref, p2_ref, g_ref, *, batch):
    R = batch * IMG          # meaningful slab rows (32 per image, h-major)
    RA = R + 24              # conv1 rows computed (incl. harmless overrun tail)
    RM = R + 16              # pool1 rows computed
    RC = R + 8               # conv2 rows computed

    def banded_conv(src_ref, w_ref, rows, row_step, kdim):
        # sum_kh  src[r + kh*row_step, :] @ W_kh,  W_kh = w_ref[kh*kdim:(kh+1)*kdim]
        acc = jnp.dot(src_ref[0:rows, :], w_ref[0:kdim, :],
                      preferred_element_type=jnp.float32)
        for kh in range(1, KSZ):
            acc = acc + jnp.dot(src_ref[kh * row_step:kh * row_step + rows, :],
                                w_ref[kh * kdim:(kh + 1) * kdim, :],
                                preferred_element_type=jnp.float32)
        return acc

    # ---- conv1 + relu:  (rows, 32) x (32, 512) banded matmuls --------------
    # Output lanes [0:256]  = A1 at column w   (lane = w*8 + c)
    # Output lanes [256:512]= A1 at column w+1 (same alignment, shifted weights)
    a1_ref[...] = jnp.maximum(
        banded_conv(xs_ref, bw1_ref, RA, 1, IMG) + b1_ref[...], 0.0)

    # ---- maxpool1 (2x2, stride 2), un-decimated on the slab -----------------
    # horizontal max = max of the two alignment halves; vertical = row shift.
    m1_ref[...] = jnp.maximum(
        jnp.maximum(a1_ref[0:RM, 0:256], a1_ref[0:RM, 256:512]),
        jnp.maximum(a1_ref[1:RM + 1, 0:256], a1_ref[1:RM + 1, 256:512]))

    # ---- conv2 + relu: (rows, 256) x (256, 512) banded matmuls -------------
    # Pool1 output sits at even (h, w) slab positions -> row step 2, lane
    # banding with stride 2 baked into bw2.
    a2_ref[...] = jnp.maximum(
        banded_conv(m1_ref, bw2_ref, RC, 2, 256) + b2_ref[...], 0.0)

    # ---- maxpool2 -----------------------------------------------------------
    p2_ref[...] = jnp.maximum(
        jnp.maximum(a2_ref[0:R, 0:256], a2_ref[0:R, 256:512]),
        jnp.maximum(a2_ref[2:R + 2, 0:256], a2_ref[2:R + 2, 256:512]))

    # ---- flatten: 5 aligned row copies per image into the fc1 input slab ----
    # (the pool2->feature permutation + lane masking is folded into wf1).
    for b in range(batch):
        for i in range(5):
            row = b * IMG + 4 * i
            g_ref[b:b + 1, 256 * i:256 * (i + 1)] = p2_ref[row:row + 1, :]

    # ---- fc1 -> fc2 -> fc3 (lane-dense 128-wide MXU chain) ------------------
    h = g_ref[...]
    h = jnp.maximum(
        jnp.dot(h, wf1_ref[...], preferred_element_type=jnp.float32)
        + bf1_ref[...], 0.0)
    h = jnp.maximum(
        jnp.dot(h, wf2_ref[...], preferred_element_type=jnp.float32)
        + bf2_ref[...], 0.0)
    out_ref[...] = (
        jnp.dot(h, wf3_ref[...], preferred_element_type=jnp.float32)
        + bf3_ref[...])


# ---------------------------------------------------------------------------
# One-time weight repacking (init-time; builds the banded conv matrices)
# ---------------------------------------------------------------------------
def _conv1_band(w1, shift):
    # (5, 32, 256) per-kh banded matrix: in-lane = image column x,
    # out-lane = w*8 + c and represents A1[b, c, h, w + shift].
    w1k = w1[:, 0]                                   # (6,5,5) [c,kh,kw]
    x = jnp.arange(IMG)[:, None]
    w = jnp.arange(IMG)[None, :]
    d = x - (w + shift)
    valid = (d >= 0) & (d <= KSZ - 1) & ((w + shift) <= 27)
    taps = w1k[:, :, jnp.clip(d, 0, KSZ - 1)]        # (6,5,32,32) [c,kh,x,w]
    taps = jnp.where(valid[None, None], taps, 0.0)
    taps = jnp.transpose(taps, (1, 2, 3, 0))         # (5,32,32,6) [kh,x,w,c]
    taps = jnp.pad(taps, ((0, 0), (0, 0), (0, 0), (0, 2)))   # c: 6 -> 8
    return taps.reshape(KSZ, IMG, 256)


def _conv1_bias(b1, shift):
    mask = (((jnp.arange(IMG)[:, None] + shift) <= 27)
            & (jnp.arange(8)[None, :] <= 5))
    return jnp.where(mask, jnp.pad(b1, (0, 2))[None, :], 0.0).reshape(256)


def _conv2_band(w2, shift):
    # (5, 256, 256) per-kh banded matrix: in-lane = w_in*8 + c (pool1 slab),
    # out-lane = q*16 + o and represents A2[b, o, p, q + shift].
    w_in = jnp.arange(IMG)[:, None]
    q = jnp.arange(16)[None, :]
    delta = w_in - 2 * (q + shift)                   # must equal 2*kw
    valid = (delta >= 0) & (delta <= 8) & (delta % 2 == 0) & ((q + shift) <= 9)
    kw = jnp.clip(delta // 2, 0, KSZ - 1)
    vals = w2[:, :, :, kw]                           # (16,6,5,32,16) [o,c,kh,w_in,q]
    vals = jnp.where(valid[None, None, None], vals, 0.0)
    vals = jnp.transpose(vals, (2, 3, 1, 4, 0))      # (5,32,6,16,16) [kh,w_in,c,q,o]
    vals = jnp.pad(vals, ((0, 0), (0, 0), (0, 2), (0, 0), (0, 0)))
    return vals.reshape(KSZ, 256, 256)


def _conv2_bias(b2, shift):
    mask = (jnp.arange(16)[:, None] + shift) <= 9    # (16,1) over q
    return jnp.where(mask, b2[None, :], 0.0).reshape(256)


def prepare_params(params):
    (w1, b1, w2, b2, fw1, fb1, fw2, fb2, fw3, fb3) = params
    f32 = jnp.float32

    bw1 = jnp.concatenate([_conv1_band(w1, 0), _conv1_band(w1, 1)], axis=-1)
    bw1 = bw1.reshape(KSZ * IMG, 512).astype(f32)                 # (160, 512)
    b1v = jnp.concatenate([_conv1_bias(b1, 0), _conv1_bias(b1, 1)]
                          ).reshape(1, 512).astype(f32)

    bw2 = jnp.concatenate([_conv2_band(w2, 0), _conv2_band(w2, 1)], axis=-1)
    bw2 = bw2.reshape(KSZ * 256, 512).astype(f32)                 # (1280, 512)
    b2v = jnp.concatenate([_conv2_bias(b2, 0), _conv2_bias(b2, 1)]
                          ).reshape(1, 512).astype(f32)

    # fc1: fold the pool2 slab layout (row chunk i, lane 32*j + o) into the
    # weight; rows for invalid lanes stay zero so slab garbage never leaks in.
    wf1r = jnp.transpose(fw1.reshape(120, 16, 5, 5), (2, 3, 1, 0))  # [i,j,o,n]
    wf1r = jnp.pad(wf1r, ((0, 0), (0, 3), (0, 16), (0, 8)))         # (5,8,32,128)
    wf1m = wf1r.reshape(1280, 128).astype(f32)
    bf1v = jnp.zeros((1, 128), f32).at[0, :120].set(fb1)

    wf2m = jnp.zeros((128, 128), f32).at[:120, :84].set(fw2.T)
    bf2v = jnp.zeros((1, 128), f32).at[0, :84].set(fb2)
    wf3m = jnp.zeros((128, 128), f32).at[:84, :10].set(fw3.T)
    bf3v = jnp.zeros((1, 128), f32).at[0, :10].set(fb3)

    return (bw1, b1v, bw2, b2v, wf1m, bf1v, wf2m, bf2v, wf3m, bf3v)


# ---------------------------------------------------------------------------
# Forward pass wrapper (single pallas_call)
# ---------------------------------------------------------------------------
@jax.jit
def lenet_forward(x_nchw, prepped):
    (bw1, b1v, bw2, b2v, wf1m, bf1v, wf2m, bf2v, wf3m, bf3v) = prepped
    B = x_nchw.shape[0]
    R = B * IMG

    # Per-call glue: zero-pad 28x28 -> 32x32, flatten rows, add a zero tail for
    # the row-shifted banded-matmul windows.
    xp = jnp.pad(x_nchw.reshape(B, 28, 28), ((0, 0), (2, 2), (2, 2)))
    xs = jnp.pad(xp.reshape(R, IMG), ((0, IMG), (0, 0)))        # (R+32, 32)

    operands = (xs, bw1, b1v, bw2, b2v, wf1m, bf1v, wf2m, bf2v, wf3m, bf3v)
    in_specs = [pl.BlockSpec(op.shape, lambda i: (0, 0)) for op in operands]

    kernel = functools.partial(_lenet_kernel, batch=B)
    out = pl.pallas_call(
        kernel,
        out_shape=jax.ShapeDtypeStruct((B, 128), jnp.float32),
        grid=(1,),
        in_specs=in_specs,
        out_specs=pl.BlockSpec((B, 128), lambda i: (0, 0)),
        scratch_shapes=[
            pltpu.VMEM((R + 24, 512), jnp.float32),   # conv1 (dual alignment)
            pltpu.VMEM((R + 16, 256), jnp.float32),   # pool1 slab
            pltpu.VMEM((R + 8, 512), jnp.float32),    # conv2 (dual alignment)
            pltpu.VMEM((R, 256), jnp.float32),        # pool2 slab
            pltpu.VMEM((B, 1280), jnp.float32),       # fc1 input slab
        ],
        compiler_params=pltpu.CompilerParams(
            dimension_semantics=("arbitrary",),
            vmem_limit_bytes=32 * 1024 * 1024),
    )(*operands)
    return out[:, :10]


# ---------------------------------------------------------------------------
# Deterministic parameter init (PyTorch-style uniform(-1/sqrt(fan_in), +))
# ---------------------------------------------------------------------------
def init_params(key):
    ks = jax.random.split(key, 10)

    def u(k, shape, fan_in):
        bound = 1.0 / float(fan_in) ** 0.5
        return jax.random.uniform(k, shape, jnp.float32, -bound, bound)

    w1 = u(ks[0], (6, 1, 5, 5), 1 * 5 * 5)
    b1 = u(ks[1], (6,), 1 * 5 * 5)
    w2 = u(ks[2], (16, 6, 5, 5), 6 * 5 * 5)
    b2 = u(ks[3], (16,), 6 * 5 * 5)
    fw1 = u(ks[4], (120, 400), 400)
    fb1 = u(ks[5], (120,), 400)
    fw2 = u(ks[6], (84, 120), 120)
    fb2 = u(ks[7], (84,), 120)
    fw3 = u(ks[8], (10, 84), 84)
    fb3 = u(ks[9], (10,), 84)
    return (w1, b1, w2, b2, fw1, fb1, fw2, fb2, fw3, fb3)


# ---------------------------------------------------------------------------
# Pure-JAX reference (independent of the Pallas path) for a correctness check
# ---------------------------------------------------------------------------
def lenet_reference(x, params):
    (w1, b1, w2, b2, fw1, fb1, fw2, fb2, fw3, fb3) = params
    dn = ("NCHW", "OIHW", "NCHW")
    y = lax.conv_general_dilated(x, w1, (1, 1), ((2, 2), (2, 2)),
                                 dimension_numbers=dn) + b1[None, :, None, None]
    y = jnp.maximum(y, 0.0)
    y = lax.reduce_window(y, -jnp.inf, lax.max, (1, 1, 2, 2), (1, 1, 2, 2), "VALID")
    y = lax.conv_general_dilated(y, w2, (1, 1), ((0, 0), (0, 0)),
                                 dimension_numbers=dn) + b2[None, :, None, None]
    y = jnp.maximum(y, 0.0)
    y = lax.reduce_window(y, -jnp.inf, lax.max, (1, 1, 2, 2), (1, 1, 2, 2), "VALID")
    y = y.reshape(-1, 16 * 5 * 5)
    y = jnp.maximum(y @ fw1.T + fb1, 0.0)
    y = jnp.maximum(y @ fw2.T + fb2, 0.0)
    return y @ fw3.T + fb3


if __name__ == "__main__":
    key = jax.random.PRNGKey(0)
    kx, kp = jax.random.split(key)
    # LeNet's flatten (16*5*5) requires 28x28 single-channel input.
    x = jax.random.normal(kx, (2, 1, 28, 28), dtype=jnp.float32)
    params = init_params(kp)
    prepped = prepare_params(params)      # one-time weight repacking

    out = lenet_forward(x, prepped)
    out = jax.block_until_ready(out)

    ref = lenet_reference(x, params)
    assert out.shape == (2, 10), out.shape
    assert jnp.allclose(out, ref, rtol=1e-3, atol=1e-3), (
        "Pallas LeNet output mismatch vs reference")
    print("KERNEL_OK")
</pallas_src>

<mosaic_0001>
module attributes {stable_mosaic.version = 11 : i64} {
  func.func @_lenet_kernel(%arg0: i32, %arg1: memref<96x32xf32, #tpu.memory_space<vmem>>, %arg2: memref<160x512xf32, #tpu.memory_space<vmem>>, %arg3: memref<1x512xf32, #tpu.memory_space<vmem>>, %arg4: memref<1280x512xf32, #tpu.memory_space<vmem>>, %arg5: memref<1x512xf32, #tpu.memory_space<vmem>>, %arg6: memref<1280x128xf32, #tpu.memory_space<vmem>>, %arg7: memref<1x128xf32, #tpu.memory_space<vmem>>, %arg8: memref<128x128xf32, #tpu.memory_space<vmem>>, %arg9: memref<1x128xf32, #tpu.memory_space<vmem>>, %arg10: memref<128x128xf32, #tpu.memory_space<vmem>>, %arg11: memref<1x128xf32, #tpu.memory_space<vmem>>, %arg12: memref<2x128xf32, #tpu.memory_space<vmem>>, %arg13: memref<88x512xf32, #tpu.memory_space<vmem>>, %arg14: memref<80x256xf32, #tpu.memory_space<vmem>>, %arg15: memref<72x512xf32, #tpu.memory_space<vmem>>, %arg16: memref<64x256xf32, #tpu.memory_space<vmem>>, %arg17: memref<2x1280xf32, #tpu.memory_space<vmem>>) attributes {dimension_semantics = [#tpu.dimension_semantics<arbitrary>], iteration_bounds = array<i64: 1>, scalar_prefetch = 0 : i64, scratch_operands = 5 : i64, tpu.core_type = #tpu.core_type<tc>, window_params = [{pipeline_mode = #tpu.pipeline_mode<synchronous>, transform_indices = @transform_0, window_bounds = array<i64: 96, 32>}, {pipeline_mode = #tpu.pipeline_mode<synchronous>, transform_indices = @transform_1, window_bounds = array<i64: 160, 512>}, {pipeline_mode = #tpu.pipeline_mode<synchronous>, transform_indices = @transform_2, window_bounds = array<i64: 1, 512>}, {pipeline_mode = #tpu.pipeline_mode<synchronous>, transform_indices = @transform_3, window_bounds = array<i64: 1280, 512>}, {pipeline_mode = #tpu.pipeline_mode<synchronous>, transform_indices = @transform_4, window_bounds = array<i64: 1, 512>}, {pipeline_mode = #tpu.pipeline_mode<synchronous>, transform_indices = @transform_5, window_bounds = array<i64: 1280, 128>}, {pipeline_mode = #tpu.pipeline_mode<synchronous>, transform_indices = @transform_6, window_bounds = array<i64: 1, 128>}, {pipeline_mode = #tpu.pipeline_mode<synchronous>, transform_indices = @transform_7, window_bounds = array<i64: 128, 128>}, {pipeline_mode = #tpu.pipeline_mode<synchronous>, transform_indices = @transform_8, window_bounds = array<i64: 1, 128>}, {pipeline_mode = #tpu.pipeline_mode<synchronous>, transform_indices = @transform_9, window_bounds = array<i64: 128, 128>}, {pipeline_mode = #tpu.pipeline_mode<synchronous>, transform_indices = @transform_10, window_bounds = array<i64: 1, 128>}, {pipeline_mode = #tpu.pipeline_mode<synchronous>, transform_indices = @transform_11, window_bounds = array<i64: 2, 128>}]} {
    %c0 = arith.constant 0 : index
    %c0_0 = arith.constant 0 : index
    %0 = vector.load %arg1[%c0, %c0_0] : memref<96x32xf32, #tpu.memory_space<vmem>>, vector<88x32xf32>
    %c0_1 = arith.constant 0 : index
    %c0_2 = arith.constant 0 : index
    %1 = vector.load %arg2[%c0_1, %c0_2] : memref<160x512xf32, #tpu.memory_space<vmem>>, vector<32x512xf32>
    %cst = arith.constant dense<0.000000e+00> : vector<88x512xf32>
    %2 = tpu.matmul %0, %1, %cst {dimension_numbers = #tpu.dot_dimension_numbers<[1], [0], [0], [1], [0, 0, 1, 1], [], []>} : vector<88x32xf32>, vector<32x512xf32>, vector<88x512xf32> -> vector<88x512xf32>
    %c1 = arith.constant 1 : index
    %c0_3 = arith.constant 0 : index
    %3 = vector.load %arg1[%c1, %c0_3] : memref<96x32xf32, #tpu.memory_space<vmem>>, vector<88x32xf32>
    %c32 = arith.constant 32 : index
    %c0_4 = arith.constant 0 : index
    %4 = vector.load %arg2[%c32, %c0_4] : memref<160x512xf32, #tpu.memory_space<vmem>>, vector<32x512xf32>
    %cst_5 = arith.constant dense<0.000000e+00> : vector<88x512xf32>
    %5 = tpu.matmul %3, %4, %cst_5 {dimension_numbers = #tpu.dot_dimension_numbers<[1], [0], [0], [1], [0, 0, 1, 1], [], []>} : vector<88x32xf32>, vector<32x512xf32>, vector<88x512xf32> -> vector<88x512xf32>
    %6 = arith.addf %2, %5 : vector<88x512xf32>
    %c2 = arith.constant 2 : index
    %c0_6 = arith.constant 0 : index
    %7 = vector.load %arg1[%c2, %c0_6] : memref<96x32xf32, #tpu.memory_space<vmem>>, vector<88x32xf32>
    %c64 = arith.constant 64 : index
    %c0_7 = arith.constant 0 : index
    %8 = vector.load %arg2[%c64, %c0_7] : memref<160x512xf32, #tpu.memory_space<vmem>>, vector<32x512xf32>
    %cst_8 = arith.constant dense<0.000000e+00> : vector<88x512xf32>
    %9 = tpu.matmul %7, %8, %cst_8 {dimension_numbers = #tpu.dot_dimension_numbers<[1], [0], [0], [1], [0, 0, 1, 1], [], []>} : vector<88x32xf32>, vector<32x512xf32>, vector<88x512xf32> -> vector<88x512xf32>
    %10 = arith.addf %6, %9 : vector<88x512xf32>
    %c3 = arith.constant 3 : index
    %c0_9 = arith.constant 0 : index
    %11 = vector.load %arg1[%c3, %c0_9] : memref<96x32xf32, #tpu.memory_space<vmem>>, vector<88x32xf32>
    %c96 = arith.constant 96 : index
    %c0_10 = arith.constant 0 : index
    %12 = vector.load %arg2[%c96, %c0_10] : memref<160x512xf32, #tpu.memory_space<vmem>>, vector<32x512xf32>
    %cst_11 = arith.constant dense<0.000000e+00> : vector<88x512xf32>
    %13 = tpu.matmul %11, %12, %cst_11 {dimension_numbers = #tpu.dot_dimension_numbers<[1], [0], [0], [1], [0, 0, 1, 1], [], []>} : vector<88x32xf32>, vector<32x512xf32>, vector<88x512xf32> -> vector<88x512xf32>
    %14 = arith.addf %10, %13 : vector<88x512xf32>
    %c4 = arith.constant 4 : index
    %c0_12 = arith.constant 0 : index
    %15 = vector.load %arg1[%c4, %c0_12] : memref<96x32xf32, #tpu.memory_space<vmem>>, vector<88x32xf32>
    %c128 = arith.constant 128 : index
    %c0_13 = arith.constant 0 : index
    %16 = vector.load %arg2[%c128, %c0_13] : memref<160x512xf32, #tpu.memory_space<vmem>>, vector<32x512xf32>
    %cst_14 = arith.constant dense<0.000000e+00> : vector<88x512xf32>
    %17 = tpu.matmul %15, %16, %cst_14 {dimension_numbers = #tpu.dot_dimension_numbers<[1], [0], [0], [1], [0, 0, 1, 1], [], []>} : vector<88x32xf32>, vector<32x512xf32>, vector<88x512xf32> -> vector<88x512xf32>
    %18 = arith.addf %14, %17 : vector<88x512xf32>
    %c0_15 = arith.constant 0 : index
    %c0_16 = arith.constant 0 : index
    %19 = vector.load %arg3[%c0_15, %c0_16] : memref<1x512xf32, #tpu.memory_space<vmem>>, vector<1x512xf32>
    %20 = vector.broadcast %19 : vector<1x512xf32> to vector<88x512xf32>
    %21 = arith.addf %18, %20 : vector<88x512xf32>
    %cst_17 = arith.constant 0.000000e+00 : f32
    %22 = vector.broadcast %cst_17 : f32 to vector<88x512xf32>
    %23 = arith.maximumf %21, %22 : vector<88x512xf32>
    %c0_18 = arith.constant 0 : index
    %c0_19 = arith.constant 0 : index
    %24 = vector.load %arg13[%c0_18, %c0_19] : memref<88x512xf32, #tpu.memory_space<vmem>>, vector<88x512xf32>
    tpu.vector_store %arg13[%c0_18, %c0_19], %23 {strides = array<i32>} : memref<88x512xf32, #tpu.memory_space<vmem>>, vector<88x512xf32>,
    %c0_20 = arith.constant 0 : index
    %c0_21 = arith.constant 0 : index
    %25 = vector.load %arg13[%c0_20, %c0_21] : memref<88x512xf32, #tpu.memory_space<vmem>>, vector<80x256xf32>
    %c0_22 = arith.constant 0 : index
    %c256 = arith.constant 256 : index
    %26 = vector.load %arg13[%c0_22, %c256] : memref<88x512xf32, #tpu.memory_space<vmem>>, vector<80x256xf32>
    %27 = arith.maximumf %25, %26 : vector<80x256xf32>
    %c1_23 = arith.constant 1 : index
    %c0_24 = arith.constant 0 : index
    %28 = vector.load %arg13[%c1_23, %c0_24] : memref<88x512xf32, #tpu.memory_space<vmem>>, vector<80x256xf32>
    %c1_25 = arith.constant 1 : index
    %c256_26 = arith.constant 256 : index
    %29 = vector.load %arg13[%c1_25, %c256_26] : memref<88x512xf32, #tpu.memory_space<vmem>>, vector<80x256xf32>
    %30 = arith.maximumf %28, %29 : vector<80x256xf32>
    %31 = arith.maximumf %27, %30 : vector<80x256xf32>
    %c0_27 = arith.constant 0 : index
    %c0_28 = arith.constant 0 : index
    %32 = vector.load %arg14[%c0_27, %c0_28] : memref<80x256xf32, #tpu.memory_space<vmem>>, vector<80x256xf32>
    tpu.vector_store %arg14[%c0_27, %c0_28], %31 {strides = array<i32>} : memref<80x256xf32, #tpu.memory_space<vmem>>, vector<80x256xf32>,
    %c0_29 = arith.constant 0 : index
    %c0_30 = arith.constant 0 : index
    %33 = vector.load %arg14[%c0_29, %c0_30] : memref<80x256xf32, #tpu.memory_space<vmem>>, vector<72x256xf32>
    %c0_31 = arith.constant 0 : index
    %c0_32 = arith.constant 0 : index
    %34 = vector.load %arg4[%c0_31, %c0_32] : memref<1280x512xf32, #tpu.memory_space<vmem>>, vector<256x512xf32>
    %cst_33 = arith.constant dense<0.000000e+00> : vector<72x512xf32>
    %35 = tpu.matmul %33, %34, %cst_33 {dimension_numbers = #tpu.dot_dimension_numbers<[1], [0], [0], [1], [0, 0, 1, 1], [], []>} : vector<72x256xf32>, vector<256x512xf32>, vector<72x512xf32> -> vector<72x512xf32>
    %c2_34 = arith.constant 2 : index
    %c0_35 = arith.constant 0 : index
    %36 = vector.load %arg14[%c2_34, %c0_35] : memref<80x256xf32, #tpu.memory_space<vmem>>, vector<72x256xf32>
    %c256_36 = arith.constant 256 : index
    %c0_37 = arith.constant 0 : index
    %37 = vector.load %arg4[%c256_36, %c0_37] : memref<1280x512xf32, #tpu.memory_space<vmem>>, vector<256x512xf32>
    %cst_38 = arith.constant dense<0.000000e+00> : vector<72x512xf32>
    %38 = tpu.matmul %36, %37, %cst_38 {dimension_numbers = #tpu.dot_dimension_numbers<[1], [0], [0], [1], [0, 0, 1, 1], [], []>} : vector<72x256xf32>, vector<256x512xf32>, vector<72x512xf32> -> vector<72x512xf32>
    %39 = arith.addf %35, %38 : vector<72x512xf32>
    %c4_39 = arith.constant 4 : index
    %c0_40 = arith.constant 0 : index
    %40 = vector.load %arg14[%c4_39, %c0_40] : memref<80x256xf32, #tpu.memory_space<vmem>>, vector<72x256xf32>
    %c512 = arith.constant 512 : index
    %c0_41 = arith.constant 0 : index
    %41 = vector.load %arg4[%c512, %c0_41] : memref<1280x512xf32, #tpu.memory_space<vmem>>, vector<256x512xf32>
    %cst_42 = arith.constant dense<0.000000e+00> : vector<72x512xf32>
    %42 = tpu.matmul %40, %41, %cst_42 {dimension_numbers = #tpu.dot_dimension_numbers<[1], [0], [0], [1], [0, 0, 1, 1], [], []>} : vector<72x256xf32>, vector<256x512xf32>, vector<72x512xf32> -> vector<72x512xf32>
    %43 = arith.addf %39, %42 : vector<72x512xf32>
    %c6 = arith.constant 6 : index
    %c0_43 = arith.constant 0 : index
    %44 = vector.load %arg14[%c6, %c0_43] : memref<80x256xf32, #tpu.memory_space<vmem>>, vector<72x256xf32>
    %c768 = arith.constant 768 : index
    %c0_44 = arith.constant 0 : index
    %45 = vector.load %arg4[%c768, %c0_44] : memref<1280x512xf32, #tpu.memory_space<vmem>>, vector<256x512xf32>
    %cst_45 = arith.constant dense<0.000000e+00> : vector<72x512xf32>
    %46 = tpu.matmul %44, %45, %cst_45 {dimension_numbers = #tpu.dot_dimension_numbers<[1], [0], [0], [1], [0, 0, 1, 1], [], []>} : vector<72x256xf32>, vector<256x512xf32>, vector<72x512xf32> -> vector<72x512xf32>
    %47 = arith.addf %43, %46 : vector<72x512xf32>
    %c8 = arith.constant 8 : index
    %c0_46 = arith.constant 0 : index
    %48 = vector.load %arg14[%c8, %c0_46] : memref<80x256xf32, #tpu.memory_space<vmem>>, vector<72x256xf32>
    %c1024 = arith.constant 1024 : index
    %c0_47 = arith.constant 0 : index
    %49 = vector.load %arg4[%c1024, %c0_47] : memref<1280x512xf32, #tpu.memory_space<vmem>>, vector<256x512xf32>
    %cst_48 = arith.constant dense<0.000000e+00> : vector<72x512xf32>
    %50 = tpu.matmul %48, %49, %cst_48 {dimension_numbers = #tpu.dot_dimension_numbers<[1], [0], [0], [1], [0, 0, 1, 1], [], []>} : vector<72x256xf32>, vector<256x512xf32>, vector<72x512xf32> -> vector<72x512xf32>
    %51 = arith.addf %47, %50 : vector<72x512xf32>
    %c0_49 = arith.constant 0 : index
    %c0_50 = arith.constant 0 : index
    %52 = vector.load %arg5[%c0_49, %c0_50] : memref<1x512xf32, #tpu.memory_space<vmem>>, vector<1x512xf32>
    %53 = vector.broadcast %52 : vector<1x512xf32> to vector<72x512xf32>
    %54 = arith.addf %51, %53 : vector<72x512xf32>
    %cst_51 = arith.constant 0.000000e+00 : f32
    %55 = vector.broadcast %cst_51 : f32 to vector<72x512xf32>
    %56 = arith.maximumf %54, %55 : vector<72x512xf32>
    %c0_52 = arith.constant 0 : index
    %c0_53 = arith.constant 0 : index
    %57 = vector.load %arg15[%c0_52, %c0_53] : memref<72x512xf32, #tpu.memory_space<vmem>>, vector<72x512xf32>
    tpu.vector_store %arg15[%c0_52, %c0_53], %56 {strides = array<i32>} : memref<72x512xf32, #tpu.memory_space<vmem>>, vector<72x512xf32>,
    %c0_54 = arith.constant 0 : index
    %c0_55 = arith.constant 0 : index
    %58 = vector.load %arg15[%c0_54, %c0_55] : memref<72x512xf32, #tpu.memory_space<vmem>>, vector<64x256xf32>
    %c0_56 = arith.constant 0 : index
    %c256_57 = arith.constant 256 : index
    %59 = vector.load %arg15[%c0_56, %c256_57] : memref<72x512xf32, #tpu.memory_space<vmem>>, vector<64x256xf32>
    %60 = arith.maximumf %58, %59 : vector<64x256xf32>
    %c2_58 = arith.constant 2 : index
    %c0_59 = arith.constant 0 : index
    %61 = vector.load %arg15[%c2_58, %c0_59] : memref<72x512xf32, #tpu.memory_space<vmem>>, vector<64x256xf32>
    %c2_60 = arith.constant 2 : index
    %c256_61 = arith.constant 256 : index
    %62 = vector.load %arg15[%c2_60, %c256_61] : memref<72x512xf32, #tpu.memory_space<vmem>>, vector<64x256xf32>
    %63 = arith.maximumf %61, %62 : vector<64x256xf32>
    %64 = arith.maximumf %60, %63 : vector<64x256xf32>
    %c0_62 = arith.constant 0 : index
    %c0_63 = arith.constant 0 : index
    %65 = vector.load %arg16[%c0_62, %c0_63] : memref<64x256xf32, #tpu.memory_space<vmem>>, vector<64x256xf32>
    tpu.vector_store %arg16[%c0_62, %c0_63], %64 {strides = array<i32>} : memref<64x256xf32, #tpu.memory_space<vmem>>, vector<64x256xf32>,
    %c0_64 = arith.constant 0 : index
    %c0_65 = arith.constant 0 : index
    %66 = vector.load %arg16[%c0_64, %c0_65] : memref<64x256xf32, #tpu.memory_space<vmem>>, vector<1x256xf32>
    %c0_66 = arith.constant 0 : index
    %c0_67 = arith.constant 0 : index
    %67 = vector.load %arg17[%c0_66, %c0_67] : memref<2x1280xf32, #tpu.memory_space<vmem>>, vector<1x256xf32>
    tpu.vector_store %arg17[%c0_66, %c0_67], %66 {strides = array<i32>} : memref<2x1280xf32, #tpu.memory_space<vmem>>, vector<1x256xf32>,
    %c4_68 = arith.constant 4 : index
    %c0_69 = arith.constant 0 : index
    %68 = vector.load %arg16[%c4_68, %c0_69] : memref<64x256xf32, #tpu.memory_space<vmem>>, vector<1x256xf32>
    %c0_70 = arith.constant 0 : index
    %c256_71 = arith.constant 256 : index
    %69 = vector.load %arg17[%c0_70, %c256_71] : memref<2x1280xf32, #tpu.memory_space<vmem>>, vector<1x256xf32>
    tpu.vector_store %arg17[%c0_70, %c256_71], %68 {strides = array<i32>} : memref<2x1280xf32, #tpu.memory_space<vmem>>, vector<1x256xf32>,
    %c8_72 = arith.constant 8 : index
    %c0_73 = arith.constant 0 : index
    %70 = vector.load %arg16[%c8_72, %c0_73] : memref<64x256xf32, #tpu.memory_space<vmem>>, vector<1x256xf32>
    %c0_74 = arith.constant 0 : index
    %c512_75 = arith.constant 512 : index
    %71 = vector.load %arg17[%c0_74, %c512_75] : memref<2x1280xf32, #tpu.memory_space<vmem>>, vector<1x256xf32>
    tpu.vector_store %arg17[%c0_74, %c512_75], %70 {strides = array<i32>} : memref<2x1280xf32, #tpu.memory_space<vmem>>, vector<1x256xf32>,
    %c12 = arith.constant 12 : index
    %c0_76 = arith.constant 0 : index
    %72 = vector.load %arg16[%c12, %c0_76] : memref<64x256xf32, #tpu.memory_space<vmem>>, vector<1x256xf32>
    %c0_77 = arith.constant 0 : index
    %c768_78 = arith.constant 768 : index
    %73 = vector.load %arg17[%c0_77, %c768_78] : memref<2x1280xf32, #tpu.memory_space<vmem>>, vector<1x256xf32>
    tpu.vector_store %arg17[%c0_77, %c768_78], %72 {strides = array<i32>} : memref<2x1280xf32, #tpu.memory_space<vmem>>, vector<1x256xf32>,
    %c16 = arith.constant 16 : index
    %c0_79 = arith.constant 0 : index
    %74 = vector.load %arg16[%c16, %c0_79] : memref<64x256xf32, #tpu.memory_space<vmem>>, vector<1x256xf32>
    %c0_80 = arith.constant 0 : index
    %c1024_81 = arith.constant 1024 : index
    %75 = vector.load %arg17[%c0_80, %c1024_81] : memref<2x1280xf32, #tpu.memory_space<vmem>>, vector<1x256xf32>
    tpu.vector_store %arg17[%c0_80, %c1024_81], %74 {strides = array<i32>} : memref<2x1280xf32, #tpu.memory_space<vmem>>, vector<1x256xf32>,
    %c32_82 = arith.constant 32 : index
    %c0_83 = arith.constant 0 : index
    %76 = vector.load %arg16[%c32_82, %c0_83] : memref<64x256xf32, #tpu.memory_space<vmem>>, vector<1x256xf32>
    %c1_84 = arith.constant 1 : index
    %c0_85 = arith.constant 0 : index
    %77 = vector.load %arg17[%c1_84, %c0_85] : memref<2x1280xf32, #tpu.memory_space<vmem>>, vector<1x256xf32>
    tpu.vector_store %arg17[%c1_84, %c0_85], %76 {strides = array<i32>} : memref<2x1280xf32, #tpu.memory_space<vmem>>, vector<1x256xf32>,
    %c36 = arith.constant 36 : index
    %c0_86 = arith.constant 0 : index
    %78 = vector.load %arg16[%c36, %c0_86] : memref<64x256xf32, #tpu.memory_space<vmem>>, vector<1x256xf32>
    %c1_87 = arith.constant 1 : index
    %c256_88 = arith.constant 256 : index
    %79 = vector.load %arg17[%c1_87, %c256_88] : memref<2x1280xf32, #tpu.memory_space<vmem>>, vector<1x256xf32>
    tpu.vector_store %arg17[%c1_87, %c256_88], %78 {strides = array<i32>} : memref<2x1280xf32, #tpu.memory_space<vmem>>, vector<1x256xf32>,
    %c40 = arith.constant 40 : index
    %c0_89 = arith.constant 0 : index
    %80 = vector.load %arg16[%c40, %c0_89] : memref<64x256xf32, #tpu.memory_space<vmem>>, vector<1x256xf32>
    %c1_90 = arith.constant 1 : index
    %c512_91 = arith.constant 512 : index
    %81 = vector.load %arg17[%c1_90, %c512_91] : memref<2x1280xf32, #tpu.memory_space<vmem>>, vector<1x256xf32>
    tpu.vector_store %arg17[%c1_90, %c512_91], %80 {strides = array<i32>} : memref<2x1280xf32, #tpu.memory_space<vmem>>, vector<1x256xf32>,
    %c44 = arith.constant 44 : index
    %c0_92 = arith.constant 0 : index
    %82 = vector.load %arg16[%c44, %c0_92] : memref<64x256xf32, #tpu.memory_space<vmem>>, vector<1x256xf32>
    %c1_93 = arith.constant 1 : index
    %c768_94 = arith.constant 768 : index
    %83 = vector.load %arg17[%c1_93, %c768_94] : memref<2x1280xf32, #tpu.memory_space<vmem>>, vector<1x256xf32>
    tpu.vector_store %arg17[%c1_93, %c768_94], %82 {strides = array<i32>} : memref<2x1280xf32, #tpu.memory_space<vmem>>, vector<1x256xf32>,
    %c48 = arith.constant 48 : index
    %c0_95 = arith.constant 0 : index
    %84 = vector.load %arg16[%c48, %c0_95] : memref<64x256xf32, #tpu.memory_space<vmem>>, vector<1x256xf32>
    %c1_96 = arith.constant 1 : index
    %c1024_97 = arith.constant 1024 : index
    %85 = vector.load %arg17[%c1_96, %c1024_97] : memref<2x1280xf32, #tpu.memory_space<vmem>>, vector<1x256xf32>
    tpu.vector_store %arg17[%c1_96, %c1024_97], %84 {strides = array<i32>} : memref<2x1280xf32, #tpu.memory_space<vmem>>, vector<1x256xf32>,
    %c0_98 = arith.constant 0 : index
    %c0_99 = arith.constant 0 : index
    %86 = vector.load %arg17[%c0_98, %c0_99] : memref<2x1280xf32, #tpu.memory_space<vmem>>, vector<2x1280xf32>
    %c0_100 = arith.constant 0 : index
    %c0_101 = arith.constant 0 : index
    %87 = vector.load %arg6[%c0_100, %c0_101] : memref<1280x128xf32, #tpu.memory_space<vmem>>, vector<1280x128xf32>
    %cst_102 = arith.constant dense<0.000000e+00> : vector<2x128xf32>
    %88 = tpu.matmul %86, %87, %cst_102 {dimension_numbers = #tpu.dot_dimension_numbers<[1], [0], [0], [1], [0, 0, 1, 1], [], []>} : vector<2x1280xf32>, vector<1280x128xf32>, vector<2x128xf32> -> vector<2x128xf32>
    %c0_103 = arith.constant 0 : index
    %c0_104 = arith.constant 0 : index
    %89 = vector.load %arg7[%c0_103, %c0_104] : memref<1x128xf32, #tpu.memory_space<vmem>>, vector<1x128xf32>
    %90 = vector.broadcast %89 : vector<1x128xf32> to vector<2x128xf32>
    %91 = arith.addf %88, %90 : vector<2x128xf32>
    %cst_105 = arith.constant 0.000000e+00 : f32
    %92 = vector.broadcast %cst_105 : f32 to vector<2x128xf32>
    %93 = arith.maximumf %91, %92 : vector<2x128xf32>
    %c0_106 = arith.constant 0 : index
    %c0_107 = arith.constant 0 : index
    %94 = vector.load %arg8[%c0_106, %c0_107] : memref<128x128xf32, #tpu.memory_space<vmem>>, vector<128x128xf32>
    %cst_108 = arith.constant dense<0.000000e+00> : vector<2x128xf32>
    %95 = tpu.matmul %93, %94, %cst_108 {dimension_numbers = #tpu.dot_dimension_numbers<[1], [0], [0], [1], [0, 0, 1, 1], [], []>} : vector<2x128xf32>, vector<128x128xf32>, vector<2x128xf32> -> vector<2x128xf32>
    %c0_109 = arith.constant 0 : index
    %c0_110 = arith.constant 0 : index
    %96 = vector.load %arg9[%c0_109, %c0_110] : memref<1x128xf32, #tpu.memory_space<vmem>>, vector<1x128xf32>
    %97 = vector.broadcast %96 : vector<1x128xf32> to vector<2x128xf32>
    %98 = arith.addf %95, %97 : vector<2x128xf32>
    %cst_111 = arith.constant 0.000000e+00 : f32
    %99 = vector.broadcast %cst_111 : f32 to vector<2x128xf32>
    %100 = arith.maximumf %98, %99 : vector<2x128xf32>
    %c0_112 = arith.constant 0 : index
    %c0_113 = arith.constant 0 : index
    %101 = vector.load %arg10[%c0_112, %c0_113] : memref<128x128xf32, #tpu.memory_space<vmem>>, vector<128x128xf32>
    %cst_114 = arith.constant dense<0.000000e+00> : vector<2x128xf32>
    %102 = tpu.matmul %100, %101, %cst_114 {dimension_numbers = #tpu.dot_dimension_numbers<[1], [0], [0], [1], [0, 0, 1, 1], [], []>} : vector<2x128xf32>, vector<128x128xf32>, vector<2x128xf32> -> vector<2x128xf32>
    %c0_115 = arith.constant 0 : index
    %c0_116 = arith.constant 0 : index
    %103 = vector.load %arg11[%c0_115, %c0_116] : memref<1x128xf32, #tpu.memory_space<vmem>>, vector<1x128xf32>
    %104 = vector.broadcast %103 : vector<1x128xf32> to vector<2x128xf32>
    %105 = arith.addf %102, %104 : vector<2x128xf32>
    %c0_117 = arith.constant 0 : index
    %c0_118 = arith.constant 0 : index
    %106 = vector.load %arg12[%c0_117, %c0_118] : memref<2x128xf32, #tpu.memory_space<vmem>>, vector<2x128xf32>
    tpu.vector_store %arg12[%c0_117, %c0_118], %105 {strides = array<i32>} : memref<2x128xf32, #tpu.memory_space<vmem>>, vector<2x128xf32>,
    return
  }
  func.func @transform_0(%arg0: i32) -> (i32, i32) {
    %c0_i32 = arith.constant 0 : i32
    %c0_i32_0 = arith.constant 0 : i32
    %c0_i32_1 = arith.constant 0 : i32
    return %c0_i32, %c0_i32_0 : i32, i32
  }
  func.func @transform_1(%arg0: i32) -> (i32, i32) {
    %c0_i32 = arith.constant 0 : i32
    %c0_i32_0 = arith.constant 0 : i32
    %c0_i32_1 = arith.constant 0 : i32
    return %c0_i32, %c0_i32_0 : i32, i32
  }
  func.func @transform_2(%arg0: i32) -> (i32, i32) {
    %c0_i32 = arith.constant 0 : i32
    %c0_i32_0 = arith.constant 0 : i32
    %c0_i32_1 = arith.constant 0 : i32
    return %c0_i32, %c0_i32_0 : i32, i32
  }
  func.func @transform_3(%arg0: i32) -> (i32, i32) {
    %c0_i32 = arith.constant 0 : i32
    %c0_i32_0 = arith.constant 0 : i32
    %c0_i32_1 = arith.constant 0 : i32
    return %c0_i32, %c0_i32_0 : i32, i32
  }
  func.func @transform_4(%arg0: i32) -> (i32, i32) {
    %c0_i32 = arith.constant 0 : i32
    %c0_i32_0 = arith.constant 0 : i32
    %c0_i32_1 = arith.constant 0 : i32
    return %c0_i32, %c0_i32_0 : i32, i32
  }
  func.func @transform_5(%arg0: i32) -> (i32, i32) {
    %c0_i32 = arith.constant 0 : i32
    %c0_i32_0 = arith.constant 0 : i32
    %c0_i32_1 = arith.constant 0 : i32
    return %c0_i32, %c0_i32_0 : i32, i32
  }
  func.func @transform_6(%arg0: i32) -> (i32, i32) {
    %c0_i32 = arith.constant 0 : i32
    %c0_i32_0 = arith.constant 0 : i32
    %c0_i32_1 = arith.constant 0 : i32
    return %c0_i32, %c0_i32_0 : i32, i32
  }
  func.func @transform_7(%arg0: i32) -> (i32, i32) {
    %c0_i32 = arith.constant 0 : i32
    %c0_i32_0 = arith.constant 0 : i32
    %c0_i32_1 = arith.constant 0 : i32
    return %c0_i32, %c0_i32_0 : i32, i32
  }
  func.func @transform_8(%arg0: i32) -> (i32, i32) {
    %c0_i32 = arith.constant 0 : i32
    %c0_i32_0 = arith.constant 0 : i32
    %c0_i32_1 = arith.constant 0 : i32
    return %c0_i32, %c0_i32_0 : i32, i32
  }
  func.func @transform_9(%arg0: i32) -> (i32, i32) {
    %c0_i32 = arith.constant 0 : i32
    %c0_i32_0 = arith.constant 0 : i32
    %c0_i32_1 = arith.constant 0 : i32
    return %c0_i32, %c0_i32_0 : i32, i32
  }
  func.func @transform_10(%arg0: i32) -> (i32, i32) {
    %c0_i32 = arith.constant 0 : i32
    %c0_i32_0 = arith.constant 0 : i32
    %c0_i32_1 = arith.constant 0 : i32
    return %c0_i32, %c0_i32_0 : i32, i32
  }
  func.func @transform_11(%arg0: i32) -> (i32, i32) {
    %c0_i32 = arith.constant 0 : i32
    %c0_i32_0 = arith.constant 0 : i32
    %c0_i32_1 = arith.constant 0 : i32
    return %c0_i32, %c0_i32_0 : i32, i32
  }
}

</mosaic_0001>

<llo_original>
// kernel: lenet_forward.1
$region0: #{lenet_forward.1}
  #allocation0 [shape = 'u32[]', space=smem, size = 0x4, offset = 0x4, fixed_abs, tag = 'smem constant byte address 0x4 - core index']
  #allocation1 [shape = 'u32[144,128]{1,0:T(1,128)}', space=vmem, size = 0x12000, scoped, tag = 'internal scratch']
  #allocation2 [shape = 'f32[88,512]{1,0:T(8,128)}', space=vmem, size = 0x2c000, scoped, tag = 'scratch operand']
  #allocation3 [shape = 'f32[80,256]{1,0:T(8,128)}', space=vmem, size = 0x14000, scoped, tag = 'scratch operand']
  #allocation4 [shape = 'f32[72,512]{1,0:T(8,128)}', space=vmem, size = 0x24000, scoped, tag = 'scratch operand']
  #allocation5 [shape = 'f32[64,256]{1,0:T(8,128)}', space=vmem, size = 0x10000, scoped, tag = 'scratch operand']
  #allocation6 [shape = 'f32[2,1280]{1,0:T(2,128)}', space=vmem, size = 0x2800, scoped, tag = 'scratch operand']
  %s0 = inlined_call_operand.vmem [shape: f32[96,32], index: 0, kind: input, shape index: {}]
  %s1 = inlined_call_operand.hbm [shape: f32[160,512], index: 1, kind: input, shape index: {}]
  %s2 = inlined_call_operand.hbm [shape: f32[1,512], index: 2, kind: input, shape index: {}]
  %s3 = inlined_call_operand.hbm [shape: f32[1280,512], index: 3, kind: input, shape index: {}]
  %s4 = inlined_call_operand.hbm [shape: f32[1,512], index: 4, kind: input, shape index: {}]
  %s5 = inlined_call_operand.hbm [shape: f32[1280,128], index: 5, kind: input, shape index: {}]
  %s6 = inlined_call_operand.hbm [shape: f32[1,128], index: 6, kind: input, shape index: {}]
  %s7 = inlined_call_operand.hbm [shape: f32[128,128], index: 7, kind: input, shape index: {}]
  %s8 = inlined_call_operand.hbm [shape: f32[1,128], index: 8, kind: input, shape index: {}]
  %s9 = inlined_call_operand.hbm [shape: f32[128,128], index: 9, kind: input, shape index: {}]
  %s10 = inlined_call_operand.hbm [shape: f32[1,128], index: 10, kind: input, shape index: {}]
  %s11 = inlined_call_operand.hbm [shape: f32[2,128], index: 11, kind: output, shape index: {}]
  %s12 = sld [smem:[#allocation0]]
  $region94: #{lenet_forward.1} parent=0
    _
  %s14 = ssub.s32 1, %s12
  %s15 = scalar_select 0, %s14, %s12
  $region1: #{lenet_forward.1} parent=0
    #allocation7 [shape = 'u8[327680]{0}', space=vmem, size = 0x50000, scoped, tag = 'input window, operand 1, single buffered']
    #allocation8 [shape = 's32[1]{0}', space=sflag, size = 0x4, scoped, tag = 'scoped memory for lenet_forward.1']
    #allocation9 [shape = 's32[1]{0}', space=sflag, size = 0x4, scoped, tag = 'scoped memory for lenet_forward.1']
    #allocation10 [shape = 'u8[2048]{0}', space=vmem, size = 0x800, scoped, tag = 'input window, operand 2, single buffered']
    #allocation11 [shape = 's32[1]{0}', space=sflag, size = 0x4, scoped, tag = 'scoped memory for lenet_forward.1']
    #allocation12 [shape = 'u8[2621440]{0}', space=vmem, size = 0x280000, scoped, tag = 'input window, operand 3, single buffered']
    #allocation13 [shape = 'u8[2048]{0}', space=vmem, size = 0x800, scoped, tag = 'input window, operand 4, single buffered']
    #allocation14 [shape = 's32[1]{0}', space=sflag, size = 0x4, scoped, tag = 'scoped memory for lenet_forward.1']
    #allocation15 [shape = 'u8[655360]{0}', space=vmem, size = 0xa0000, scoped, tag = 'input window, operand 5, single buffered']
    #allocation16 [shape = 'u8[512]{0}', space=vmem, size = 0x400, scoped, tag = 'input window, operand 6, single buffered']
    #allocation17 [shape = 's32[1]{0}', space=sflag, size = 0x4, scoped, tag = 'scoped memory for lenet_forward.1']
    #allocation18 [shape = 'u8[65536]{0}', space=vmem, size = 0x10000, scoped, tag = 'input window, operand 7, single buffered']
    #allocation19 [shape = 'u8[512]{0}', space=vmem, size = 0x400, scoped, tag = 'input window, operand 8, single buffered']
    #allocation20 [shape = 's32[1]{0}', space=sflag, size = 0x4, scoped, tag = 'scoped memory for lenet_forward.1']
    #allocation21 [shape = 'u8[65536]{0}', space=vmem, size = 0x10000, scoped, tag = 'input window, operand 9, single buffered']
    #allocation22 [shape = 'u8[512]{0}', space=vmem, size = 0x400, scoped, tag = 'input window, operand 10, single buffered']
    #allocation23 [shape = 's32[1]{0}', space=sflag, size = 0x4, scoped, tag = 'scoped memory for lenet_forward.1']
    #allocation24 [shape = 'u8[1024]{0}', space=vmem, size = 0x400, scoped, tag = 'output window, operand 0, single buffered']
    %16 = vsyncpa [#allocation8], 0
    %17 = vsyncpa [#allocation11], 0
    %18 = vsyncpa [#allocation14], 0
    %19 = vsyncpa [#allocation17], 0
    %20 = vsyncpa [#allocation20], 0
    %21 = vsyncpa [#allocation23], 0
    %22 = vsyncpa [#allocation9], 0
    // Predicated region
    $region2: #{lenet_forward.1} parent=1 // pred_check
      _
    $region3: #{lenet_forward.1} parent=1 // pred_check_branch
      %24 = sbr.rel (0) target = $region5
    $region4: #{lenet_forward.1} parent=1 // pred_region
      _
    $region5: #{lenet_forward.1} parent=1 // pred_fallthru
      _
    // Predicated region
    $region6: #{lenet_forward.1} parent=1 // pred_check
      _
    $region7: #{lenet_forward.1} parent=1 // pred_check_branch
      %26 = sbr.rel (0) target = $region9
    $region8: #{lenet_forward.1} parent=1 // pred_region
      %s28 = ssub.s32 10240, 10240
      %29 = vsyncadd [#allocation8], %s28
      %s30 = sshll.u32 [#allocation7], 4
      %s31 = int_to_ptr.vmem [resolvable:$true] %s30
      %36 = dma.hbm_to_vmem [thread:$0]  %s1, 10240, %s31, [#allocation8], 512, 512, 32
    $region9: #{lenet_forward.1} parent=1 // pred_fallthru
      _
    // Predicated region
    $region10: #{lenet_forward.1} parent=1 // pred_check
      _
    $region11: #{lenet_forward.1} parent=1 // pred_check_branch
      %38 = sbr.rel (0) target = $region13
    $region12: #{lenet_forward.1} parent=1 // pred_region
      %s40 = ssub.s32 64, 64
      %41 = vsyncadd [#allocation11], %s40
      %s43 = sshll.u32 [#allocation10], 4
      %s44 = int_to_ptr.vmem [resolvable:$true] %s43
      %46 = dma.hbm_to_vmem [thread:$0]  %s2, 64, %s44, [#allocation11]
    $region13: #{lenet_forward.1} parent=1 // pred_fallthru
      _
    // Predicated region
    $region14: #{lenet_forward.1} parent=1 // pred_check
      _
    $region15: #{lenet_forward.1} parent=1 // pred_check_branch
      %48 = sbr.rel (0) target = $region17
    $region16: #{lenet_forward.1} parent=1 // pred_region
      %s50 = ssub.s32 81920, 81920
      %51 = vsyncadd [#allocation11], %s50
      %s52 = sshll.u32 [#allocation12], 4
      %s53 = int_to_ptr.vmem [resolvable:$true] %s52
      %58 = dma.hbm_to_vmem [thread:$0]  %s3, 81920, %s53, [#allocation11], 512, 512, 32
    $region17: #{lenet_forward.1} parent=1 // pred_fallthru
      _
    // Predicated region
    $region18: #{lenet_forward.1} parent=1 // pred_check
      _
    $region19: #{lenet_forward.1} parent=1 // pred_check_branch
      %60 = sbr.rel (0) target = $region21
    $region20: #{lenet_forward.1} parent=1 // pred_region
      %s62 = ssub.s32 64, 64
      %63 = vsyncadd [#allocation14], %s62
      %s65 = sshll.u32 [#allocation13], 4
      %s66 = int_to_ptr.vmem [resolvable:$true] %s65
      %68 = dma.hbm_to_vmem [thread:$0]  %s4, 64, %s66, [#allocation14]
    $region21: #{lenet_forward.1} parent=1 // pred_fallthru
      _
    // Predicated region
    $region22: #{lenet_forward.1} parent=1 // pred_check
      _
    $region23: #{lenet_forward.1} parent=1 // pred_check_branch
      %70 = sbr.rel (0) target = $region25
    $region24: #{lenet_forward.1} parent=1 // pred_region
      %s72 = ssub.s32 20480, 20480
      %73 = vsyncadd [#allocation14], %s72
      %s74 = sshll.u32 [#allocation15], 4
      %s75 = int_to_ptr.vmem [resolvable:$true] %s74
      %80 = dma.hbm_to_vmem [thread:$0]  %s5, 20480, %s75, [#allocation14], 128, 128, 8
    $region25: #{lenet_forward.1} parent=1 // pred_fallthru
      _
    // Predicated region
    $region26: #{lenet_forward.1} parent=1 // pred_check
      _
    $region27: #{lenet_forward.1} parent=1 // pred_check_branch
      %82 = sbr.rel (0) target = $region29
    $region28: #{lenet_forward.1} parent=1 // pred_region
      %s84 = ssub.s32 16, 16
      %85 = vsyncadd [#allocation17], %s84
      %s87 = sshll.u32 [#allocation16], 4
      %s88 = int_to_ptr.vmem [resolvable:$true] %s87
      %90 = dma.hbm_to_vmem [thread:$0]  %s6, 16, %s88, [#allocation17]
    $region29: #{lenet_forward.1} parent=1 // pred_fallthru
      _
    // Predicated region
    $region30: #{lenet_forward.1} parent=1 // pred_check
      _
    $region31: #{lenet_forward.1} parent=1 // pred_check_branch
      %92 = sbr.rel (0) target = $region33
    $region32: #{lenet_forward.1} parent=1 // pred_region
      %s94 = ssub.s32 2048, 2048
      %95 = vsyncadd [#allocation17], %s94
      %s96 = sshll.u32 [#allocation18], 4
      %s97 = int_to_ptr.vmem [resolvable:$true] %s96
      %102 = dma.hbm_to_vmem [thread:$0]  %s7, 2048, %s97, [#allocation17], 128, 128, 8
    $region33: #{lenet_forward.1} parent=1 // pred_fallthru
      _
    // Predicated region
    $region34: #{lenet_forward.1} parent=1 // pred_check
      _
    $region35: #{lenet_forward.1} parent=1 // pred_check_branch
      %104 = sbr.rel (0) target = $region37
    $region36: #{lenet_forward.1} parent=1 // pred_region
      %s106 = ssub.s32 16, 16
      %107 = vsyncadd [#allocation20], %s106
      %s109 = sshll.u32 [#allocation19], 4
      %s110 = int_to_ptr.vmem [resolvable:$true] %s109
      %112 = dma.hbm_to_vmem [thread:$0]  %s8, 16, %s110, [#allocation20]
    $region37: #{lenet_forward.1} parent=1 // pred_fallthru
      _
    // Predicated region
    $region38: #{lenet_forward.1} parent=1 // pred_check
      _
    $region39: #{lenet_forward.1} parent=1 // pred_check_branch
      %114 = sbr.rel (0) target = $region41
    $region40: #{lenet_forward.1} parent=1 // pred_region
      %s116 = ssub.s32 2048, 2048
      %117 = vsyncadd [#allocation20], %s116
      %s118 = sshll.u32 [#allocation21], 4
      %s119 = int_to_ptr.vmem [resolvable:$true] %s118
      %124 = dma.hbm_to_vmem [thread:$0]  %s9, 2048, %s119, [#allocation20], 128, 128, 8
    $region41: #{lenet_forward.1} parent=1 // pred_fallthru
      _
    // Predicated region
    $region42: #{lenet_forward.1} parent=1 // pred_check
      _
    $region43: #{lenet_forward.1} parent=1 // pred_check_branch
      %126 = sbr.rel (0) target = $region45
    $region44: #{lenet_forward.1} parent=1 // pred_region
      %s128 = ssub.s32 16, 16
      %129 = vsyncadd [#allocation23], %s128
      %s131 = sshll.u32 [#allocation22], 4
      %s132 = int_to_ptr.vmem [resolvable:$true] %s131
      %134 = dma.hbm_to_vmem [thread:$0]  %s10, 16, %s132, [#allocation23]
    $region45: #{lenet_forward.1} parent=1 // pred_fallthru
      _
    // Predicated region
    $region46: #{lenet_forward.1} parent=1 // pred_check
      _
    $region47: #{lenet_forward.1} parent=1 // pred_check_branch
      %136 = sbr.rel (0) target = $region49
    $region48: #{lenet_forward.1} parent=1 // pred_region
      %137 = dma.done [#allocation8], 10240
    $region49: #{lenet_forward.1} parent=1 // pred_fallthru
      _
    // Predicated region
    $region50: #{lenet_forward.1} parent=1 // pred_check
      _
    $region51: #{lenet_forward.1} parent=1 // pred_check_branch
      %139 = sbr.rel (0) target = $region53
    $region52: #{lenet_forward.1} parent=1 // pred_region
      %140 = dma.done [#allocation11], 64
    $region53: #{lenet_forward.1} parent=1 // pred_fallthru
      _
    // Predicated region
    $region54: #{lenet_forward.1} parent=1 // pred_check
      _
    $region55: #{lenet_forward.1} parent=1 // pred_check_branch
      %142 = sbr.rel (0) target = $region57
    $region56: #{lenet_forward.1} parent=1 // pred_region
      %143 = dma.done [#allocation11], 81920
    $region57: #{lenet_forward.1} parent=1 // pred_fallthru
      _
    // Predicated region
    $region58: #{lenet_forward.1} parent=1 // pred_check
      _
    $region59: #{lenet_forward.1} parent=1 // pred_check_branch
      %145 = sbr.rel (0) target = $region61
    $region60: #{lenet_forward.1} parent=1 // pred_region
      %146 = dma.done [#allocation14], 64
    $region61: #{lenet_forward.1} parent=1 // pred_fallthru
      _
    // Predicated region
    $region62: #{lenet_forward.1} parent=1 // pred_check
      _
    $region63: #{lenet_forward.1} parent=1 // pred_check_branch
      %148 = sbr.rel (0) target = $region65
    $region64: #{lenet_forward.1} parent=1 // pred_region
      %149 = dma.done [#allocation14], 20480
    $region65: #{lenet_forward.1} parent=1 // pred_fallthru
      _
    // Predicated region
    $region66: #{lenet_forward.1} parent=1 // pred_check
      _
    $region67: #{lenet_forward.1} parent=1 // pred_check_branch
      %151 = sbr.rel (0) target = $region69
    $region68: #{lenet_forward.1} parent=1 // pred_region
      %152 = dma.done [#allocation17], 16
    $region69: #{lenet_forward.1} parent=1 // pred_fallthru
      _
    // Predicated region
    $region70: #{lenet_forward.1} parent=1 // pred_check
      _
    $region71: #{lenet_forward.1} parent=1 // pred_check_branch
      %154 = sbr.rel (0) target = $region73
    $region72: #{lenet_forward.1} parent=1 // pred_region
      %155 = dma.done [#allocation17], 2048
    $region73: #{lenet_forward.1} parent=1 // pred_fallthru
      _
    // Predicated region
    $region74: #{lenet_forward.1} parent=1 // pred_check
      _
    $region75: #{lenet_forward.1} parent=1 // pred_check_branch
      %157 = sbr.rel (0) target = $region77
    $region76: #{lenet_forward.1} parent=1 // pred_region
      %158 = dma.done [#allocation20], 16
    $region77: #{lenet_forward.1} parent=1 // pred_fallthru
      _
    // Predicated region
    $region78: #{lenet_forward.1} parent=1 // pred_check
      _
    $region79: #{lenet_forward.1} parent=1 // pred_check_branch
      %160 = sbr.rel (0) target = $region81
    $region80: #{lenet_forward.1} parent=1 // pred_region
      %161 = dma.done [#allocation20], 2048
    $region81: #{lenet_forward.1} parent=1 // pred_fallthru
      _
    // Predicated region
    $region82: #{lenet_forward.1} parent=1 // pred_check
      _
    $region83: #{lenet_forward.1} parent=1 // pred_check_branch
      %163 = sbr.rel (0) target = $region85
    $region84: #{lenet_forward.1} parent=1 // pred_region
      %164 = dma.done [#allocation23], 16
    $region85: #{lenet_forward.1} parent=1 // pred_fallthru
      _
    %v165 = vld [vmem:[%s0] sm:$0xff]
    %v166 = vld [vmem:[%s0 + $0x8] sm:$0xff]
    %v167 = vld [vmem:[%s0 + $0x10] sm:$0xff]
    %v168 = vld [vmem:[%s0 + $0x18] sm:$0xff]
    %v169 = vld [vmem:[%s0 + $0x20] sm:$0xff]
    %v170 = vld [vmem:[%s0 + $0x28] sm:$0xff]
    %v171 = vld [vmem:[%s0 + $0x30] sm:$0xff]
    %v172 = vld [vmem:[%s0 + $0x38] sm:$0xff]
    %v173 = vld [vmem:[%s0 + $0x40] sm:$0xff]
    %v174 = vld [vmem:[%s0 + $0x48] sm:$0xff]
    %v175 = vld [vmem:[%s0 + $0x50] sm:$0xff]
    %v176 = vld [vmem:[#allocation7] sm:$0xff]
    %v177 = vld [vmem:[#allocation7 + $0x8] sm:$0xff]
    %v178 = vld [vmem:[#allocation7 + $0x10] sm:$0xff]
    %v179 = vld [vmem:[#allocation7 + $0x18] sm:$0xff]
    %v180 = vld [vmem:[#allocation7 + $0x20] sm:$0xff]
    %v181 = vld [vmem:[#allocation7 + $0x28] sm:$0xff]
    %v182 = vld [vmem:[#allocation7 + $0x30] sm:$0xff]
    %v183 = vld [vmem:[#allocation7 + $0x38] sm:$0xff]
    %v184 = vld [vmem:[#allocation7 + $0x40] sm:$0xff]
    %v185 = vld [vmem:[#allocation7 + $0x48] sm:$0xff]
    %v186 = vld [vmem:[#allocation7 + $0x50] sm:$0xff]
    %v187 = vld [vmem:[#allocation7 + $0x58] sm:$0xff]
    %v188 = vld [vmem:[#allocation7 + $0x60] sm:$0xff]
    %v189 = vld [vmem:[#allocation7 + $0x68] sm:$0xff]
    %v190 = vld [vmem:[#allocation7 + $0x70] sm:$0xff]
    %v191 = vld [vmem:[#allocation7 + $0x78] sm:$0xff]
    %v192 = vld [vmem:[%s0 + $0x1] sm:$0xff]
    %v193 = vld [vmem:[%s0 + $0x9] sm:$0xff]
    %v194 = vld [vmem:[%s0 + $0x11] sm:$0xff]
    %v195 = vld [vmem:[%s0 + $0x19] sm:$0xff]
    %v196 = vld [vmem:[%s0 + $0x21] sm:$0xff]
    %v197 = vld [vmem:[%s0 + $0x29] sm:$0xff]
    %v198 = vld [vmem:[%s0 + $0x31] sm:$0xff]
    %v199 = vld [vmem:[%s0 + $0x39] sm:$0xff]
    %v200 = vld [vmem:[%s0 + $0x41] sm:$0xff]
    %v201 = vld [vmem:[%s0 + $0x49] sm:$0xff]
    %v202 = vld [vmem:[%s0 + $0x51] sm:$0xff]
    %v203 = vld [vmem:[#allocation7 + $0x80] sm:$0xff]
    %v204 = vld [vmem:[#allocation7 + $0x88] sm:$0xff]
    %v205 = vld [vmem:[#allocation7 + $0x90] sm:$0xff]
    %v206 = vld [vmem:[#allocation7 + $0x98] sm:$0xff]
    %v207 = vld [vmem:[#allocation7 + $0xa0] sm:$0xff]
    %v208 = vld [vmem:[#allocation7 + $0xa8] sm:$0xff]
    %v209 = vld [vmem:[#allocation7 + $0xb0] sm:$0xff]
    %v210 = vld [vmem:[#allocation7 + $0xb8] sm:$0xff]
    %v211 = vld [vmem:[#allocation7 + $0xc0] sm:$0xff]
    %v212 = vld [vmem:[#allocation7 + $0xc8] sm:$0xff]
    %v213 = vld [vmem:[#allocation7 + $0xd0] sm:$0xff]
    %v214 = vld [vmem:[#allocation7 + $0xd8] sm:$0xff]
    %v215 = vld [vmem:[#allocation7 + $0xe0] sm:$0xff]
    %v216 = vld [vmem:[#allocation7 + $0xe8] sm:$0xff]
    %v217 = vld [vmem:[#allocation7 + $0xf0] sm:$0xff]
    %v218 = vld [vmem:[#allocation7 + $0xf8] sm:$0xff]
    %vm219 = vcmask 261120
    %v221 = vsel %vm219, %v192, 0
    %v224 = vsel %vm219, %v193, 0
    %v227 = vsel %vm219, %v194, 0
    %v230 = vsel %vm219, %v195, 0
    %v233 = vsel %vm219, %v196, 0
    %v236 = vsel %vm219, %v197, 0
    %v239 = vsel %vm219, %v198, 0
    %v242 = vsel %vm219, %v199, 0
    %v245 = vsel %vm219, %v200, 0
    %v248 = vsel %vm219, %v201, 0
    %v251 = vsel %vm219, %v202, 0
    %253 = vmatprep.subr.mxu0 0.0
    %254 = vmatpush1.msra.mxu0 0.0
    %255 = vmatprep.subr.mxu0 0.0
    %256 = vmatpush1.msra.mxu0 0.0
    %257 = vmatprep.subr.mxu0 0.0
    %258 = vmatpush1.msra.mxu0 0.0
    %259 = vmatprep.subr.mxu0 0.0
    %260 = vmatpush1.msra.mxu0 0.0
    %261 = vmatprep.subr.mxu0 0.0
    %262 = vmatpush1.msra.mxu0 0.0
    %263 = vmatprep.subr.mxu0 0.0
    %264 = vmatpush1.msra.mxu0 0.0
    %265 = vmatprep.subr.mxu0 0.0
    %266 = vmatpush1.msra.mxu0 0.0
    %267 = vmatprep.subr.mxu0 0.0
    %268 = vmatpush1.msra.mxu0 0.0
    %269 = vmatprep.subr.mxu0 0.0
    %270 = vmatpush1.msra.mxu0 0.0
    %271 = vmatprep.subr.mxu0 0.0
    %272 = vmatpush1.msra.mxu0 0.0
    %273 = vmatprep.subr.mxu0 0.0
    %274 = vmatpush1.msra.mxu0 0.0
    %275 = vmatprep.subr.mxu0 0.0
    %276 = vmatpush1.msra.mxu0 0.0
    %277 = vmatprep.subr.mxu0 %v216
    %278 = vmatpush1.msra.mxu0 %v215
    %279 = vmatprep.subr.mxu0 %v212
    %280 = vmatpush1.msra.mxu0 %v211
    %281 = vmatprep.subr.mxu0 %v208
    %282 = vmatpush1.msra.mxu0 %v207
    %283 = vmatprep.subr.mxu0 %v204
    %284 = vmatpush1.msra.mxu0 %v203
    %285 = vmatprep.subr.mxu0 0.0
    %286 = vmatpush2.msra.mxu0 0.0
    %287 = vmatprep.subr.mxu0 0.0
    %288 = vmatpush2.msra.mxu0 0.0
    %289 = vmatprep.subr.mxu0 0.0
    %290 = vmatpush2.msra.mxu0 0.0
    %291 = vmatprep.subr.mxu0 0.0
    %292 = vmatpush2.msra.mxu0 0.0
    %293 = vmatprep.subr.mxu0 0.0
    %294 = vmatpush2.msra.mxu0 0.0
    %295 = vmatprep.subr.mxu0 0.0
    %296 = vmatpush2.msra.mxu0 0.0
    %297 = vmatprep.subr.mxu0 0.0
    %298 = vmatpush2.msra.mxu0 0.0
    %299 = vmatprep.subr.mxu0 0.0
    %300 = vmatpush2.msra.mxu0 0.0
    %301 = vmatprep.subr.mxu0 0.0
    %302 = vmatpush2.msra.mxu0 0.0
    %303 = vmatprep.subr.mxu0 0.0
    %304 = vmatpush2.msra.mxu0 0.0
    %305 = vmatprep.subr.mxu0 0.0
    %306 = vmatpush2.msra.mxu0 0.0
    %307 = vmatprep.subr.mxu0 0.0
    %308 = vmatpush2.msra.mxu0 0.0
    %309 = vmatprep.subr.mxu0 0.0
    %310 = vmatpush2.msra.mxu0 0.0
    %311 = vmatprep.subr.mxu0 0.0
    %312 = vmatpush2.msra.mxu0 0.0
    %313 = vmatprep.subr.mxu0 0.0
    %314 = vmatpush2.msra.mxu0 0.0
    %315 = vmatprep.subr.mxu0 0.0
    %316 = vmatpush2.msra.mxu0 0.0
    %317 = vmatprep.mubr.f32.mxu0 0.0
    %318 = vmatmul.mubr.f32.gmra.mxu0 %v221
    %v319 = vpop.f32.mrf.mxu0
    %v320 = vadd.f32 0.0, %v319
    %v321 = vpop.f32.mrf.mxu0
    %v322 = vadd.f32 0.0, %v321
    %323 = vmatprep.mubr.f32.mxu0 0.0
    %324 = vmatmul.mubr.f32.gmra.mxu0 %v224
    %v325 = vpop.f32.mrf.mxu0
    %v326 = vadd.f32 0.0, %v325
    %v327 = vpop.f32.mrf.mxu0
    %v328 = vadd.f32 0.0, %v327
    %329 = vmatprep.mubr.f32.mxu0 0.0
    %330 = vmatmul.mubr.f32.gmra.mxu0 %v227
    %v331 = vpop.f32.mrf.mxu0
    %v332 = vadd.f32 0.0, %v331
    %v333 = vpop.f32.mrf.mxu0
    %v334 = vadd.f32 0.0, %v333
    %335 = vmatprep.mubr.f32.mxu0 0.0
    %336 = vmatmul.mubr.f32.gmra.mxu0 %v230
    %v337 = vpop.f32.mrf.mxu0
    %v338 = vadd.f32 0.0, %v337
    %v339 = vpop.f32.mrf.mxu0
    %v340 = vadd.f32 0.0, %v339
    %341 = vmatprep.mubr.f32.mxu0 0.0
    %342 = vmatmul.mubr.f32.gmra.mxu0 %v233
    %v343 = vpop.f32.mrf.mxu0
    %v344 = vadd.f32 0.0, %v343
    %v345 = vpop.f32.mrf.mxu0
    %v346 = vadd.f32 0.0, %v345
    %347 = vmatprep.mubr.f32.mxu0 0.0
    %348 = vmatmul.mubr.f32.gmra.mxu0 %v236
    %v349 = vpop.f32.mrf.mxu0
    %v350 = vadd.f32 0.0, %v349
    %v351 = vpop.f32.mrf.mxu0
    %v352 = vadd.f32 0.0, %v351
    %353 = vmatprep.mubr.f32.mxu0 0.0
    %354 = vmatmul.mubr.f32.gmra.mxu0 %v239
    %v355 = vpop.f32.mrf.mxu0
    %v356 = vadd.f32 0.0, %v355
    %v357 = vpop.f32.mrf.mxu0
    %v358 = vadd.f32 0.0, %v357
    %359 = vmatprep.mubr.f32.mxu0 0.0
    %360 = vmatmul.mubr.f32.gmra.mxu0 %v242
    %v361 = vpop.f32.mrf.mxu0
    %v362 = vadd.f32 0.0, %v361
    %v363 = vpop.f32.mrf.mxu0
    %v364 = vadd.f32 0.0, %v363
    %365 = vmatprep.mubr.f32.mxu0 0.0
    %366 = vmatmul.mubr.f32.gmra.mxu0 %v245
    %v367 = vpop.f32.mrf.mxu0
    %v368 = vadd.f32 0.0, %v367
    %v369 = vpop.f32.mrf.mxu0
    %v370 = vadd.f32 0.0, %v369
    %371 = vmatprep.mubr.f32.mxu0 0.0
    %372 = vmatmul.mubr.f32.gmra.mxu0 %v248
    %v373 = vpop.f32.mrf.mxu0
    %v374 = vadd.f32 0.0, %v373
    %v375 = vpop.f32.mrf.mxu0
    %v376 = vadd.f32 0.0, %v375
    %377 = vmatprep.mubr.f32.mxu0 0.0
    %378 = vmatmul.mubr.f32.gmra.mxu0 %v251
    %v379 = vpop.f32.mrf.mxu0
    %v380 = vadd.f32 0.0, %v379
    %v381 = vpop.f32.mrf.mxu0
    %v382 = vadd.f32 0.0, %v381
    %383 = vdwg.mxu0
    %384 = vmatprep.subr.mxu0 0.0
    %385 = vmatpush1.msra.mxu0 0.0
    %386 = vmatprep.subr.mxu0 0.0
    %387 = vmatpush1.msra.mxu0 0.0
    %388 = vmatprep.subr.mxu0 0.0
    %389 = vmatpush1.msra.mxu0 0.0
    %390 = vmatprep.subr.mxu0 0.0
    %391 = vmatpush1.msra.mxu0 0.0
    %392 = vmatprep.subr.mxu0 0.0
    %393 = vmatpush1.msra.mxu0 0.0
    %394 = vmatprep.subr.mxu0 0.0
    %395 = vmatpush1.msra.mxu0 0.0
    %396 = vmatprep.subr.mxu0 0.0
    %397 = vmatpush1.msra.mxu0 0.0
    %398 = vmatprep.subr.mxu0 0.0
    %399 = vmatpush1.msra.mxu0 0.0
    %400 = vmatprep.subr.mxu0 0.0
    %401 = vmatpush1.msra.mxu0 0.0
    %402 = vmatprep.subr.mxu0 0.0
    %403 = vmatpush1.msra.mxu0 0.0
    %404 = vmatprep.subr.mxu0 0.0
    %405 = vmatpush1.msra.mxu0 0.0
    %406 = vmatprep.subr.mxu0 0.0
    %407 = vmatpush1.msra.mxu0 0.0
    %408 = vmatprep.subr.mxu0 %v218
    %409 = vmatpush1.msra.mxu0 %v217
    %410 = vmatprep.subr.mxu0 %v214
    %411 = vmatpush1.msra.mxu0 %v213
    %412 = vmatprep.subr.mxu0 %v210
    %413 = vmatpush1.msra.mxu0 %v209
    %414 = vmatprep.subr.mxu0 %v206
    %415 = vmatpush1.msra.mxu0 %v205
    %416 = vmatprep.subr.mxu0 0.0
    %417 = vmatpush2.msra.mxu0 0.0
    %418 = vmatprep.subr.mxu0 0.0
    %419 = vmatpush2.msra.mxu0 0.0
    %420 = vmatprep.subr.mxu0 0.0
    %421 = vmatpush2.msra.mxu0 0.0
    %422 = vmatprep.subr.mxu0 0.0
    %423 = vmatpush2.msra.mxu0 0.0
    %424 = vmatprep.subr.mxu0 0.0
    %425 = vmatpush2.msra.mxu0 0.0
    %426 = vmatprep.subr.mxu0 0.0
    %427 = vmatpush2.msra.mxu0 0.0
    %428 = vmatprep.subr.mxu0 0.0
    %429 = vmatpush2.msra.mxu0 0.0
    %430 = vmatprep.subr.mxu0 0.0
    %431 = vmatpush2.msra.mxu0 0.0
    %432 = vmatprep.subr.mxu0 0.0
    %433 = vmatpush2.msra.mxu0 0.0
    %434 = vmatprep.subr.mxu0 0.0
    %435 = vmatpush2.msra.mxu0 0.0
    %436 = vmatprep.subr.mxu0 0.0
    %437 = vmatpush2.msra.mxu0 0.0
    %438 = vmatprep.subr.mxu0 0.0
    %439 = vmatpush2.msra.mxu0 0.0
    %440 = vmatprep.subr.mxu0 0.0
    %441 = vmatpush2.msra.mxu0 0.0
    %442 = vmatprep.subr.mxu0 0.0
    %443 = vmatpush2.msra.mxu0 0.0
    %444 = vmatprep.subr.mxu0 0.0
    %445 = vmatpush2.msra.mxu0 0.0
    %446 = vmatprep.subr.mxu0 0.0
    %447 = vmatpush2.msra.mxu0 0.0
    %448 = vmatprep.mubr.f32.mxu0 0.0
    %449 = vmatmul.mubr.f32.gmra.mxu0 %v221
    %v450 = vpop.f32.mrf.mxu0
    %v451 = vadd.f32 0.0, %v450
    %v452 = vpop.f32.mrf.mxu0
    %v453 = vadd.f32 0.0, %v452
    %454 = vmatprep.mubr.f32.mxu0 0.0
    %455 = vmatmul.mubr.f32.gmra.mxu0 %v224
    %v456 = vpop.f32.mrf.mxu0
    %v457 = vadd.f32 0.0, %v456
    %v458 = vpop.f32.mrf.mxu0
    %v459 = vadd.f32 0.0, %v458
    %460 = vmatprep.mubr.f32.mxu0 0.0
    %461 = vmatmul.mubr.f32.gmra.mxu0 %v227
    %v462 = vpop.f32.mrf.mxu0
    %v463 = vadd.f32 0.0, %v462
    %v464 = vpop.f32.mrf.mxu0
    %v465 = vadd.f32 0.0, %v464
    %466 = vmatprep.mubr.f32.mxu0 0.0
    %467 = vmatmul.mubr.f32.gmra.mxu0 %v230
    %v468 = vpop.f32.mrf.mxu0
    %v469 = vadd.f32 0.0, %v468
    %v470 = vpop.f32.mrf.mxu0
    %v471 = vadd.f32 0.0, %v470
    %472 = vmatprep.mubr.f32.mxu0 0.0
    %473 = vmatmul.mubr.f32.gmra.mxu0 %v233
    %v474 = vpop.f32.mrf.mxu0
    %v475 = vadd.f32 0.0, %v474
    %v476 = vpop.f32.mrf.mxu0
    %v477 = vadd.f32 0.0, %v476
    %478 = vmatprep.mubr.f32.mxu0 0.0
    %479 = vmatmul.mubr.f32.gmra.mxu0 %v236
    %v480 = vpop.f32.mrf.mxu0
    %v481 = vadd.f32 0.0, %v480
    %v482 = vpop.f32.mrf.mxu0
    %v483 = vadd.f32 0.0, %v482
    %484 = vmatprep.mubr.f32.mxu0 0.0
    %485 = vmatmul.mubr.f32.gmra.mxu0 %v239
    %v486 = vpop.f32.mrf.mxu0
    %v487 = vadd.f32 0.0, %v486
    %v488 = vpop.f32.mrf.mxu0
    %v489 = vadd.f32 0.0, %v488
    %490 = vmatprep.mubr.f32.mxu0 0.0
    %491 = vmatmul.mubr.f32.gmra.mxu0 %v242
    %v492 = vpop.f32.mrf.mxu0
    %v493 = vadd.f32 0.0, %v492
    %v494 = vpop.f32.mrf.mxu0
    %v495 = vadd.f32 0.0, %v494
    %496 = vmatprep.mubr.f32.mxu0 0.0
    %497 = vmatmul.mubr.f32.gmra.mxu0 %v245
    %v498 = vpop.f32.mrf.mxu0
    %v499 = vadd.f32 0.0, %v498
    %v500 = vpop.f32.mrf.mxu0
    %v501 = vadd.f32 0.0, %v500
    %502 = vmatprep.mubr.f32.mxu0 0.0
    %503 = vmatmul.mubr.f32.gmra.mxu0 %v248
    %v504 = vpop.f32.mrf.mxu0
    %v505 = vadd.f32 0.0, %v504
    %v506 = vpop.f32.mrf.mxu0
    %v507 = vadd.f32 0.0, %v506
    %508 = vmatprep.mubr.f32.mxu0 0.0
    %509 = vmatmul.mubr.f32.gmra.mxu0 %v251
    %v510 = vpop.f32.mrf.mxu0
    %v511 = vadd.f32 0.0, %v510
    %v512 = vpop.f32.mrf.mxu0
    %v513 = vadd.f32 0.0, %v512
    %514 = vdwg.mxu0
    %v516 = vsel %vm219, %v165, 0
    %v519 = vsel %vm219, %v166, 0
    %v522 = vsel %vm219, %v167, 0
    %v525 = vsel %vm219, %v168, 0
    %v528 = vsel %vm219, %v169, 0
    %v531 = vsel %vm219, %v170, 0
    %v534 = vsel %vm219, %v171, 0
    %v537 = vsel %vm219, %v172, 0
    %v540 = vsel %vm219, %v173, 0
    %v543 = vsel %vm219, %v174, 0
    %v546 = vsel %vm219, %v175, 0
    %548 = vmatprep.subr.mxu0 0.0
    %549 = vmatpush1.msra.mxu0 0.0
    %550 = vmatprep.subr.mxu0 0.0
    %551 = vmatpush1.msra.mxu0 0.0
    %552 = vmatprep.subr.mxu0 0.0
    %553 = vmatpush1.msra.mxu0 0.0
    %554 = vmatprep.subr.mxu0 0.0
    %555 = vmatpush1.msra.mxu0 0.0
    %556 = vmatprep.subr.mxu0 0.0
    %557 = vmatpush1.msra.mxu0 0.0
    %558 = vmatprep.subr.mxu0 0.0
    %559 = vmatpush1.msra.mxu0 0.0
    %560 = vmatprep.subr.mxu0 0.0
    %561 = vmatpush1.msra.mxu0 0.0
    %562 = vmatprep.subr.mxu0 0.0
    %563 = vmatpush1.msra.mxu0 0.0
    %564 = vmatprep.subr.mxu0 0.0
    %565 = vmatpush1.msra.mxu0 0.0
    %566 = vmatprep.subr.mxu0 0.0
    %567 = vmatpush1.msra.mxu0 0.0
    %568 = vmatprep.subr.mxu0 0.0
    %569 = vmatpush1.msra.mxu0 0.0
    %570 = vmatprep.subr.mxu0 0.0
    %571 = vmatpush1.msra.mxu0 0.0
    %572 = vmatprep.subr.mxu0 %v189
    %573 = vmatpush1.msra.mxu0 %v188
    %574 = vmatprep.subr.mxu0 %v185
    %575 = vmatpush1.msra.mxu0 %v184
    %576 = vmatprep.subr.mxu0 %v181
    %577 = vmatpush1.msra.mxu0 %v180
    %578 = vmatprep.subr.mxu0 %v177
    %579 = vmatpush1.msra.mxu0 %v176
    %580 = vmatprep.subr.mxu0 0.0
    %581 = vmatpush2.msra.mxu0 0.0
    %582 = vmatprep.subr.mxu0 0.0
    %583 = vmatpush2.msra.mxu0 0.0
    %584 = vmatprep.subr.mxu0 0.0
    %585 = vmatpush2.msra.mxu0 0.0
    %586 = vmatprep.subr.mxu0 0.0
    %587 = vmatpush2.msra.mxu0 0.0
    %588 = vmatprep.subr.mxu0 0.0
    %589 = vmatpush2.msra.mxu0 0.0
    %590 = vmatprep.subr.mxu0 0.0
    %591 = vmatpush2.msra.mxu0 0.0
    %592 = vmatprep.subr.mxu0 0.0
    %593 = vmatpush2.msra.mxu0 0.0
    %594 = vmatprep.subr.mxu0 0.0
    %595 = vmatpush2.msra.mxu0 0.0
    %596 = vmatprep.subr.mxu0 0.0
    %597 = vmatpush2.msra.mxu0 0.0
    %598 = vmatprep.subr.mxu0 0.0
    %599 = vmatpush2.msra.mxu0 0.0
    %600 = vmatprep.subr.mxu0 0.0
    %601 = vmatpush2.msra.mxu0 0.0
    %602 = vmatprep.subr.mxu0 0.0
    %603 = vmatpush2.msra.mxu0 0.0
    %604 = vmatprep.subr.mxu0 0.0
    %605 = vmatpush2.msra.mxu0 0.0
    %606 = vmatprep.subr.mxu0 0.0
    %607 = vmatpush2.msra.mxu0 0.0
    %608 = vmatprep.subr.mxu0 0.0
    %609 = vmatpush2.msra.mxu0 0.0
    %610 = vmatprep.subr.mxu0 0.0
    %611 = vmatpush2.msra.mxu0 0.0
    %612 = vmatprep.mubr.f32.mxu0 0.0
    %613 = vmatmul.mubr.f32.gmra.mxu0 %v516
    %v614 = vpop.f32.mrf.mxu0
    %v615 = vadd.f32 %v320, %v614
    %v616 = vpop.f32.mrf.mxu0
    %v617 = vadd.f32 %v322, %v616
    %618 = vmatprep.mubr.f32.mxu0 0.0
    %619 = vmatmul.mubr.f32.gmra.mxu0 %v519
    %v620 = vpop.f32.mrf.mxu0
    %v621 = vadd.f32 %v326, %v620
    %v622 = vpop.f32.mrf.mxu0
    %v623 = vadd.f32 %v328, %v622
    %624 = vmatprep.mubr.f32.mxu0 0.0
    %625 = vmatmul.mubr.f32.gmra.mxu0 %v522
    %v626 = vpop.f32.mrf.mxu0
    %v627 = vadd.f32 %v332, %v626
    %v628 = vpop.f32.mrf.mxu0
    %v629 = vadd.f32 %v334, %v628
    %630 = vmatprep.mubr.f32.mxu0 0.0
    %631 = vmatmul.mubr.f32.gmra.mxu0 %v525
    %v632 = vpop.f32.mrf.mxu0
    %v633 = vadd.f32 %v338, %v632
    %v634 = vpop.f32.mrf.mxu0
    %v635 = vadd.f32 %v340, %v634
    %636 = vmatprep.mubr.f32.mxu0 0.0
    %637 = vmatmul.mubr.f32.gmra.mxu0 %v528
    %v638 = vpop.f32.mrf.mxu0
    %v639 = vadd.f32 %v344, %v638
    %v640 = vpop.f32.mrf.mxu0
    %v641 = vadd.f32 %v346, %v640
    %642 = vmatprep.mubr.f32.mxu0 0.0
    %643 = vmatmul.mubr.f32.gmra.mxu0 %v531
    %v644 = vpop.f32.mrf.mxu0
    %v645 = vadd.f32 %v350, %v644
    %v646 = vpop.f32.mrf.mxu0
    %v647 = vadd.f32 %v352, %v646
    %648 = vmatprep.mubr.f32.mxu0 0.0
    %649 = vmatmul.mubr.f32.gmra.mxu0 %v534
    %v650 = vpop.f32.mrf.mxu0
    %v651 = vadd.f32 %v356, %v650
    %v652 = vpop.f32.mrf.mxu0
    %v653 = vadd.f32 %v358, %v652
    %654 = vmatprep.mubr.f32.mxu0 0.0
    %655 = vmatmul.mubr.f32.gmra.mxu0 %v537
    %v656 = vpop.f32.mrf.mxu0
    %v657 = vadd.f32 %v362, %v656
    %v658 = vpop.f32.mrf.mxu0
    %v659 = vadd.f32 %v364, %v658
    %660 = vmatprep.mubr.f32.mxu0 0.0
    %661 = vmatmul.mubr.f32.gmra.mxu0 %v540
    %v662 = vpop.f32.mrf.mxu0
    %v663 = vadd.f32 %v368, %v662
    %v664 = vpop.f32.mrf.mxu0
    %v665 = vadd.f32 %v370, %v664
    %666 = vmatprep.mubr.f32.mxu0 0.0
    %667 = vmatmul.mubr.f32.gmra.mxu0 %v543
    %v668 = vpop.f32.mrf.mxu0
    %v669 = vadd.f32 %v374, %v668
    %v670 = vpop.f32.mrf.mxu0
    %v671 = vadd.f32 %v376, %v670
    %672 = vmatprep.mubr.f32.mxu0 0.0
    %673 = vmatmul.mubr.f32.gmra.mxu0 %v546
    %v674 = vpop.f32.mrf.mxu0
    %v675 = vadd.f32 %v380, %v674
    %v676 = vpop.f32.mrf.mxu0
    %v677 = vadd.f32 %v382, %v676
    %678 = vdwg.mxu0
    %679 = vmatprep.subr.mxu0 0.0
    %680 = vmatpush1.msra.mxu0 0.0
    %681 = vmatprep.subr.mxu0 0.0
    %682 = vmatpush1.msra.mxu0 0.0
    %683 = vmatprep.subr.mxu0 0.0
    %684 = vmatpush1.msra.mxu0 0.0
    %685 = vmatprep.subr.mxu0 0.0
    %686 = vmatpush1.msra.mxu0 0.0
    %687 = vmatprep.subr.mxu0 0.0
    %688 = vmatpush1.msra.mxu0 0.0
    %689 = vmatprep.subr.mxu0 0.0
    %690 = vmatpush1.msra.mxu0 0.0
    %691 = vmatprep.subr.mxu0 0.0
    %692 = vmatpush1.msra.mxu0 0.0
    %693 = vmatprep.subr.mxu0 0.0
    %694 = vmatpush1.msra.mxu0 0.0
    %695 = vmatprep.subr.mxu0 0.0
    %696 = vmatpush1.msra.mxu0 0.0
    %697 = vmatprep.subr.mxu0 0.0
    %698 = vmatpush1.msra.mxu0 0.0
    %699 = vmatprep.subr.mxu0 0.0
    %700 = vmatpush1.msra.mxu0 0.0
    %701 = vmatprep.subr.mxu0 0.0
    %702 = vmatpush1.msra.mxu0 0.0
    %703 = vmatprep.subr.mxu0 %v191
    %704 = vmatpush1.msra.mxu0 %v190
    %705 = vmatprep.subr.mxu0 %v187
    %706 = vmatpush1.msra.mxu0 %v186
    %707 = vmatprep.subr.mxu0 %v183
    %708 = vmatpush1.msra.mxu0 %v182
    %709 = vmatprep.subr.mxu0 %v179
    %710 = vmatpush1.msra.mxu0 %v178
    %711 = vmatprep.subr.mxu0 0.0
    %712 = vmatpush2.msra.mxu0 0.0
    %713 = vmatprep.subr.mxu0 0.0
    %714 = vmatpush2.msra.mxu0 0.0
    %715 = vmatprep.subr.mxu0 0.0
    %716 = vmatpush2.msra.mxu0 0.0
    %717 = vmatprep.subr.mxu0 0.0
    %718 = vmatpush2.msra.mxu0 0.0
    %719 = vmatprep.subr.mxu0 0.0
    %720 = vmatpush2.msra.mxu0 0.0
    %721 = vmatprep.subr.mxu0 0.0
    %722 = vmatpush2.msra.mxu0 0.0
    %723 = vmatprep.subr.mxu0 0.0
    %724 = vmatpush2.msra.mxu0 0.0
    %725 = vmatprep.subr.mxu0 0.0
    %726 = vmatpush2.msra.mxu0 0.0
    %727 = vmatprep.subr.mxu0 0.0
    %728 = vmatpush2.msra.mxu0 0.0
    %729 = vmatprep.subr.mxu0 0.0
    %730 = vmatpush2.msra.mxu0 0.0
    %731 = vmatprep.subr.mxu0 0.0
    %732 = vmatpush2.msra.mxu0 0.0
    %733 = vmatprep.subr.mxu0 0.0
    %734 = vmatpush2.msra.mxu0 0.0
    %735 = vmatprep.subr.mxu0 0.0
    %736 = vmatpush2.msra.mxu0 0.0
    %737 = vmatprep.subr.mxu0 0.0
    %738 = vmatpush2.msra.mxu0 0.0
    %739 = vmatprep.subr.mxu0 0.0
    %740 = vmatpush2.msra.mxu0 0.0
    %741 = vmatprep.subr.mxu0 0.0
    %742 = vmatpush2.msra.mxu0 0.0
    %743 = vmatprep.mubr.f32.mxu0 0.0
    %744 = vmatmul.mubr.f32.gmra.mxu0 %v516
    %v745 = vpop.f32.mrf.mxu0
    %v746 = vadd.f32 %v451, %v745
    %v747 = vpop.f32.mrf.mxu0
    %v748 = vadd.f32 %v453, %v747
    %749 = vmatprep.mubr.f32.mxu0 0.0
    %750 = vmatmul.mubr.f32.gmra.mxu0 %v519
    %v751 = vpop.f32.mrf.mxu0
    %v752 = vadd.f32 %v457, %v751
    %v753 = vpop.f32.mrf.mxu0
    %v754 = vadd.f32 %v459, %v753
    %755 = vmatprep.mubr.f32.mxu0 0.0
    %756 = vmatmul.mubr.f32.gmra.mxu0 %v522
    %v757 = vpop.f32.mrf.mxu0
    %v758 = vadd.f32 %v463, %v757
    %v759 = vpop.f32.mrf.mxu0
    %v760 = vadd.f32 %v465, %v759
    %761 = vmatprep.mubr.f32.mxu0 0.0
    %762 = vmatmul.mubr.f32.gmra.mxu0 %v525
    %v763 = vpop.f32.mrf.mxu0
    %v764 = vadd.f32 %v469, %v763
    %v765 = vpop.f32.mrf.mxu0
    %v766 = vadd.f32 %v471, %v765
    %767 = vmatprep.mubr.f32.mxu0 0.0
    %768 = vmatmul.mubr.f32.gmra.mxu0 %v528
    %v769 = vpop.f32.mrf.mxu0
    %v770 = vadd.f32 %v475, %v769
    %v771 = vpop.f32.mrf.mxu0
    %v772 = vadd.f32 %v477, %v771
    %773 = vmatprep.mubr.f32.mxu0 0.0
    %774 = vmatmul.mubr.f32.gmra.mxu0 %v531
    %v775 = vpop.f32.mrf.mxu0
    %v776 = vadd.f32 %v481, %v775
    %v777 = vpop.f32.mrf.mxu0
    %v778 = vadd.f32 %v483, %v777
    %779 = vmatprep.mubr.f32.mxu0 0.0
    %780 = vmatmul.mubr.f32.gmra.mxu0 %v534
    %v781 = vpop.f32.mrf.mxu0
    %v782 = vadd.f32 %v487, %v781
    %v783 = vpop.f32.mrf.mxu0
    %v784 = vadd.f32 %v489, %v783
    %785 = vmatprep.mubr.f32.mxu0 0.0
    %786 = vmatmul.mubr.f32.gmra.mxu0 %v537
    %v787 = vpop.f32.mrf.mxu0
    %v788 = vadd.f32 %v493, %v787
    %v789 = vpop.f32.mrf.mxu0
    %v790 = vadd.f32 %v495, %v789
    %791 = vmatprep.mubr.f32.mxu0 0.0
    %792 = vmatmul.mubr.f32.gmra.mxu0 %v540
    %v793 = vpop.f32.mrf.mxu0
    %v794 = vadd.f32 %v499, %v793
    %v795 = vpop.f32.mrf.mxu0
    %v796 = vadd.f32 %v501, %v795
    %797 = vmatprep.mubr.f32.mxu0 0.0
    %798 = vmatmul.mubr.f32.gmra.mxu0 %v543
    %v799 = vpop.f32.mrf.mxu0
    %v800 = vadd.f32 %v505, %v799
    %v801 = vpop.f32.mrf.mxu0
    %v802 = vadd.f32 %v507, %v801
    %803 = vmatprep.mubr.f32.mxu0 0.0
    %804 = vmatmul.mubr.f32.gmra.mxu0 %v546
    %v805 = vpop.f32.mrf.mxu0
    %v806 = vadd.f32 %v511, %v805
    %v807 = vpop.f32.mrf.mxu0
    %v808 = vadd.f32 %v513, %v807
    %809 = vdwg.mxu0
    %v810 = vld [vmem:[%s0 + $0x2] sm:$0xff]
    %v811 = vld [vmem:[%s0 + $0xa] sm:$0xff]
    %v812 = vld [vmem:[%s0 + $0x12] sm:$0xff]
    %v813 = vld [vmem:[%s0 + $0x1a] sm:$0xff]
    %v814 = vld [vmem:[%s0 + $0x22] sm:$0xff]
    %v815 = vld [vmem:[%s0 + $0x2a] sm:$0xff]
    %v816 = vld [vmem:[%s0 + $0x32] sm:$0xff]
    %v817 = vld [vmem:[%s0 + $0x3a] sm:$0xff]
    %v818 = vld [vmem:[%s0 + $0x42] sm:$0xff]
    %v819 = vld [vmem:[%s0 + $0x4a] sm:$0xff]
    %v820 = vld [vmem:[%s0 + $0x52] sm:$0xff]
    %v821 = vld [vmem:[#allocation7 + $0x100] sm:$0xff]
    %v822 = vld [vmem:[#allocation7 + $0x108] sm:$0xff]
    %v823 = vld [vmem:[#allocation7 + $0x110] sm:$0xff]
    %v824 = vld [vmem:[#allocation7 + $0x118] sm:$0xff]
    %v825 = vld [vmem:[#allocation7 + $0x120] sm:$0xff]
    %v826 = vld [vmem:[#allocation7 + $0x128] sm:$0xff]
    %v827 = vld [vmem:[#allocation7 + $0x130] sm:$0xff]
    %v828 = vld [vmem:[#allocation7 + $0x138] sm:$0xff]
    %v829 = vld [vmem:[#allocation7 + $0x140] sm:$0xff]
    %v830 = vld [vmem:[#allocation7 + $0x148] sm:$0xff]
    %v831 = vld [vmem:[#allocation7 + $0x150] sm:$0xff]
    %v832 = vld [vmem:[#allocation7 + $0x158] sm:$0xff]
    %v833 = vld [vmem:[#allocation7 + $0x160] sm:$0xff]
    %v834 = vld [vmem:[#allocation7 + $0x168] sm:$0xff]
    %v835 = vld [vmem:[#allocation7 + $0x170] sm:$0xff]
    %v836 = vld [vmem:[#allocation7 + $0x178] sm:$0xff]
    %v838 = vsel %vm219, %v810, 0
    %v841 = vsel %vm219, %v811, 0
    %v844 = vsel %vm219, %v812, 0
    %v847 = vsel %vm219, %v813, 0
    %v850 = vsel %vm219, %v814, 0
    %v853 = vsel %vm219, %v815, 0
    %v856 = vsel %vm219, %v816, 0
    %v859 = vsel %vm219, %v817, 0
    %v862 = vsel %vm219, %v818, 0
    %v865 = vsel %vm219, %v819, 0
    %v868 = vsel %vm219, %v820, 0
    %870 = vmatprep.subr.mxu0 0.0
    %871 = vmatpush1.msra.mxu0 0.0
    %872 = vmatprep.subr.mxu0 0.0
    %873 = vmatpush1.msra.mxu0 0.0
    %874 = vmatprep.subr.mxu0 0.0
    %875 = vmatpush1.msra.mxu0 0.0
    %876 = vmatprep.subr.mxu0 0.0
    %877 = vmatpush1.msra.mxu0 0.0
    %878 = vmatprep.subr.mxu0 0.0
    %879 = vmatpush1.msra.mxu0 0.0
    %880 = vmatprep.subr.mxu0 0.0
    %881 = vmatpush1.msra.mxu0 0.0
    %882 = vmatprep.subr.mxu0 0.0
    %883 = vmatpush1.msra.mxu0 0.0
    %884 = vmatprep.subr.mxu0 0.0
    %885 = vmatpush1.msra.mxu0 0.0
    %886 = vmatprep.subr.mxu0 0.0
    %887 = vmatpush1.msra.mxu0 0.0
    %888 = vmatprep.subr.mxu0 0.0
    %889 = vmatpush1.msra.mxu0 0.0
    %890 = vmatprep.subr.mxu0 0.0
    %891 = vmatpush1.msra.mxu0 0.0
    %892 = vmatprep.subr.mxu0 0.0
    %893 = vmatpush1.msra.mxu0 0.0
    %894 = vmatprep.subr.mxu0 %v834
    %895 = vmatpush1.msra.mxu0 %v833
    %896 = vmatprep.subr.mxu0 %v830
    %897 = vmatpush1.msra.mxu0 %v829
    %898 = vmatprep.subr.mxu0 %v826
    %899 = vmatpush1.msra.mxu0 %v825
    %900 = vmatprep.subr.mxu0 %v822
    %901 = vmatpush1.msra.mxu0 %v821
    %902 = vmatprep.subr.mxu0 0.0
    %903 = vmatpush2.msra.mxu0 0.0
    %904 = vmatprep.subr.mxu0 0.0
    %905 = vmatpush2.msra.mxu0 0.0
    %906 = vmatprep.subr.mxu0 0.0
    %907 = vmatpush2.msra.mxu0 0.0
    %908 = vmatprep.subr.mxu0 0.0
    %909 = vmatpush2.msra.mxu0 0.0
    %910 = vmatprep.subr.mxu0 0.0
    %911 = vmatpush2.msra.mxu0 0.0
    %912 = vmatprep.subr.mxu0 0.0
    %913 = vmatpush2.msra.mxu0 0.0
    %914 = vmatprep.subr.mxu0 0.0
    %915 = vmatpush2.msra.mxu0 0.0
    %916 = vmatprep.subr.mxu0 0.0
    %917 = vmatpush2.msra.mxu0 0.0
    %918 = vmatprep.subr.mxu0 0.0
    %919 = vmatpush2.msra.mxu0 0.0
    %920 = vmatprep.subr.mxu0 0.0
    %921 = vmatpush2.msra.mxu0 0.0
    %922 = vmatprep.subr.mxu0 0.0
    %923 = vmatpush2.msra.mxu0 0.0
    %924 = vmatprep.subr.mxu0 0.0
    %925 = vmatpush2.msra.mxu0 0.0
    %926 = vmatprep.subr.mxu0 0.0
    %927 = vmatpush2.msra.mxu0 0.0
    %928 = vmatprep.subr.mxu0 0.0
    %929 = vmatpush2.msra.mxu0 0.0
    %930 = vmatprep.subr.mxu0 0.0
    %931 = vmatpush2.msra.mxu0 0.0
    %932 = vmatprep.subr.mxu0 0.0
    %933 = vmatpush2.msra.mxu0 0.0
    %934 = vmatprep.mubr.f32.mxu0 0.0
    %935 = vmatmul.mubr.f32.gmra.mxu0 %v838
    %v936 = vpop.f32.mrf.mxu0
    %v937 = vadd.f32 0.0, %v936
    %v938 = vpop.f32.mrf.mxu0
    %v939 = vadd.f32 0.0, %v938
    %940 = vmatprep.mubr.f32.mxu0 0.0
    %941 = vmatmul.mubr.f32.gmra.mxu0 %v841
    %v942 = vpop.f32.mrf.mxu0
    %v943 = vadd.f32 0.0, %v942
    %v944 = vpop.f32.mrf.mxu0
    %v945 = vadd.f32 0.0, %v944
    %946 = vmatprep.mubr.f32.mxu0 0.0
    %947 = vmatmul.mubr.f32.gmra.mxu0 %v844
    %v948 = vpop.f32.mrf.mxu0
    %v949 = vadd.f32 0.0, %v948
    %v950 = vpop.f32.mrf.mxu0
    %v951 = vadd.f32 0.0, %v950
    %952 = vmatprep.mubr.f32.mxu0 0.0
    %953 = vmatmul.mubr.f32.gmra.mxu0 %v847
    %v954 = vpop.f32.mrf.mxu0
    %v955 = vadd.f32 0.0, %v954
    %v956 = vpop.f32.mrf.mxu0
    %v957 = vadd.f32 0.0, %v956
    %958 = vmatprep.mubr.f32.mxu0 0.0
    %959 = vmatmul.mubr.f32.gmra.mxu0 %v850
    %v960 = vpop.f32.mrf.mxu0
    %v961 = vadd.f32 0.0, %v960
    %v962 = vpop.f32.mrf.mxu0
    %v963 = vadd.f32 0.0, %v962
    %964 = vmatprep.mubr.f32.mxu0 0.0
    %965 = vmatmul.mubr.f32.gmra.mxu0 %v853
    %v966 = vpop.f32.mrf.mxu0
    %v967 = vadd.f32 0.0, %v966
    %v968 = vpop.f32.mrf.mxu0
    %v969 = vadd.f32 0.0, %v968
    %970 = vmatprep.mubr.f32.mxu0 0.0
    %971 = vmatmul.mubr.f32.gmra.mxu0 %v856
    %v972 = vpop.f32.mrf.mxu0
    %v973 = vadd.f32 0.0, %v972
    %v974 = vpop.f32.mrf.mxu0
    %v975 = vadd.f32 0.0, %v974
    %976 = vmatprep.mubr.f32.mxu0 0.0
    %977 = vmatmul.mubr.f32.gmra.mxu0 %v859
    %v978 = vpop.f32.mrf.mxu0
    %v979 = vadd.f32 0.0, %v978
    %v980 = vpop.f32.mrf.mxu0
    %v981 = vadd.f32 0.0, %v980
    %982 = vmatprep.mubr.f32.mxu0 0.0
    %983 = vmatmul.mubr.f32.gmra.mxu0 %v862
    %v984 = vpop.f32.mrf.mxu0
    %v985 = vadd.f32 0.0, %v984
    %v986 = vpop.f32.mrf.mxu0
    %v987 = vadd.f32 0.0, %v986
    %988 = vmatprep.mubr.f32.mxu0 0.0
    %989 = vmatmul.mubr.f32.gmra.mxu0 %v865
    %v990 = vpop.f32.mrf.mxu0
    %v991 = vadd.f32 0.0, %v990
    %v992 = vpop.f32.mrf.mxu0
    %v993 = vadd.f32 0.0, %v992
    %994 = vmatprep.mubr.f32.mxu0 0.0
    %995 = vmatmul.mubr.f32.gmra.mxu0 %v868
    %v996 = vpop.f32.mrf.mxu0
    %v997 = vadd.f32 0.0, %v996
    %v998 = vpop.f32.mrf.mxu0
    %v999 = vadd.f32 0.0, %v998
    %1000 = vdwg.mxu0
    %1001 = vmatprep.subr.mxu0 0.0
    %1002 = vmatpush1.msra.mxu0 0.0
    %1003 = vmatprep.subr.mxu0 0.0
    %1004 = vmatpush1.msra.mxu0 0.0
    %1005 = vmatprep.subr.mxu0 0.0
    %1006 = vmatpush1.msra.mxu0 0.0
    %1007 = vmatprep.subr.mxu0 0.0
    %1008 = vmatpush1.msra.mxu0 0.0
    %1009 = vmatprep.subr.mxu0 0.0
    %1010 = vmatpush1.msra.mxu0 0.0
    %1011 = vmatprep.subr.mxu0 0.0
    %1012 = vmatpush1.msra.mxu0 0.0
    %1013 = vmatprep.subr.mxu0 0.0
    %1014 = vmatpush1.msra.mxu0 0.0
    %1015 = vmatprep.subr.mxu0 0.0
    %1016 = vmatpush1.msra.mxu0 0.0
    %1017 = vmatprep.subr.mxu0 0.0
    %1018 = vmatpush1.msra.mxu0 0.0
    %1019 = vmatprep.subr.mxu0 0.0
    %1020 = vmatpush1.msra.mxu0 0.0
    %1021 = vmatprep.subr.mxu0 0.0
    %1022 = vmatpush1.msra.mxu0 0.0
    %1023 = vmatprep.subr.mxu0 0.0
    %1024 = vmatpush1.msra.mxu0 0.0
    %1025 = vmatprep.subr.mxu0 %v836
    %1026 = vmatpush1.msra.mxu0 %v835
    %1027 = vmatprep.subr.mxu0 %v832
    %1028 = vmatpush1.msra.mxu0 %v831
    %1029 = vmatprep.subr.mxu0 %v828
    %1030 = vmatpush1.msra.mxu0 %v827
    %1031 = vmatprep.subr.mxu0 %v824
    %1032 = vmatpush1.msra.mxu0 %v823
    %1033 = vmatprep.subr.mxu0 0.0
    %1034 = vmatpush2.msra.mxu0 0.0
    %1035 = vmatprep.subr.mxu0 0.0
    %1036 = vmatpush2.msra.mxu0 0.0
    %1037 = vmatprep.subr.mxu0 0.0
    %1038 = vmatpush2.msra.mxu0 0.0
    %1039 = vmatprep.subr.mxu0 0.0
    %1040 = vmatpush2.msra.mxu0 0.0
    %1041 = vmatprep.subr.mxu0 0.0
    %1042 = vmatpush2.msra.mxu0 0.0
    %1043 = vmatprep.subr.mxu0 0.0
    %1044 = vmatpush2.msra.mxu0 0.0
    %1045 = vmatprep.subr.mxu0 0.0
    %1046 = vmatpush2.msra.mxu0 0.0
    %1047 = vmatprep.subr.mxu0 0.0
    %1048 = vmatpush2.msra.mxu0 0.0
    %1049 = vmatprep.subr.mxu0 0.0
    %1050 = vmatpush2.msra.mxu0 0.0
    %1051 = vmatprep.subr.mxu0 0.0
    %1052 = vmatpush2.msra.mxu0 0.0
    %1053 = vmatprep.subr.mxu0 0.0
    %1054 = vmatpush2.msra.mxu0 0.0
    %1055 = vmatprep.subr.mxu0 0.0
    %1056 = vmatpush2.msra.mxu0 0.0
    %1057 = vmatprep.subr.mxu0 0.0
    %1058 = vmatpush2.msra.mxu0 0.0
    %1059 = vmatprep.subr.mxu0 0.0
    %1060 = vmatpush2.msra.mxu0 0.0
    %1061 = vmatprep.subr.mxu0 0.0
    %1062 = vmatpush2.msra.mxu0 0.0
    %1063 = vmatprep.subr.mxu0 0.0
    %1064 = vmatpush2.msra.mxu0 0.0
    %1065 = vmatprep.mubr.f32.mxu0 0.0
    %1066 = vmatmul.mubr.f32.gmra.mxu0 %v838
    %v1067 = vpop.f32.mrf.mxu0
    %v1068 = vadd.f32 0.0, %v1067
    %v1069 = vpop.f32.mrf.mxu0
    %v1070 = vadd.f32 0.0, %v1069
    %1071 = vmatprep.mubr.f32.mxu0 0.0
    %1072 = vmatmul.mubr.f32.gmra.mxu0 %v841
    %v1073 = vpop.f32.mrf.mxu0
    %v1074 = vadd.f32 0.0, %v1073
    %v1075 = vpop.f32.mrf.mxu0
    %v1076 = vadd.f32 0.0, %v1075
    %1077 = vmatprep.mubr.f32.mxu0 0.0
    %1078 = vmatmul.mubr.f32.gmra.mxu0 %v844
    %v1079 = vpop.f32.mrf.mxu0
    %v1080 = vadd.f32 0.0, %v1079
    %v1081 = vpop.f32.mrf.mxu0
    %v1082 = vadd.f32 0.0, %v1081
    %1083 = vmatprep.mubr.f32.mxu0 0.0
    %1084 = vmatmul.mubr.f32.gmra.mxu0 %v847
    %v1085 = vpop.f32.mrf.mxu0
    %v1086 = vadd.f32 0.0, %v1085
    %v1087 = vpop.f32.mrf.mxu0
    %v1088 = vadd.f32 0.0, %v1087
    %1089 = vmatprep.mubr.f32.mxu0 0.0
    %1090 = vmatmul.mubr.f32.gmra.mxu0 %v850
    %v1091 = vpop.f32.mrf.mxu0
    %v1092 = vadd.f32 0.0, %v1091
    %v1093 = vpop.f32.mrf.mxu0
    %v1094 = vadd.f32 0.0, %v1093
    %1095 = vmatprep.mubr.f32.mxu0 0.0
    %1096 = vmatmul.mubr.f32.gmra.mxu0 %v853
    %v1097 = vpop.f32.mrf.mxu0
    %v1098 = vadd.f32 0.0, %v1097
    %v1099 = vpop.f32.mrf.mxu0
    %v1100 = vadd.f32 0.0, %v1099
    %1101 = vmatprep.mubr.f32.mxu0 0.0
    %1102 = vmatmul.mubr.f32.gmra.mxu0 %v856
    %v1103 = vpop.f32.mrf.mxu0
    %v1104 = vadd.f32 0.0, %v1103
    %v1105 = vpop.f32.mrf.mxu0
    %v1106 = vadd.f32 0.0, %v1105
    %1107 = vmatprep.mubr.f32.mxu0 0.0
    %1108 = vmatmul.mubr.f32.gmra.mxu0 %v859
    %v1109 = vpop.f32.mrf.mxu0
    %v1110 = vadd.f32 0.0, %v1109
    %v1111 = vpop.f32.mrf.mxu0
    %v1112 = vadd.f32 0.0, %v1111
    %1113 = vmatprep.mubr.f32.mxu0 0.0
    %1114 = vmatmul.mubr.f32.gmra.mxu0 %v862
    %v1115 = vpop.f32.mrf.mxu0
    %v1116 = vadd.f32 0.0, %v1115
    %v1117 = vpop.f32.mrf.mxu0
    %v1118 = vadd.f32 0.0, %v1117
    %1119 = vmatprep.mubr.f32.mxu0 0.0
    %1120 = vmatmul.mubr.f32.gmra.mxu0 %v865
    %v1121 = vpop.f32.mrf.mxu0
    %v1122 = vadd.f32 0.0, %v1121
    %v1123 = vpop.f32.mrf.mxu0
    %v1124 = vadd.f32 0.0, %v1123
    %1125 = vmatprep.mubr.f32.mxu0 0.0
    %1126 = vmatmul.mubr.f32.gmra.mxu0 %v868
    %v1127 = vpop.f32.mrf.mxu0
    %v1128 = vadd.f32 0.0, %v1127
    %v1129 = vpop.f32.mrf.mxu0
    %v1130 = vadd.f32 0.0, %v1129
    %1131 = vdwg.mxu0
    %v1132 = vadd.f32 %v615, %v937
    %v1133 = vadd.f32 %v617, %v939
    %v1134 = vadd.f32 %v746, %v1068
    %v1135 = vadd.f32 %v748, %v1070
    %v1136 = vadd.f32 %v621, %v943
    %v1137 = vadd.f32 %v623, %v945
    %v1138 = vadd.f32 %v752, %v1074
    %v1139 = vadd.f32 %v754, %v1076
    %v1140 = vadd.f32 %v627, %v949
    %v1141 = vadd.f32 %v629, %v951
    %v1142 = vadd.f32 %v758, %v1080
    %v1143 = vadd.f32 %v760, %v1082
    %v1144 = vadd.f32 %v633, %v955
    %v1145 = vadd.f32 %v635, %v957
    %v1146 = vadd.f32 %v764, %v1086
    %v1147 = vadd.f32 %v766, %v1088
    %v1148 = vadd.f32 %v639, %v961
    %v1149 = vadd.f32 %v641, %v963
    %v1150 = vadd.f32 %v770, %v1092
    %v1151 = vadd.f32 %v772, %v1094
    %v1152 = vadd.f32 %v645, %v967
    %v1153 = vadd.f32 %v647, %v969
    %v1154 = vadd.f32 %v776, %v1098
    %v1155 = vadd.f32 %v778, %v1100
    %v1156 = vadd.f32 %v651, %v973
    %v1157 = vadd.f32 %v653, %v975
    %v1158 = vadd.f32 %v782, %v1104
    %v1159 = vadd.f32 %v784, %v1106
    %v1160 = vadd.f32 %v657, %v979
    %v1161 = vadd.f32 %v659, %v981
    %v1162 = vadd.f32 %v788, %v1110
    %v1163 = vadd.f32 %v790, %v1112
    %v1164 = vadd.f32 %v663, %v985
    %v1165 = vadd.f32 %v665, %v987
    %v1166 = vadd.f32 %v794, %v1116
    %v1167 = vadd.f32 %v796, %v1118
    %v1168 = vadd.f32 %v669, %v991
    %v1169 = vadd.f32 %v671, %v993
    %v1170 = vadd.f32 %v800, %v1122
    %v1171 = vadd.f32 %v802, %v1124
    %v1172 = vadd.f32 %v675, %v997
    %v1173 = vadd.f32 %v677, %v999
    %v1174 = vadd.f32 %v806, %v1128
    %v1175 = vadd.f32 %v808, %v1130
    %v1176 = vld [vmem:[%s0 + $0x3] sm:$0xff]
    %v1177 = vld [vmem:[%s0 + $0xb] sm:$0xff]
    %v1178 = vld [vmem:[%s0 + $0x13] sm:$0xff]
    %v1179 = vld [vmem:[%s0 + $0x1b] sm:$0xff]
    %v1180 = vld [vmem:[%s0 + $0x23] sm:$0xff]
    %v1181 = vld [vmem:[%s0 + $0x2b] sm:$0xff]
    %v1182 = vld [vmem:[%s0 + $0x33] sm:$0xff]
    %v1183 = vld [vmem:[%s0 + $0x3b] sm:$0xff]
    %v1184 = vld [vmem:[%s0 + $0x43] sm:$0xff]
    %v1185 = vld [vmem:[%s0 + $0x4b] sm:$0xff]
    %v1186 = vld [vmem:[%s0 + $0x53] sm:$0xff]
    %v1187 = vld [vmem:[#allocation7 + $0x180] sm:$0xff]
    %v1188 = vld [vmem:[#allocation7 + $0x188] sm:$0xff]
    %v1189 = vld [vmem:[#allocation7 + $0x190] sm:$0xff]
    %v1190 = vld [vmem:[#allocation7 + $0x198] sm:$0xff]
    %v1191 = vld [vmem:[#allocation7 + $0x1a0] sm:$0xff]
    %v1192 = vld [vmem:[#allocation7 + $0x1a8] sm:$0xff]
    %v1193 = vld [vmem:[#allocation7 + $0x1b0] sm:$0xff]
    %v1194 = vld [vmem:[#allocation7 + $0x1b8] sm:$0xff]
    %v1195 = vld [vmem:[#allocation7 + $0x1c0] sm:$0xff]
    %v1196 = vld [vmem:[#allocation7 + $0x1c8] sm:$0xff]
    %v1197 = vld [vmem:[#allocation7 + $0x1d0] sm:$0xff]
    %v1198 = vld [vmem:[#allocation7 + $0x1d8] sm:$0xff]
    %v1199 = vld [vmem:[#allocation7 + $0x1e0] sm:$0xff]
    %v1200 = vld [vmem:[#allocation7 + $0x1e8] sm:$0xff]
    %v1201 = vld [vmem:[#allocation7 + $0x1f0] sm:$0xff]
    %v1202 = vld [vmem:[#allocation7 + $0x1f8] sm:$0xff]
    %v1204 = vsel %vm219, %v1176, 0
    %v1207 = vsel %vm219, %v1177, 0
    %v1210 = vsel %vm219, %v1178, 0
    %v1213 = vsel %vm219, %v1179, 0
    %v1216 = vsel %vm219, %v1180, 0
    %v1219 = vsel %vm219, %v1181, 0
    %v1222 = vsel %vm219, %v1182, 0
    %v1225 = vsel %vm219, %v1183, 0
    %v1228 = vsel %vm219, %v1184, 0
    %v1231 = vsel %vm219, %v1185, 0
    %v1234 = vsel %vm219, %v1186, 0
    %1236 = vmatprep.subr.mxu0 0.0
    %1237 = vmatpush1.msra.mxu0 0.0
    %1238 = vmatprep.subr.mxu0 0.0
    %1239 = vmatpush1.msra.mxu0 0.0
    %1240 = vmatprep.subr.mxu0 0.0
    %1241 = vmatpush1.msra.mxu0 0.0
    %1242 = vmatprep.subr.mxu0 0.0
    %1243 = vmatpush1.msra.mxu0 0.0
    %1244 = vmatprep.subr.mxu0 0.0
    %1245 = vmatpush1.msra.mxu0 0.0
    %1246 = vmatprep.subr.mxu0 0.0
    %1247 = vmatpush1.msra.mxu0 0.0
    %1248 = vmatprep.subr.mxu0 0.0
    %1249 = vmatpush1.msra.mxu0 0.0
    %1250 = vmatprep.subr.mxu0 0.0
    %1251 = vmatpush1.msra.mxu0 0.0
    %1252 = vmatprep.subr.mxu0 0.0
    %1253 = vmatpush1.msra.mxu0 0.0
    %1254 = vmatprep.subr.mxu0 0.0
    %1255 = vmatpush1.msra.mxu0 0.0
    %1256 = vmatprep.subr.mxu0 0.0
    %1257 = vmatpush1.msra.mxu0 0.0
    %1258 = vmatprep.subr.mxu0 0.0
    %1259 = vmatpush1.msra.mxu0 0.0
    %1260 = vmatprep.subr.mxu0 %v1200
    %1261 = vmatpush1.msra.mxu0 %v1199
    %1262 = vmatprep.subr.mxu0 %v1196
    %1263 = vmatpush1.msra.mxu0 %v1195
    %1264 = vmatprep.subr.mxu0 %v1192
    %1265 = vmatpush1.msra.mxu0 %v1191
    %1266 = vmatprep.subr.mxu0 %v1188
    %1267 = vmatpush1.msra.mxu0 %v1187
    %1268 = vmatprep.subr.mxu0 0.0
    %1269 = vmatpush2.msra.mxu0 0.0
    %1270 = vmatprep.subr.mxu0 0.0
    %1271 = vmatpush2.msra.mxu0 0.0
    %1272 = vmatprep.subr.mxu0 0.0
    %1273 = vmatpush2.msra.mxu0 0.0
    %1274 = vmatprep.subr.mxu0 0.0
    %1275 = vmatpush2.msra.mxu0 0.0
    %1276 = vmatprep.subr.mxu0 0.0
    %1277 = vmatpush2.msra.mxu0 0.0
    %1278 = vmatprep.subr.mxu0 0.0
    %1279 = vmatpush2.msra.mxu0 0.0
    %1280 = vmatprep.subr.mxu0 0.0
    %1281 = vmatpush2.msra.mxu0 0.0
    %1282 = vmatprep.subr.mxu0 0.0
    %1283 = vmatpush2.msra.mxu0 0.0
    %1284 = vmatprep.subr.mxu0 0.0
    %1285 = vmatpush2.msra.mxu0 0.0
    %1286 = vmatprep.subr.mxu0 0.0
    %1287 = vmatpush2.msra.mxu0 0.0
    %1288 = vmatprep.subr.mxu0 0.0
    %1289 = vmatpush2.msra.mxu0 0.0
    %1290 = vmatprep.subr.mxu0 0.0
    %1291 = vmatpush2.msra.mxu0 0.0
    %1292 = vmatprep.subr.mxu0 0.0
    %1293 = vmatpush2.msra.mxu0 0.0
    %1294 = vmatprep.subr.mxu0 0.0
    %1295 = vmatpush2.msra.mxu0 0.0
    %1296 = vmatprep.subr.mxu0 0.0
    %1297 = vmatpush2.msra.mxu0 0.0
    %1298 = vmatprep.subr.mxu0 0.0
    %1299 = vmatpush2.msra.mxu0 0.0
    %1300 = vmatprep.mubr.f32.mxu0 0.0
    %1301 = vmatmul.mubr.f32.gmra.mxu0 %v1204
    %v1302 = vpop.f32.mrf.mxu0
    %v1303 = vadd.f32 0.0, %v1302
    %v1304 = vpop.f32.mrf.mxu0
    %v1305 = vadd.f32 0.0, %v1304
    %1306 = vmatprep.mubr.f32.mxu0 0.0
    %1307 = vmatmul.mubr.f32.gmra.mxu0 %v1207
    %v1308 = vpop.f32.mrf.mxu0
    %v1309 = vadd.f32 0.0, %v1308
    %v1310 = vpop.f32.mrf.mxu0
    %v1311 = vadd.f32 0.0, %v1310
    %1312 = vmatprep.mubr.f32.mxu0 0.0
    %1313 = vmatmul.mubr.f32.gmra.mxu0 %v1210
    %v1314 = vpop.f32.mrf.mxu0
    %v1315 = vadd.f32 0.0, %v1314
    %v1316 = vpop.f32.mrf.mxu0
    %v1317 = vadd.f32 0.0, %v1316
    %1318 = vmatprep.mubr.f32.mxu0 0.0
    %1319 = vmatmul.mubr.f32.gmra.mxu0 %v1213
    %v1320 = vpop.f32.mrf.mxu0
    %v1321 = vadd.f32 0.0, %v1320
    %v1322 = vpop.f32.mrf.mxu0
    %v1323 = vadd.f32 0.0, %v1322
    %1324 = vmatprep.mubr.f32.mxu0 0.0
    %1325 = vmatmul.mubr.f32.gmra.mxu0 %v1216
    %v1326 = vpop.f32.mrf.mxu0
    %v1327 = vadd.f32 0.0, %v1326
    %v1328 = vpop.f32.mrf.mxu0
    %v1329 = vadd.f32 0.0, %v1328
    %1330 = vmatprep.mubr.f32.mxu0 0.0
    %1331 = vmatmul.mubr.f32.gmra.mxu0 %v1219
    %v1332 = vpop.f32.mrf.mxu0
    %v1333 = vadd.f32 0.0, %v1332
    %v1334 = vpop.f32.mrf.mxu0
    %v1335 = vadd.f32 0.0, %v1334
    %1336 = vmatprep.mubr.f32.mxu0 0.0
    %1337 = vmatmul.mubr.f32.gmra.mxu0 %v1222
    %v1338 = vpop.f32.mrf.mxu0
    %v1339 = vadd.f32 0.0, %v1338
    %v1340 = vpop.f32.mrf.mxu0
    %v1341 = vadd.f32 0.0, %v1340
    %1342 = vmatprep.mubr.f32.mxu0 0.0
    %1343 = vmatmul.mubr.f32.gmra.mxu0 %v1225
    %v1344 = vpop.f32.mrf.mxu0
    %v1345 = vadd.f32 0.0, %v1344
    %v1346 = vpop.f32.mrf.mxu0
    %v1347 = vadd.f32 0.0, %v1346
    %1348 = vmatprep.mubr.f32.mxu0 0.0
    %1349 = vmatmul.mubr.f32.gmra.mxu0 %v1228
    %v1350 = vpop.f32.mrf.mxu0
    %v1351 = vadd.f32 0.0, %v1350
    %v1352 = vpop.f32.mrf.mxu0
    %v1353 = vadd.f32 0.0, %v1352
    %1354 = vmatprep.mubr.f32.mxu0 0.0
    %1355 = vmatmul.mubr.f32.gmra.mxu0 %v1231
    %v1356 = vpop.f32.mrf.mxu0
    %v1357 = vadd.f32 0.0, %v1356
    %v1358 = vpop.f32.mrf.mxu0
    %v1359 = vadd.f32 0.0, %v1358
    %1360 = vmatprep.mubr.f32.mxu0 0.0
    %1361 = vmatmul.mubr.f32.gmra.mxu0 %v1234
    %v1362 = vpop.f32.mrf.mxu0
    %v1363 = vadd.f32 0.0, %v1362
    %v1364 = vpop.f32.mrf.mxu0
    %v1365 = vadd.f32 0.0, %v1364
    %1366 = vdwg.mxu0
    %1367 = vmatprep.subr.mxu0 0.0
    %1368 = vmatpush1.msra.mxu0 0.0
    %1369 = vmatprep.subr.mxu0 0.0
    %1370 = vmatpush1.msra.mxu0 0.0
    %1371 = vmatprep.subr.mxu0 0.0
    %1372 = vmatpush1.msra.mxu0 0.0
    %1373 = vmatprep.subr.mxu0 0.0
    %1374 = vmatpush1.msra.mxu0 0.0
    %1375 = vmatprep.subr.mxu0 0.0
    %1376 = vmatpush1.msra.mxu0 0.0
    %1377 = vmatprep.subr.mxu0 0.0
    %1378 = vmatpush1.msra.mxu0 0.0
    %1379 = vmatprep.subr.mxu0 0.0
    %1380 = vmatpush1.msra.mxu0 0.0
    %1381 = vmatprep.subr.mxu0 0.0
    %1382 = vmatpush1.msra.mxu0 0.0
    %1383 = vmatprep.subr.mxu0 0.0
    %1384 = vmatpush1.msra.mxu0 0.0
    %1385 = vmatprep.subr.mxu0 0.0
    %1386 = vmatpush1.msra.mxu0 0.0
    %1387 = vmatprep.subr.mxu0 0.0
    %1388 = vmatpush1.msra.mxu0 0.0
    %1389 = vmatprep.subr.mxu0 0.0
    %1390 = vmatpush1.msra.mxu0 0.0
    %1391 = vmatprep.subr.mxu0 %v1202
    %1392 = vmatpush1.msra.mxu0 %v1201
    %1393 = vmatprep.subr.mxu0 %v1198
    %1394 = vmatpush1.msra.mxu0 %v1197
    %1395 = vmatprep.subr.mxu0 %v1194
    %1396 = vmatpush1.msra.mxu0 %v1193
    %1397 = vmatprep.subr.mxu0 %v1190
    %1398 = vmatpush1.msra.mxu0 %v1189
    %1399 = vmatprep.subr.mxu0 0.0
    %1400 = vmatpush2.msra.mxu0 0.0
    %1401 = vmatprep.subr.mxu0 0.0
    %1402 = vmatpush2.msra.mxu0 0.0
    %1403 = vmatprep.subr.mxu0 0.0
    %1404 = vmatpush2.msra.mxu0 0.0
    %1405 = vmatprep.subr.mxu0 0.0
    %1406 = vmatpush2.msra.mxu0 0.0
    %1407 = vmatprep.subr.mxu0 0.0
    %1408 = vmatpush2.msra.mxu0 0.0
    %1409 = vmatprep.subr.mxu0 0.0
    %1410 = vmatpush2.msra.mxu0 0.0
    %1411 = vmatprep.subr.mxu0 0.0
    %1412 = vmatpush2.msra.mxu0 0.0
    %1413 = vmatprep.subr.mxu0 0.0
    %1414 = vmatpush2.msra.mxu0 0.0
    %1415 = vmatprep.subr.mxu0 0.0
    %1416 = vmatpush2.msra.mxu0 0.0
    %1417 = vmatprep.subr.mxu0 0.0
    %1418 = vmatpush2.msra.mxu0 0.0
    %1419 = vmatprep.subr.mxu0 0.0
    %1420 = vmatpush2.msra.mxu0 0.0
    %1421 = vmatprep.subr.mxu0 0.0
    %1422 = vmatpush2.msra.mxu0 0.0
    %1423 = vmatprep.subr.mxu0 0.0
    %1424 = vmatpush2.msra.mxu0 0.0
    %1425 = vmatprep.subr.mxu0 0.0
    %1426 = vmatpush2.msra.mxu0 0.0
    %1427 = vmatprep.subr.mxu0 0.0
    %1428 = vmatpush2.msra.mxu0 0.0
    %1429 = vmatprep.subr.mxu0 0.0
    %1430 = vmatpush2.msra.mxu0 0.0
    %1431 = vmatprep.mubr.f32.mxu0 0.0
    %1432 = vmatmul.mubr.f32.gmra.mxu0 %v1204
    %v1433 = vpop.f32.mrf.mxu0
    %v1434 = vadd.f32 0.0, %v1433
    %v1435 = vpop.f32.mrf.mxu0
    %v1436 = vadd.f32 0.0, %v1435
    %1437 = vmatprep.mubr.f32.mxu0 0.0
    %1438 = vmatmul.mubr.f32.gmra.mxu0 %v1207
    %v1439 = vpop.f32.mrf.mxu0
    %v1440 = vadd.f32 0.0, %v1439
    %v1441 = vpop.f32.mrf.mxu0
    %v1442 = vadd.f32 0.0, %v1441
    %1443 = vmatprep.mubr.f32.mxu0 0.0
    %1444 = vmatmul.mubr.f32.gmra.mxu0 %v1210
    %v1445 = vpop.f32.mrf.mxu0
    %v1446 = vadd.f32 0.0, %v1445
    %v1447 = vpop.f32.mrf.mxu0
    %v1448 = vadd.f32 0.0, %v1447
    %1449 = vmatprep.mubr.f32.mxu0 0.0
    %1450 = vmatmul.mubr.f32.gmra.mxu0 %v1213
    %v1451 = vpop.f32.mrf.mxu0
    %v1452 = vadd.f32 0.0, %v1451
    %v1453 = vpop.f32.mrf.mxu0
    %v1454 = vadd.f32 0.0, %v1453
    %1455 = vmatprep.mubr.f32.mxu0 0.0
    %1456 = vmatmul.mubr.f32.gmra.mxu0 %v1216
    %v1457 = vpop.f32.mrf.mxu0
    %v1458 = vadd.f32 0.0, %v1457
    %v1459 = vpop.f32.mrf.mxu0
    %v1460 = vadd.f32 0.0, %v1459
    %1461 = vmatprep.mubr.f32.mxu0 0.0
    %1462 = vmatmul.mubr.f32.gmra.mxu0 %v1219
    %v1463 = vpop.f32.mrf.mxu0
    %v1464 = vadd.f32 0.0, %v1463
    %v1465 = vpop.f32.mrf.mxu0
    %v1466 = vadd.f32 0.0, %v1465
    %1467 = vmatprep.mubr.f32.mxu0 0.0
    %1468 = vmatmul.mubr.f32.gmra.mxu0 %v1222
    %v1469 = vpop.f32.mrf.mxu0
    %v1470 = vadd.f32 0.0, %v1469
    %v1471 = vpop.f32.mrf.mxu0
    %v1472 = vadd.f32 0.0, %v1471
    %1473 = vmatprep.mubr.f32.mxu0 0.0
    %1474 = vmatmul.mubr.f32.gmra.mxu0 %v1225
    %v1475 = vpop.f32.mrf.mxu0
    %v1476 = vadd.f32 0.0, %v1475
    %v1477 = vpop.f32.mrf.mxu0
    %v1478 = vadd.f32 0.0, %v1477
    %1479 = vmatprep.mubr.f32.mxu0 0.0
    %1480 = vmatmul.mubr.f32.gmra.mxu0 %v1228
    %v1481 = vpop.f32.mrf.mxu0
    %v1482 = vadd.f32 0.0, %v1481
    %v1483 = vpop.f32.mrf.mxu0
    %v1484 = vadd.f32 0.0, %v1483
    %1485 = vmatprep.mubr.f32.mxu0 0.0
    %1486 = vmatmul.mubr.f32.gmra.mxu0 %v1231
    %v1487 = vpop.f32.mrf.mxu0
    %v1488 = vadd.f32 0.0, %v1487
    %v1489 = vpop.f32.mrf.mxu0
    %v1490 = vadd.f32 0.0, %v1489
    %1491 = vmatprep.mubr.f32.mxu0 0.0
    %1492 = vmatmul.mubr.f32.gmra.mxu0 %v1234
    %v1493 = vpop.f32.mrf.mxu0
    %v1494 = vadd.f32 0.0, %v1493
    %v1495 = vpop.f32.mrf.mxu0
    %v1496 = vadd.f32 0.0, %v1495
    %1497 = vdwg.mxu0
    %v1498 = vadd.f32 %v1132, %v1303
    %v1499 = vadd.f32 %v1133, %v1305
    %v1500 = vadd.f32 %v1134, %v1434
    %v1501 = vadd.f32 %v1135, %v1436
    %v1502 = vadd.f32 %v1136, %v1309
    %v1503 = vadd.f32 %v1137, %v1311
    %v1504 = vadd.f32 %v1138, %v1440
    %v1505 = vadd.f32 %v1139, %v1442
    %v1506 = vadd.f32 %v1140, %v1315
    %v1507 = vadd.f32 %v1141, %v1317
    %v1508 = vadd.f32 %v1142, %v1446
    %v1509 = vadd.f32 %v1143, %v1448
    %v1510 = vadd.f32 %v1144, %v1321
    %v1511 = vadd.f32 %v1145, %v1323
    %v1512 = vadd.f32 %v1146, %v1452
    %v1513 = vadd.f32 %v1147, %v1454
    %v1514 = vadd.f32 %v1148, %v1327
    %v1515 = vadd.f32 %v1149, %v1329
    %v1516 = vadd.f32 %v1150, %v1458
    %v1517 = vadd.f32 %v1151, %v1460
    %v1518 = vadd.f32 %v1152, %v1333
    %v1519 = vadd.f32 %v1153, %v1335
    %v1520 = vadd.f32 %v1154, %v1464
    %v1521 = vadd.f32 %v1155, %v1466
    %v1522 = vadd.f32 %v1156, %v1339
    %v1523 = vadd.f32 %v1157, %v1341
    %v1524 = vadd.f32 %v1158, %v1470
    %v1525 = vadd.f32 %v1159, %v1472
    %v1526 = vadd.f32 %v1160, %v1345
    %v1527 = vadd.f32 %v1161, %v1347
    %v1528 = vadd.f32 %v1162, %v1476
    %v1529 = vadd.f32 %v1163, %v1478
    %v1530 = vadd.f32 %v1164, %v1351
    %v1531 = vadd.f32 %v1165, %v1353
    %v1532 = vadd.f32 %v1166, %v1482
    %v1533 = vadd.f32 %v1167, %v1484
    %v1534 = vadd.f32 %v1168, %v1357
    %v1535 = vadd.f32 %v1169, %v1359
    %v1536 = vadd.f32 %v1170, %v1488
    %v1537 = vadd.f32 %v1171, %v1490
    %v1538 = vadd.f32 %v1172, %v1363
    %v1539 = vadd.f32 %v1173, %v1365
    %v1540 = vadd.f32 %v1174, %v1494
    %v1541 = vadd.f32 %v1175, %v1496
    %v1542 = vld [vmem:[%s0 + $0x4] sm:$0xff]
    %v1543 = vld [vmem:[%s0 + $0xc] sm:$0xff]
    %v1544 = vld [vmem:[%s0 + $0x14] sm:$0xff]
    %v1545 = vld [vmem:[%s0 + $0x1c] sm:$0xff]
    %v1546 = vld [vmem:[%s0 + $0x24] sm:$0xff]
    %v1547 = vld [vmem:[%s0 + $0x2c] sm:$0xff]
    %v1548 = vld [vmem:[%s0 + $0x34] sm:$0xff]
    %v1549 = vld [vmem:[%s0 + $0x3c] sm:$0xff]
    %v1550 = vld [vmem:[%s0 + $0x44] sm:$0xff]
    %v1551 = vld [vmem:[%s0 + $0x4c] sm:$0xff]
    %v1552 = vld [vmem:[%s0 + $0x54] sm:$0xff]
    %v1553 = vld [vmem:[#allocation7 + $0x200] sm:$0xff]
    %v1554 = vld [vmem:[#allocation7 + $0x208] sm:$0xff]
    %v1555 = vld [vmem:[#allocation7 + $0x210] sm:$0xff]
    %v1556 = vld [vmem:[#allocation7 + $0x218] sm:$0xff]
    %v1557 = vld [vmem:[#allocation7 + $0x220] sm:$0xff]
    %v1558 = vld [vmem:[#allocation7 + $0x228] sm:$0xff]
    %v1559 = vld [vmem:[#allocation7 + $0x230] sm:$0xff]
    %v1560 = vld [vmem:[#allocation7 + $0x238] sm:$0xff]
    %v1561 = vld [vmem:[#allocation7 + $0x240] sm:$0xff]
    %v1562 = vld [vmem:[#allocation7 + $0x248] sm:$0xff]
    %v1563 = vld [vmem:[#allocation7 + $0x250] sm:$0xff]
    %v1564 = vld [vmem:[#allocation7 + $0x258] sm:$0xff]
    %v1565 = vld [vmem:[#allocation7 + $0x260] sm:$0xff]
    %v1566 = vld [vmem:[#allocation7 + $0x268] sm:$0xff]
    %v1567 = vld [vmem:[#allocation7 + $0x270] sm:$0xff]
    %v1568 = vld [vmem:[#allocation7 + $0x278] sm:$0xff]
    %v1570 = vsel %vm219, %v1542, 0
    %v1573 = vsel %vm219, %v1543, 0
    %v1576 = vsel %vm219, %v1544, 0
    %v1579 = vsel %vm219, %v1545, 0
    %v1582 = vsel %vm219, %v1546, 0
    %v1585 = vsel %vm219, %v1547, 0
    %v1588 = vsel %vm219, %v1548, 0
    %v1591 = vsel %vm219, %v1549, 0
    %v1594 = vsel %vm219, %v1550, 0
    %v1597 = vsel %vm219, %v1551, 0
    %v1600 = vsel %vm219, %v1552, 0
    %1602 = vmatprep.subr.mxu0 0.0
    %1603 = vmatpush1.msra.mxu0 0.0
    %1604 = vmatprep.subr.mxu0 0.0
    %1605 = vmatpush1.msra.mxu0 0.0
    %1606 = vmatprep.subr.mxu0 0.0
    %1607 = vmatpush1.msra.mxu0 0.0
    %1608 = vmatprep.subr.mxu0 0.0
    %1609 = vmatpush1.msra.mxu0 0.0
    %1610 = vmatprep.subr.mxu0 0.0
    %1611 = vmatpush1.msra.mxu0 0.0
    %1612 = vmatprep.subr.mxu0 0.0
    %1613 = vmatpush1.msra.mxu0 0.0
    %1614 = vmatprep.subr.mxu0 0.0
    %1615 = vmatpush1.msra.mxu0 0.0
    %1616 = vmatprep.subr.mxu0 0.0
    %1617 = vmatpush1.msra.mxu0 0.0
    %1618 = vmatprep.subr.mxu0 0.0
    %1619 = vmatpush1.msra.mxu0 0.0
    %1620 = vmatprep.subr.mxu0 0.0
    %1621 = vmatpush1.msra.mxu0 0.0
    %1622 = vmatprep.subr.mxu0 0.0
    %1623 = vmatpush1.msra.mxu0 0.0
    %1624 = vmatprep.subr.mxu0 0.0
    %1625 = vmatpush1.msra.mxu0 0.0
    %1626 = vmatprep.subr.mxu0 %v1566
    %1627 = vmatpush1.msra.mxu0 %v1565
    %1628 = vmatprep.subr.mxu0 %v1562
    %1629 = vmatpush1.msra.mxu0 %v1561
    %1630 = vmatprep.subr.mxu0 %v1558
    %1631 = vmatpush1.msra.mxu0 %v1557
    %1632 = vmatprep.subr.mxu0 %v1554
    %1633 = vmatpush1.msra.mxu0 %v1553
    %1634 = vmatprep.subr.mxu0 0.0
    %1635 = vmatpush2.msra.mxu0 0.0
    %1636 = vmatprep.subr.mxu0 0.0
    %1637 = vmatpush2.msra.mxu0 0.0
    %1638 = vmatprep.subr.mxu0 0.0
    %1639 = vmatpush2.msra.mxu0 0.0
    %1640 = vmatprep.subr.mxu0 0.0
    %1641 = vmatpush2.msra.mxu0 0.0
    %1642 = vmatprep.subr.mxu0 0.0
    %1643 = vmatpush2.msra.mxu0 0.0
    %1644 = vmatprep.subr.mxu0 0.0
    %1645 = vmatpush2.msra.mxu0 0.0
    %1646 = vmatprep.subr.mxu0 0.0
    %1647 = vmatpush2.msra.mxu0 0.0
    %1648 = vmatprep.subr.mxu0 0.0
    %1649 = vmatpush2.msra.mxu0 0.0
    %1650 = vmatprep.subr.mxu0 0.0
    %1651 = vmatpush2.msra.mxu0 0.0
    %1652 = vmatprep.subr.mxu0 0.0
    %1653 = vmatpush2.msra.mxu0 0.0
    %1654 = vmatprep.subr.mxu0 0.0
    %1655 = vmatpush2.msra.mxu0 0.0
    %1656 = vmatprep.subr.mxu0 0.0
    %1657 = vmatpush2.msra.mxu0 0.0
    %1658 = vmatprep.subr.mxu0 0.0
    %1659 = vmatpush2.msra.mxu0 0.0
    %1660 = vmatprep.subr.mxu0 0.0
    %1661 = vmatpush2.msra.mxu0 0.0
    %1662 = vmatprep.subr.mxu0 0.0
    %1663 = vmatpush2.msra.mxu0 0.0
    %1664 = vmatprep.subr.mxu0 0.0
    %1665 = vmatpush2.msra.mxu0 0.0
    %1666 = vmatprep.mubr.f32.mxu0 0.0
    %1667 = vmatmul.mubr.f32.gmra.mxu0 %v1570
    %v1668 = vpop.f32.mrf.mxu0
    %v1669 = vadd.f32 0.0, %v1668
    %v1670 = vpop.f32.mrf.mxu0
    %v1671 = vadd.f32 0.0, %v1670
    %1672 = vmatprep.mubr.f32.mxu0 0.0
    %1673 = vmatmul.mubr.f32.gmra.mxu0 %v1573
    %v1674 = vpop.f32.mrf.mxu0
    %v1675 = vadd.f32 0.0, %v1674
    %v1676 = vpop.f32.mrf.mxu0
    %v1677 = vadd.f32 0.0, %v1676
    %1678 = vmatprep.mubr.f32.mxu0 0.0
    %1679 = vmatmul.mubr.f32.gmra.mxu0 %v1576
    %v1680 = vpop.f32.mrf.mxu0
    %v1681 = vadd.f32 0.0, %v1680
    %v1682 = vpop.f32.mrf.mxu0
    %v1683 = vadd.f32 0.0, %v1682
    %1684 = vmatprep.mubr.f32.mxu0 0.0
    %1685 = vmatmul.mubr.f32.gmra.mxu0 %v1579
    %v1686 = vpop.f32.mrf.mxu0
    %v1687 = vadd.f32 0.0, %v1686
    %v1688 = vpop.f32.mrf.mxu0
    %v1689 = vadd.f32 0.0, %v1688
    %1690 = vmatprep.mubr.f32.mxu0 0.0
    %1691 = vmatmul.mubr.f32.gmra.mxu0 %v1582
    %v1692 = vpop.f32.mrf.mxu0
    %v1693 = vadd.f32 0.0, %v1692
    %v1694 = vpop.f32.mrf.mxu0
    %v1695 = vadd.f32 0.0, %v1694
    %1696 = vmatprep.mubr.f32.mxu0 0.0
    %1697 = vmatmul.mubr.f32.gmra.mxu0 %v1585
    %v1698 = vpop.f32.mrf.mxu0
    %v1699 = vadd.f32 0.0, %v1698
    %v1700 = vpop.f32.mrf.mxu0
    %v1701 = vadd.f32 0.0, %v1700
    %1702 = vmatprep.mubr.f32.mxu0 0.0
    %1703 = vmatmul.mubr.f32.gmra.mxu0 %v1588
    %v1704 = vpop.f32.mrf.mxu0
    %v1705 = vadd.f32 0.0, %v1704
    %v1706 = vpop.f32.mrf.mxu0
    %v1707 = vadd.f32 0.0, %v1706
    %1708 = vmatprep.mubr.f32.mxu0 0.0
    %1709 = vmatmul.mubr.f32.gmra.mxu0 %v1591
    %v1710 = vpop.f32.mrf.mxu0
    %v1711 = vadd.f32 0.0, %v1710
    %v1712 = vpop.f32.mrf.mxu0
    %v1713 = vadd.f32 0.0, %v1712
    %1714 = vmatprep.mubr.f32.mxu0 0.0
    %1715 = vmatmul.mubr.f32.gmra.mxu0 %v1594
    %v1716 = vpop.f32.mrf.mxu0
    %v1717 = vadd.f32 0.0, %v1716
    %v1718 = vpop.f32.mrf.mxu0
    %v1719 = vadd.f32 0.0, %v1718
    %1720 = vmatprep.mubr.f32.mxu0 0.0
    %1721 = vmatmul.mubr.f32.gmra.mxu0 %v1597
    %v1722 = vpop.f32.mrf.mxu0
    %v1723 = vadd.f32 0.0, %v1722
    %v1724 = vpop.f32.mrf.mxu0
    %v1725 = vadd.f32 0.0, %v1724
    %1726 = vmatprep.mubr.f32.mxu0 0.0
    %1727 = vmatmul.mubr.f32.gmra.mxu0 %v1600
    %v1728 = vpop.f32.mrf.mxu0
    %v1729 = vadd.f32 0.0, %v1728
    %v1730 = vpop.f32.mrf.mxu0
    %v1731 = vadd.f32 0.0, %v1730
    %1732 = vdwg.mxu0
    %1733 = vmatprep.subr.mxu0 0.0
    %1734 = vmatpush1.msra.mxu0 0.0
    %1735 = vmatprep.subr.mxu0 0.0
    %1736 = vmatpush1.msra.mxu0 0.0
    %1737 = vmatprep.subr.mxu0 0.0
    %1738 = vmatpush1.msra.mxu0 0.0
    %1739 = vmatprep.subr.mxu0 0.0
    %1740 = vmatpush1.msra.mxu0 0.0
    %1741 = vmatprep.subr.mxu0 0.0
    %1742 = vmatpush1.msra.mxu0 0.0
    %1743 = vmatprep.subr.mxu0 0.0
    %1744 = vmatpush1.msra.mxu0 0.0
    %1745 = vmatprep.subr.mxu0 0.0
    %1746 = vmatpush1.msra.mxu0 0.0
    %1747 = vmatprep.subr.mxu0 0.0
    %1748 = vmatpush1.msra.mxu0 0.0
    %1749 = vmatprep.subr.mxu0 0.0
    %1750 = vmatpush1.msra.mxu0 0.0
    %1751 = vmatprep.subr.mxu0 0.0
    %1752 = vmatpush1.msra.mxu0 0.0
    %1753 = vmatprep.subr.mxu0 0.0
    %1754 = vmatpush1.msra.mxu0 0.0
    %1755 = vmatprep.subr.mxu0 0.0
    %1756 = vmatpush1.msra.mxu0 0.0
    %1757 = vmatprep.subr.mxu0 %v1568
    %1758 = vmatpush1.msra.mxu0 %v1567
    %1759 = vmatprep.subr.mxu0 %v1564
    %1760 = vmatpush1.msra.mxu0 %v1563
    %1761 = vmatprep.subr.mxu0 %v1560
    %1762 = vmatpush1.msra.mxu0 %v1559
    %1763 = vmatprep.subr.mxu0 %v1556
    %1764 = vmatpush1.msra.mxu0 %v1555
    %1765 = vmatprep.subr.mxu0 0.0
    %1766 = vmatpush2.msra.mxu0 0.0
    %1767 = vmatprep.subr.mxu0 0.0
    %1768 = vmatpush2.msra.mxu0 0.0
    %1769 = vmatprep.subr.mxu0 0.0
    %1770 = vmatpush2.msra.mxu0 0.0
    %1771 = vmatprep.subr.mxu0 0.0
    %1772 = vmatpush2.msra.mxu0 0.0
    %1773 = vmatprep.subr.mxu0 0.0
    %1774 = vmatpush2.msra.mxu0 0.0
    %1775 = vmatprep.subr.mxu0 0.0
    %1776 = vmatpush2.msra.mxu0 0.0
    %1777 = vmatprep.subr.mxu0 0.0
    %1778 = vmatpush2.msra.mxu0 0.0
    %1779 = vmatprep.subr.mxu0 0.0
    %1780 = vmatpush2.msra.mxu0 0.0
    %1781 = vmatprep.subr.mxu0 0.0
    %1782 = vmatpush2.msra.mxu0 0.0
    %1783 = vmatprep.subr.mxu0 0.0
    %1784 = vmatpush2.msra.mxu0 0.0
    %1785 = vmatprep.subr.mxu0 0.0
    %1786 = vmatpush2.msra.mxu0 0.0
    %1787 = vmatprep.subr.mxu0 0.0
    %1788 = vmatpush2.msra.mxu0 0.0
    %1789 = vmatprep.subr.mxu0 0.0
    %1790 = vmatpush2.msra.mxu0 0.0
    %1791 = vmatprep.subr.mxu0 0.0
    %1792 = vmatpush2.msra.mxu0 0.0
    %1793 = vmatprep.subr.mxu0 0.0
    %1794 = vmatpush2.msra.mxu0 0.0
    %1795 = vmatprep.subr.mxu0 0.0
    %1796 = vmatpush2.msra.mxu0 0.0
    %1797 = vmatprep.mubr.f32.mxu0 0.0
    %1798 = vmatmul.mubr.f32.gmra.mxu0 %v1570
    %v1799 = vpop.f32.mrf.mxu0
    %v1800 = vadd.f32 0.0, %v1799
    %v1801 = vpop.f32.mrf.mxu0
    %v1802 = vadd.f32 0.0, %v1801
    %1803 = vmatprep.mubr.f32.mxu0 0.0
    %1804 = vmatmul.mubr.f32.gmra.mxu0 %v1573
    %v1805 = vpop.f32.mrf.mxu0
    %v1806 = vadd.f32 0.0, %v1805
    %v1807 = vpop.f32.mrf.mxu0
    %v1808 = vadd.f32 0.0, %v1807
    %1809 = vmatprep.mubr.f32.mxu0 0.0
    %1810 = vmatmul.mubr.f32.gmra.mxu0 %v1576
    %v1811 = vpop.f32.mrf.mxu0
    %v1812 = vadd.f32 0.0, %v1811
    %v1813 = vpop.f32.mrf.mxu0
    %v1814 = vadd.f32 0.0, %v1813
    %1815 = vmatprep.mubr.f32.mxu0 0.0
    %1816 = vmatmul.mubr.f32.gmra.mxu0 %v1579
    %v1817 = vpop.f32.mrf.mxu0
    %v1818 = vadd.f32 0.0, %v1817
    %v1819 = vpop.f32.mrf.mxu0
    %v1820 = vadd.f32 0.0, %v1819
    %1821 = vmatprep.mubr.f32.mxu0 0.0
    %1822 = vmatmul.mubr.f32.gmra.mxu0 %v1582
    %v1823 = vpop.f32.mrf.mxu0
    %v1824 = vadd.f32 0.0, %v1823
    %v1825 = vpop.f32.mrf.mxu0
    %v1826 = vadd.f32 0.0, %v1825
    %1827 = vmatprep.mubr.f32.mxu0 0.0
    %1828 = vmatmul.mubr.f32.gmra.mxu0 %v1585
    %v1829 = vpop.f32.mrf.mxu0
    %v1830 = vadd.f32 0.0, %v1829
    %v1831 = vpop.f32.mrf.mxu0
    %v1832 = vadd.f32 0.0, %v1831
    %1833 = vmatprep.mubr.f32.mxu0 0.0
    %1834 = vmatmul.mubr.f32.gmra.mxu0 %v1588
    %v1835 = vpop.f32.mrf.mxu0
    %v1836 = vadd.f32 0.0, %v1835
    %v1837 = vpop.f32.mrf.mxu0
    %v1838 = vadd.f32 0.0, %v1837
    %1839 = vmatprep.mubr.f32.mxu0 0.0
    %1840 = vmatmul.mubr.f32.gmra.mxu0 %v1591
    %v1841 = vpop.f32.mrf.mxu0
    %v1842 = vadd.f32 0.0, %v1841
    %v1843 = vpop.f32.mrf.mxu0
    %v1844 = vadd.f32 0.0, %v1843
    %1845 = vmatprep.mubr.f32.mxu0 0.0
    %1846 = vmatmul.mubr.f32.gmra.mxu0 %v1594
    %v1847 = vpop.f32.mrf.mxu0
    %v1848 = vadd.f32 0.0, %v1847
    %v1849 = vpop.f32.mrf.mxu0
    %v1850 = vadd.f32 0.0, %v1849
    %1851 = vmatprep.mubr.f32.mxu0 0.0
    %1852 = vmatmul.mubr.f32.gmra.mxu0 %v1597
    %v1853 = vpop.f32.mrf.mxu0
    %v1854 = vadd.f32 0.0, %v1853
    %v1855 = vpop.f32.mrf.mxu0
    %v1856 = vadd.f32 0.0, %v1855
    %1857 = vmatprep.mubr.f32.mxu0 0.0
    %1858 = vmatmul.mubr.f32.gmra.mxu0 %v1600
    %v1859 = vpop.f32.mrf.mxu0
    %v1860 = vadd.f32 0.0, %v1859
    %v1861 = vpop.f32.mrf.mxu0
    %v1862 = vadd.f32 0.0, %v1861
    %1863 = vdwg.mxu0
    %v1864 = vadd.f32 %v1498, %v1669
    %v1865 = vadd.f32 %v1499, %v1671
    %v1866 = vadd.f32 %v1500, %v1800
    %v1867 = vadd.f32 %v1501, %v1802
    %v1868 = vadd.f32 %v1502, %v1675
    %v1869 = vadd.f32 %v1503, %v1677
    %v1870 = vadd.f32 %v1504, %v1806
    %v1871 = vadd.f32 %v1505, %v1808
    %v1872 = vadd.f32 %v1506, %v1681
    %v1873 = vadd.f32 %v1507, %v1683
    %v1874 = vadd.f32 %v1508, %v1812
    %v1875 = vadd.f32 %v1509, %v1814
    %v1876 = vadd.f32 %v1510, %v1687
    %v1877 = vadd.f32 %v1511, %v1689
    %v1878 = vadd.f32 %v1512, %v1818
    %v1879 = vadd.f32 %v1513, %v1820
    %v1880 = vadd.f32 %v1514, %v1693
    %v1881 = vadd.f32 %v1515, %v1695
    %v1882 = vadd.f32 %v1516, %v1824
    %v1883 = vadd.f32 %v1517, %v1826
    %v1884 = vadd.f32 %v1518, %v1699
    %v1885 = vadd.f32 %v1519, %v1701
    %v1886 = vadd.f32 %v1520, %v1830
    %v1887 = vadd.f32 %v1521, %v1832
    %v1888 = vadd.f32 %v1522, %v1705
    %v1889 = vadd.f32 %v1523, %v1707
    %v1890 = vadd.f32 %v1524, %v1836
    %v1891 = vadd.f32 %v1525, %v1838
    %v1892 = vadd.f32 %v1526, %v1711
    %v1893 = vadd.f32 %v1527, %v1713
    %v1894 = vadd.f32 %v1528, %v1842
    %v1895 = vadd.f32 %v1529, %v1844
    %v1896 = vadd.f32 %v1530, %v1717
    %v1897 = vadd.f32 %v1531, %v1719
    %v1898 = vadd.f32 %v1532, %v1848
    %v1899 = vadd.f32 %v1533, %v1850
    %v1900 = vadd.f32 %v1534, %v1723
    %v1901 = vadd.f32 %v1535, %v1725
    %v1902 = vadd.f32 %v1536, %v1854
    %v1903 = vadd.f32 %v1537, %v1856
    %v1904 = vadd.f32 %v1538, %v1729
    %v1905 = vadd.f32 %v1539, %v1731
    %v1906 = vadd.f32 %v1540, %v1860
    %v1907 = vadd.f32 %v1541, %v1862
    %v1908 = vld [vmem:[#allocation10] sm:$0xf]
    %v1910 = vlaneseq
    %v1911 = vshrl.u32 %v1910, 7
    %v1912 = vsub.s32 0, %v1911
    %v1913 = vrot.slane %v1908, %v1912
    %v1914 = vlaneseq
    %v1915 = vshrl.u32 %v1914, 7
    %v1916 = vsub.s32 1, %v1915
    %v1917 = vrot.slane %v1908, %v1916
    %v1918 = vlaneseq
    %v1919 = vshrl.u32 %v1918, 7
    %v1920 = vsub.s32 2, %v1919
    %v1921 = vrot.slane %v1908, %v1920
    %v1922 = vlaneseq
    %v1923 = vshrl.u32 %v1922, 7
    %v1924 = vsub.s32 3, %v1923
    %v1925 = vrot.slane %v1908, %v1924
    %v1930 = vadd.f32 %v1864, %v1913
    %v1931 = vadd.f32 %v1865, %v1917
    %v1932 = vadd.f32 %v1866, %v1921
    %v1933 = vadd.f32 %v1867, %v1925
    %v1934 = vadd.f32 %v1868, %v1913
    %v1935 = vadd.f32 %v1869, %v1917
    %v1936 = vadd.f32 %v1870, %v1921
    %v1937 = vadd.f32 %v1871, %v1925
    %v1938 = vadd.f32 %v1872, %v1913
    %v1939 = vadd.f32 %v1873, %v1917
    %v1940 = vadd.f32 %v1874, %v1921
    %v1941 = vadd.f32 %v1875, %v1925
    %v1942 = vadd.f32 %v1876, %v1913
    %v1943 = vadd.f32 %v1877, %v1917
    %v1944 = vadd.f32 %v1878, %v1921
    %v1945 = vadd.f32 %v1879, %v1925
    %v1946 = vadd.f32 %v1880, %v1913
    %v1947 = vadd.f32 %v1881, %v1917
    %v1948 = vadd.f32 %v1882, %v1921
    %v1949 = vadd.f32 %v1883, %v1925
    %v1950 = vadd.f32 %v1884, %v1913
    %v1951 = vadd.f32 %v1885, %v1917
    %v1952 = vadd.f32 %v1886, %v1921
    %v1953 = vadd.f32 %v1887, %v1925
    %v1954 = vadd.f32 %v1888, %v1913
    %v1955 = vadd.f32 %v1889, %v1917
    %v1956 = vadd.f32 %v1890, %v1921
    %v1957 = vadd.f32 %v1891, %v1925
    %v1958 = vadd.f32 %v1892, %v1913
    %v1959 = vadd.f32 %v1893, %v1917
    %v1960 = vadd.f32 %v1894, %v1921
    %v1961 = vadd.f32 %v1895, %v1925
    %v1962 = vadd.f32 %v1896, %v1913
    %v1963 = vadd.f32 %v1897, %v1917
    %v1964 = vadd.f32 %v1898, %v1921
    %v1965 = vadd.f32 %v1899, %v1925
    %v1966 = vadd.f32 %v1900, %v1913
    %v1967 = vadd.f32 %v1901, %v1917
    %v1968 = vadd.f32 %v1902, %v1921
    %v1969 = vadd.f32 %v1903, %v1925
    %v1970 = vadd.f32 %v1904, %v1913
    %v1971 = vadd.f32 %v1905, %v1917
    %v1972 = vadd.f32 %v1906, %v1921
    %v1973 = vadd.f32 %v1907, %v1925
    %v1974 = vmax.f32 %v1930, 0.0
    %v1975 = vmax.f32 %v1931, 0.0
    %v1976 = vmax.f32 %v1932, 0.0
    %v1977 = vmax.f32 %v1933, 0.0
    %v1978 = vmax.f32 %v1934, 0.0
    %v1979 = vmax.f32 %v1935, 0.0
    %v1980 = vmax.f32 %v1936, 0.0
    %v1981 = vmax.f32 %v1937, 0.0
    %v1982 = vmax.f32 %v1938, 0.0
    %v1983 = vmax.f32 %v1939, 0.0
    %v1984 = vmax.f32 %v1940, 0.0
    %v1985 = vmax.f32 %v1941, 0.0
    %v1986 = vmax.f32 %v1942, 0.0
    %v1987 = vmax.f32 %v1943, 0.0
    %v1988 = vmax.f32 %v1944, 0.0
    %v1989 = vmax.f32 %v1945, 0.0
    %v1990 = vmax.f32 %v1946, 0.0
    %v1991 = vmax.f32 %v1947, 0.0
    %v1992 = vmax.f32 %v1948, 0.0
    %v1993 = vmax.f32 %v1949, 0.0
    %v1994 = vmax.f32 %v1950, 0.0
    %v1995 = vmax.f32 %v1951, 0.0
    %v1996 = vmax.f32 %v1952, 0.0
    %v1997 = vmax.f32 %v1953, 0.0
    %v1998 = vmax.f32 %v1954, 0.0
    %v1999 = vmax.f32 %v1955, 0.0
    %v2000 = vmax.f32 %v1956, 0.0
    %v2001 = vmax.f32 %v1957, 0.0
    %v2002 = vmax.f32 %v1958, 0.0
    %v2003 = vmax.f32 %v1959, 0.0
    %v2004 = vmax.f32 %v1960, 0.0
    %v2005 = vmax.f32 %v1961, 0.0
    %v2006 = vmax.f32 %v1962, 0.0
    %v2007 = vmax.f32 %v1963, 0.0
    %v2008 = vmax.f32 %v1964, 0.0
    %v2009 = vmax.f32 %v1965, 0.0
    %v2010 = vmax.f32 %v1966, 0.0
    %v2011 = vmax.f32 %v1967, 0.0
    %v2012 = vmax.f32 %v1968, 0.0
    %v2013 = vmax.f32 %v1969, 0.0
    %v2014 = vmax.f32 %v1970, 0.0
    %v2015 = vmax.f32 %v1971, 0.0
    %v2016 = vmax.f32 %v1972, 0.0
    %v2017 = vmax.f32 %v1973, 0.0
    %2018 = vst [vmem:[#allocation2] sm:$0xff] %v1974
    %2019 = vst [vmem:[#allocation2 + $0x8] sm:$0xff] %v1975
    %2020 = vst [vmem:[#allocation2 + $0x10] sm:$0xff] %v1976
    %2021 = vst [vmem:[#allocation2 + $0x18] sm:$0xff] %v1977
    %2022 = vst [vmem:[#allocation2 + $0x20] sm:$0xff] %v1978
    %2023 = vst [vmem:[#allocation2 + $0x28] sm:$0xff] %v1979
    %2024 = vst [vmem:[#allocation2 + $0x30] sm:$0xff] %v1980
    %2025 = vst [vmem:[#allocation2 + $0x38] sm:$0xff] %v1981
    %2026 = vst [vmem:[#allocation2 + $0x40] sm:$0xff] %v1982
    %2027 = vst [vmem:[#allocation2 + $0x48] sm:$0xff] %v1983
    %2028 = vst [vmem:[#allocation2 + $0x50] sm:$0xff] %v1984
    %2029 = vst [vmem:[#allocation2 + $0x58] sm:$0xff] %v1985
    %2030 = vst [vmem:[#allocation2 + $0x60] sm:$0xff] %v1986
    %2031 = vst [vmem:[#allocation2 + $0x68] sm:$0xff] %v1987
    %2032 = vst [vmem:[#allocation2 + $0x70] sm:$0xff] %v1988
    %2033 = vst [vmem:[#allocation2 + $0x78] sm:$0xff] %v1989
    %2034 = vst [vmem:[#allocation2 + $0x80] sm:$0xff] %v1990
    %2035 = vst [vmem:[#allocation2 + $0x88] sm:$0xff] %v1991
    %2036 = vst [vmem:[#allocation2 + $0x90] sm:$0xff] %v1992
    %2037 = vst [vmem:[#allocation2 + $0x98] sm:$0xff] %v1993
    %2038 = vst [vmem:[#allocation2 + $0xa0] sm:$0xff] %v1994
    %2039 = vst [vmem:[#allocation2 + $0xa8] sm:$0xff] %v1995
    %2040 = vst [vmem:[#allocation2 + $0xb0] sm:$0xff] %v1996
    %2041 = vst [vmem:[#allocation2 + $0xb8] sm:$0xff] %v1997
    %2042 = vst [vmem:[#allocation2 + $0xc0] sm:$0xff] %v1998
    %2043 = vst [vmem:[#allocation2 + $0xc8] sm:$0xff] %v1999
    %2044 = vst [vmem:[#allocation2 + $0xd0] sm:$0xff] %v2000
    %2045 = vst [vmem:[#allocation2 + $0xd8] sm:$0xff] %v2001
    %2046 = vst [vmem:[#allocation2 + $0xe0] sm:$0xff] %v2002
    %2047 = vst [vmem:[#allocation2 + $0xe8] sm:$0xff] %v2003
    %2048 = vst [vmem:[#allocation2 + $0xf0] sm:$0xff] %v2004
    %2049 = vst [vmem:[#allocation2 + $0xf8] sm:$0xff] %v2005
    %2050 = vst [vmem:[#allocation2 + $0x100] sm:$0xff] %v2006
    %2051 = vst [vmem:[#allocation2 + $0x108] sm:$0xff] %v2007
    %2052 = vst [vmem:[#allocation2 + $0x110] sm:$0xff] %v2008
    %2053 = vst [vmem:[#allocation2 + $0x118] sm:$0xff] %v2009
    %2054 = vst [vmem:[#allocation2 + $0x120] sm:$0xff] %v2010
    %2055 = vst [vmem:[#allocation2 + $0x128] sm:$0xff] %v2011
    %2056 = vst [vmem:[#allocation2 + $0x130] sm:$0xff] %v2012
    %2057 = vst [vmem:[#allocation2 + $0x138] sm:$0xff] %v2013
    %2058 = vst [vmem:[#allocation2 + $0x140] sm:$0xff] %v2014
    %2059 = vst [vmem:[#allocation2 + $0x148] sm:$0xff] %v2015
    %2060 = vst [vmem:[#allocation2 + $0x150] sm:$0xff] %v2016
    %2061 = vst [vmem:[#allocation2 + $0x158] sm:$0xff] %v2017
    %v2062 = vld [vmem:[#allocation2] sm:$0xff]
    %v2063 = vld [vmem:[#allocation2 + $0x8] sm:$0xff]
    %v2064 = vld [vmem:[#allocation2 + $0x20] sm:$0xff]
    %v2065 = vld [vmem:[#allocation2 + $0x28] sm:$0xff]
    %v2066 = vld [vmem:[#allocation2 + $0x40] sm:$0xff]
    %v2067 = vld [vmem:[#allocation2 + $0x48] sm:$0xff]
    %v2068 = vld [vmem:[#allocation2 + $0x60] sm:$0xff]
    %v2069 = vld [vmem:[#allocation2 + $0x68] sm:$0xff]
    %v2070 = vld [vmem:[#allocation2 + $0x80] sm:$0xff]
    %v2071 = vld [vmem:[#allocation2 + $0x88] sm:$0xff]
    %v2072 = vld [vmem:[#allocation2 + $0xa0] sm:$0xff]
    %v2073 = vld [vmem:[#allocation2 + $0xa8] sm:$0xff]
    %v2074 = vld [vmem:[#allocation2 + $0xc0] sm:$0xff]
    %v2075 = vld [vmem:[#allocation2 + $0xc8] sm:$0xff]
    %v2076 = vld [vmem:[#allocation2 + $0xe0] sm:$0xff]
    %v2077 = vld [vmem:[#allocation2 + $0xe8] sm:$0xff]
    %v2078 = vld [vmem:[#allocation2 + $0x100] sm:$0xff]
    %v2079 = vld [vmem:[#allocation2 + $0x108] sm:$0xff]
    %v2080 = vld [vmem:[#allocation2 + $0x120] sm:$0xff]
    %v2081 = vld [vmem:[#allocation2 + $0x128] sm:$0xff]
    %v2082 = vld [vmem:[#allocation2 + $0x10] sm:$0xff]
    %v2083 = vld [vmem:[#allocation2 + $0x18] sm:$0xff]
    %v2084 = vld [vmem:[#allocation2 + $0x30] sm:$0xff]
    %v2085 = vld [vmem:[#allocation2 + $0x38] sm:$0xff]
    %v2086 = vld [vmem:[#allocation2 + $0x50] sm:$0xff]
    %v2087 = vld [vmem:[#allocation2 + $0x58] sm:$0xff]
    %v2088 = vld [vmem:[#allocation2 + $0x70] sm:$0xff]
    %v2089 = vld [vmem:[#allocation2 + $0x78] sm:$0xff]
    %v2090 = vld [vmem:[#allocation2 + $0x90] sm:$0xff]
    %v2091 = vld [vmem:[#allocation2 + $0x98] sm:$0xff]
    %v2092 = vld [vmem:[#allocation2 + $0xb0] sm:$0xff]
    %v2093 = vld [vmem:[#allocation2 + $0xb8] sm:$0xff]
    %v2094 = vld [vmem:[#allocation2 + $0xd0] sm:$0xff]
    %v2095 = vld [vmem:[#allocation2 + $0xd8] sm:$0xff]
    %v2096 = vld [vmem:[#allocation2 + $0xf0] sm:$0xff]
    %v2097 = vld [vmem:[#allocation2 + $0xf8] sm:$0xff]
    %v2098 = vld [vmem:[#allocation2 + $0x110] sm:$0xff]
    %v2099 = vld [vmem:[#allocation2 + $0x118] sm:$0xff]
    %v2100 = vld [vmem:[#allocation2 + $0x130] sm:$0xff]
    %v2101 = vld [vmem:[#allocation2 + $0x138] sm:$0xff]
    %v2102 = vmax.f32 %v2062, %v2082
    %v2103 = vmax.f32 %v2063, %v2083
    %v2104 = vmax.f32 %v2064, %v2084
    %v2105 = vmax.f32 %v2065, %v2085
    %v2106 = vmax.f32 %v2066, %v2086
    %v2107 = vmax.f32 %v2067, %v2087
    %v2108 = vmax.f32 %v2068, %v2088
    %v2109 = vmax.f32 %v2069, %v2089
    %v2110 = vmax.f32 %v2070, %v2090
    %v2111 = vmax.f32 %v2071, %v2091
    %v2112 = vmax.f32 %v2072, %v2092
    %v2113 = vmax.f32 %v2073, %v2093
    %v2114 = vmax.f32 %v2074, %v2094
    %v2115 = vmax.f32 %v2075, %v2095
    %v2116 = vmax.f32 %v2076, %v2096
    %v2117 = vmax.f32 %v2077, %v2097
    %v2118 = vmax.f32 %v2078, %v2098
    %v2119 = vmax.f32 %v2079, %v2099
    %v2120 = vmax.f32 %v2080, %v2100
    %v2121 = vmax.f32 %v2081, %v2101
    %v2122 = vld [vmem:[#allocation2] sm:$0xfe]
    %v2123 = vld [vmem:[#allocation2 + $0x8] sm:$0xfe]
    %v2124 = vld [vmem:[#allocation2 + $0x140] sm:$0x1]
    %v2125 = vld [vmem:[#allocation2 + $0x148] sm:$0x1]
    %v2126 = vld [vmem:[#allocation2 + $0x10] sm:$0xfe]
    %v2127 = vld [vmem:[#allocation2 + $0x18] sm:$0xfe]
    %v2128 = vld [vmem:[#allocation2 + $0x30] sm:$0xff]
    %v2129 = vld [vmem:[#allocation2 + $0x38] sm:$0xff]
    %v2130 = vld [vmem:[#allocation2 + $0x50] sm:$0xff]
    %v2131 = vld [vmem:[#allocation2 + $0x58] sm:$0xff]
    %v2132 = vld [vmem:[#allocation2 + $0x70] sm:$0xff]
    %v2133 = vld [vmem:[#allocation2 + $0x78] sm:$0xff]
    %v2134 = vld [vmem:[#allocation2 + $0x90] sm:$0xff]
    %v2135 = vld [vmem:[#allocation2 + $0x98] sm:$0xff]
    %v2136 = vld [vmem:[#allocation2 + $0xb0] sm:$0xff]
    %v2137 = vld [vmem:[#allocation2 + $0xb8] sm:$0xff]
    %v2138 = vld [vmem:[#allocation2 + $0xd0] sm:$0xff]
    %v2139 = vld [vmem:[#allocation2 + $0xd8] sm:$0xff]
    %v2140 = vld [vmem:[#allocation2 + $0xf0] sm:$0xff]
    %v2141 = vld [vmem:[#allocation2 + $0xf8] sm:$0xff]
    %v2142 = vld [vmem:[#allocation2 + $0x110] sm:$0xff]
    %v2143 = vld [vmem:[#allocation2 + $0x118] sm:$0xff]
    %v2144 = vld [vmem:[#allocation2 + $0x130] sm:$0xff]
    %v2145 = vld [vmem:[#allocation2 + $0x138] sm:$0xff]
    %v2146 = vld [vmem:[#allocation2 + $0x150] sm:$0x1]
    %v2147 = vld [vmem:[#allocation2 + $0x158] sm:$0x1]
    %v2148 = vmax.f32 %v2122, %v2126
    %v2149 = vmax.f32 %v2123, %v2127
    %v2150 = vmax.f32 %v2064, %v2128
    %v2151 = vmax.f32 %v2065, %v2129
    %v2152 = vmax.f32 %v2066, %v2130
    %v2153 = vmax.f32 %v2067, %v2131
    %v2154 = vmax.f32 %v2068, %v2132
    %v2155 = vmax.f32 %v2069, %v2133
    %v2156 = vmax.f32 %v2070, %v2134
    %v2157 = vmax.f32 %v2071, %v2135
    %v2158 = vmax.f32 %v2072, %v2136
    %v2159 = vmax.f32 %v2073, %v2137
    %v2160 = vmax.f32 %v2074, %v2138
    %v2161 = vmax.f32 %v2075, %v2139
    %v2162 = vmax.f32 %v2076, %v2140
    %v2163 = vmax.f32 %v2077, %v2141
    %v2164 = vmax.f32 %v2078, %v2142
    %v2165 = vmax.f32 %v2079, %v2143
    %v2166 = vmax.f32 %v2080, %v2144
    %v2167 = vmax.f32 %v2081, %v2145
    %v2168 = vmax.f32 %v2124, %v2146
    %v2169 = vmax.f32 %v2125, %v2147
    %vm2192 = vcmask 1046528
    %v2193 = vrot.slane %v2148, 1
    %v2194 = vrot.slane %v2150, 1
    %v2195 = vsel %vm2192, %v2193, %v2194
    %v2196 = vrot.slane %v2149, 1
    %v2197 = vrot.slane %v2151, 1
    %v2198 = vsel %vm2192, %v2196, %v2197
    %v2199 = vrot.slane %v2152, 1
    %v2200 = vsel %vm2192, %v2194, %v2199
    %v2201 = vrot.slane %v2153, 1
    %v2202 = vsel %vm2192, %v2197, %v2201
    %v2203 = vrot.slane %v2154, 1
    %v2204 = vsel %vm2192, %v2199, %v2203
    %v2205 = vrot.slane %v2155, 1
    %v2206 = vsel %vm2192, %v2201, %v2205
    %v2207 = vrot.slane %v2156, 1
    %v2208 = vsel %vm2192, %v2203, %v2207
    %v2209 = vrot.slane %v2157, 1
    %v2210 = vsel %vm2192, %v2205, %v2209
    %v2211 = vrot.slane %v2158, 1
    %v2212 = vsel %vm2192, %v2207, %v2211
    %v2213 = vrot.slane %v2159, 1
    %v2214 = vsel %vm2192, %v2209, %v2213
    %v2215 = vrot.slane %v2160, 1
    %v2216 = vsel %vm2192, %v2211, %v2215
    %v2217 = vrot.slane %v2161, 1
    %v2218 = vsel %vm2192, %v2213, %v2217
    %v2219 = vrot.slane %v2162, 1
    %v2220 = vsel %vm2192, %v2215, %v2219
    %v2221 = vrot.slane %v2163, 1
    %v2222 = vsel %vm2192, %v2217, %v2221
    %v2223 = vrot.slane %v2164, 1
    %v2224 = vsel %vm2192, %v2219, %v2223
    %v2225 = vrot.slane %v2165, 1
    %v2226 = vsel %vm2192, %v2221, %v2225
    %v2227 = vrot.slane %v2166, 1
    %v2228 = vsel %vm2192, %v2223, %v2227
    %v2229 = vrot.slane %v2167, 1
    %v2230 = vsel %vm2192, %v2225, %v2229
    %v2231 = vrot.slane %v2168, 1
    %v2232 = vsel %vm2192, %v2227, %v2231
    %v2233 = vrot.slane %v2169, 1
    %v2234 = vsel %vm2192, %v2229, %v2233
    %v2255 = vmax.f32 %v2102, %v2195
    %v2256 = vmax.f32 %v2103, %v2198
    %v2257 = vmax.f32 %v2104, %v2200
    %v2258 = vmax.f32 %v2105, %v2202
    %v2259 = vmax.f32 %v2106, %v2204
    %v2260 = vmax.f32 %v2107, %v2206
    %v2261 = vmax.f32 %v2108, %v2208
    %v2262 = vmax.f32 %v2109, %v2210
    %v2263 = vmax.f32 %v2110, %v2212
    %v2264 = vmax.f32 %v2111, %v2214
    %v2265 = vmax.f32 %v2112, %v2216
    %v2266 = vmax.f32 %v2113, %v2218
    %v2267 = vmax.f32 %v2114, %v2220
    %v2268 = vmax.f32 %v2115, %v2222
    %v2269 = vmax.f32 %v2116, %v2224
    %v2270 = vmax.f32 %v2117, %v2226
    %v2271 = vmax.f32 %v2118, %v2228
    %v2272 = vmax.f32 %v2119, %v2230
    %v2273 = vmax.f32 %v2120, %v2232
    %v2274 = vmax.f32 %v2121, %v2234
    %2275 = vst [vmem:[#allocation3] sm:$0xff] %v2255
    %2276 = vst [vmem:[#allocation3 + $0x8] sm:$0xff] %v2256
    %2277 = vst [vmem:[#allocation3 + $0x10] sm:$0xff] %v2257
    %2278 = vst [vmem:[#allocation3 + $0x18] sm:$0xff] %v2258
    %2279 = vst [vmem:[#allocation3 + $0x20] sm:$0xff] %v2259
    %2280 = vst [vmem:[#allocation3 + $0x28] sm:$0xff] %v2260
    %2281 = vst [vmem:[#allocation3 + $0x30] sm:$0xff] %v2261
    %2282 = vst [vmem:[#allocation3 + $0x38] sm:$0xff] %v2262
    %2283 = vst [vmem:[#allocation3 + $0x40] sm:$0xff] %v2263
    %2284 = vst [vmem:[#allocation3 + $0x48] sm:$0xff] %v2264
    %2285 = vst [vmem:[#allocation3 + $0x50] sm:$0xff] %v2265
    %2286 = vst [vmem:[#allocation3 + $0x58] sm:$0xff] %v2266
    %2287 = vst [vmem:[#allocation3 + $0x60] sm:$0xff] %v2267
    %2288 = vst [vmem:[#allocation3 + $0x68] sm:$0xff] %v2268
    %2289 = vst [vmem:[#allocation3 + $0x70] sm:$0xff] %v2269
    %2290 = vst [vmem:[#allocation3 + $0x78] sm:$0xff] %v2270
    %2291 = vst [vmem:[#allocation3 + $0x80] sm:$0xff] %v2271
    %2292 = vst [vmem:[#allocation3 + $0x88] sm:$0xff] %v2272
    %2293 = vst [vmem:[#allocation3 + $0x90] sm:$0xff] %v2273
    %2294 = vst [vmem:[#allocation3 + $0x98] sm:$0xff] %v2274
    %v2295 = vld [vmem:[#allocation3] sm:$0xff]
    %v2296 = vld [vmem:[#allocation3 + $0x8] sm:$0xff]
    %v2297 = vld [vmem:[#allocation3 + $0x10] sm:$0xff]
    %v2298 = vld [vmem:[#allocation3 + $0x18] sm:$0xff]
    %v2299 = vld [vmem:[#allocation3 + $0x20] sm:$0xff]
    %v2300 = vld [vmem:[#allocation3 + $0x28] sm:$0xff]
    %v2301 = vld [vmem:[#allocation3 + $0x30] sm:$0xff]
    %v2302 = vld [vmem:[#allocation3 + $0x38] sm:$0xff]
    %v2303 = vld [vmem:[#allocation3 + $0x40] sm:$0xff]
    %v2304 = vld [vmem:[#allocation3 + $0x48] sm:$0xff]
    %v2305 = vld [vmem:[#allocation3 + $0x50] sm:$0xff]
    %v2306 = vld [vmem:[#allocation3 + $0x58] sm:$0xff]
    %v2307 = vld [vmem:[#allocation3 + $0x60] sm:$0xff]
    %v2308 = vld [vmem:[#allocation3 + $0x68] sm:$0xff]
    %v2309 = vld [vmem:[#allocation3 + $0x70] sm:$0xff]
    %v2310 = vld [vmem:[#allocation3 + $0x78] sm:$0xff]
    %v2311 = vld [vmem:[#allocation3 + $0x80] sm:$0xff]
    %v2312 = vld [vmem:[#allocation3 + $0x88] sm:$0xff]
    %v2313 = vld [vmem:[#allocation12] sm:$0xff]
    %v2314 = vld [vmem:[#allocation12 + $0x8] sm:$0xff]
    %v2315 = vld [vmem:[#allocation12 + $0x10] sm:$0xff]
    %v2316 = vld [vmem:[#allocation12 + $0x18] sm:$0xff]
    %v2317 = vld [vmem:[#allocation12 + $0x20] sm:$0xff]
    %v2318 = vld [vmem:[#allocation12 + $0x28] sm:$0xff]
    %v2319 = vld [vmem:[#allocation12 + $0x30] sm:$0xff]
    %v2320 = vld [vmem:[#allocation12 + $0x38] sm:$0xff]
    %v2321 = vld [vmem:[#allocation12 + $0x40] sm:$0xff]
    %v2322 = vld [vmem:[#allocation12 + $0x48] sm:$0xff]
    %v2323 = vld [vmem:[#allocation12 + $0x50] sm:$0xff]
    %v2324 = vld [vmem:[#allocation12 + $0x58] sm:$0xff]
    %v2325 = vld [vmem:[#allocation12 + $0x60] sm:$0xff]
    %v2326 = vld [vmem:[#allocation12 + $0x68] sm:$0xff]
    %v2327 = vld [vmem:[#allocation12 + $0x70] sm:$0xff]
    %v2328 = vld [vmem:[#allocation12 + $0x78] sm:$0xff]
    %v2329 = vld [vmem:[#allocation12 + $0x80] sm:$0xff]
    %v2330 = vld [vmem:[#allocation12 + $0x88] sm:$0xff]
    %v2331 = vld [vmem:[#allocation12 + $0x90] sm:$0xff]
    %v2332 = vld [vmem:[#allocation12 + $0x98] sm:$0xff]
    %v2333 = vld [vmem:[#allocation12 + $0xa0] sm:$0xff]
    %v2334 = vld [vmem:[#allocation12 + $0xa8] sm:$0xff]
    %v2335 = vld [vmem:[#allocation12 + $0xb0] sm:$0xff]
    %v2336 = vld [vmem:[#allocation12 + $0xb8] sm:$0xff]
    %v2337 = vld [vmem:[#allocation12 + $0xc0] sm:$0xff]
    %v2338 = vld [vmem:[#allocation12 + $0xc8] sm:$0xff]
    %v2339 = vld [vmem:[#allocation12 + $0xd0] sm:$0xff]
    %v2340 = vld [vmem:[#allocation12 + $0xd8] sm:$0xff]
    %v2341 = vld [vmem:[#allocation12 + $0xe0] sm:$0xff]
    %v2342 = vld [vmem:[#allocation12 + $0xe8] sm:$0xff]
    %v2343 = vld [vmem:[#allocation12 + $0xf0] sm:$0xff]
    %v2344 = vld [vmem:[#allocation12 + $0xf8] sm:$0xff]
    %v2345 = vld [vmem:[#allocation12 + $0x100] sm:$0xff]
    %v2346 = vld [vmem:[#allocation12 + $0x108] sm:$0xff]
    %v2347 = vld [vmem:[#allocation12 + $0x110] sm:$0xff]
    %v2348 = vld [vmem:[#allocation12 + $0x118] sm:$0xff]
    %v2349 = vld [vmem:[#allocation12 + $0x120] sm:$0xff]
    %v2350 = vld [vmem:[#allocation12 + $0x128] sm:$0xff]
    %v2351 = vld [vmem:[#allocation12 + $0x130] sm:$0xff]
    %v2352 = vld [vmem:[#allocation12 + $0x138] sm:$0xff]
    %v2353 = vld [vmem:[#allocation12 + $0x140] sm:$0xff]
    %v2354 = vld [vmem:[#allocation12 + $0x148] sm:$0xff]
    %v2355 = vld [vmem:[#allocation12 + $0x150] sm:$0xff]
    %v2356 = vld [vmem:[#allocation12 + $0x158] sm:$0xff]
    %v2357 = vld [vmem:[#allocation12 + $0x160] sm:$0xff]
    %v2358 = vld [vmem:[#allocation12 + $0x168] sm:$0xff]
    %v2359 = vld [vmem:[#allocation12 + $0x170] sm:$0xff]
    %v2360 = vld [vmem:[#allocation12 + $0x178] sm:$0xff]
    %v2361 = vld [vmem:[#allocation12 + $0x180] sm:$0xff]
    %v2362 = vld [vmem:[#allocation12 + $0x188] sm:$0xff]
    %v2363 = vld [vmem:[#allocation12 + $0x190] sm:$0xff]
    %v2364 = vld [vmem:[#allocation12 + $0x198] sm:$0xff]
    %v2365 = vld [vmem:[#allocation12 + $0x1a0] sm:$0xff]
    %v2366 = vld [vmem:[#allocation12 + $0x1a8] sm:$0xff]
    %v2367 = vld [vmem:[#allocation12 + $0x1b0] sm:$0xff]
    %v2368 = vld [vmem:[#allocation12 + $0x1b8] sm:$0xff]
    %v2369 = vld [vmem:[#allocation12 + $0x1c0] sm:$0xff]
    %v2370 = vld [vmem:[#allocation12 + $0x1c8] sm:$0xff]
    %v2371 = vld [vmem:[#allocation12 + $0x1d0] sm:$0xff]
    %v2372 = vld [vmem:[#allocation12 + $0x1d8] sm:$0xff]
    %v2373 = vld [vmem:[#allocation12 + $0x1e0] sm:$0xff]
    %v2374 = vld [vmem:[#allocation12 + $0x1e8] sm:$0xff]
    %v2375 = vld [vmem:[#allocation12 + $0x1f0] sm:$0xff]
    %v2376 = vld [vmem:[#allocation12 + $0x1f8] sm:$0xff]
    %v2377 = vld [vmem:[#allocation12 + $0x200] sm:$0xff]
    %v2378 = vld [vmem:[#allocation12 + $0x208] sm:$0xff]
    %v2379 = vld [vmem:[#allocation12 + $0x210] sm:$0xff]
    %v2380 = vld [vmem:[#allocation12 + $0x218] sm:$0xff]
    %v2381 = vld [vmem:[#allocation12 + $0x220] sm:$0xff]
    %v2382 = vld [vmem:[#allocation12 + $0x228] sm:$0xff]
    %v2383 = vld [vmem:[#allocation12 + $0x230] sm:$0xff]
    %v2384 = vld [vmem:[#allocation12 + $0x238] sm:$0xff]
    %v2385 = vld [vmem:[#allocation12 + $0x240] sm:$0xff]
    %v2386 = vld [vmem:[#allocation12 + $0x248] sm:$0xff]
    %v2387 = vld [vmem:[#allocation12 + $0x250] sm:$0xff]
    %v2388 = vld [vmem:[#allocation12 + $0x258] sm:$0xff]
    %v2389 = vld [vmem:[#allocation12 + $0x260] sm:$0xff]
    %v2390 = vld [vmem:[#allocation12 + $0x268] sm:$0xff]
    %v2391 = vld [vmem:[#allocation12 + $0x270] sm:$0xff]
    %v2392 = vld [vmem:[#allocation12 + $0x278] sm:$0xff]
    %v2393 = vld [vmem:[#allocation12 + $0x280] sm:$0xff]
    %v2394 = vld [vmem:[#allocation12 + $0x288] sm:$0xff]
    %v2395 = vld [vmem:[#allocation12 + $0x290] sm:$0xff]
    %v2396 = vld [vmem:[#allocation12 + $0x298] sm:$0xff]
    %v2397 = vld [vmem:[#allocation12 + $0x2a0] sm:$0xff]
    %v2398 = vld [vmem:[#allocation12 + $0x2a8] sm:$0xff]
    %v2399 = vld [vmem:[#allocation12 + $0x2b0] sm:$0xff]
    %v2400 = vld [vmem:[#allocation12 + $0x2b8] sm:$0xff]
    %v2401 = vld [vmem:[#allocation12 + $0x2c0] sm:$0xff]
    %v2402 = vld [vmem:[#allocation12 + $0x2c8] sm:$0xff]
    %v2403 = vld [vmem:[#allocation12 + $0x2d0] sm:$0xff]
    %v2404 = vld [vmem:[#allocation12 + $0x2d8] sm:$0xff]
    %v2405 = vld [vmem:[#allocation12 + $0x2e0] sm:$0xff]
    %v2406 = vld [vmem:[#allocation12 + $0x2e8] sm:$0xff]
    %v2407 = vld [vmem:[#allocation12 + $0x2f0] sm:$0xff]
    %v2408 = vld [vmem:[#allocation12 + $0x2f8] sm:$0xff]
    %v2409 = vld [vmem:[#allocation12 + $0x300] sm:$0xff]
    %v2410 = vld [vmem:[#allocation12 + $0x308] sm:$0xff]
    %v2411 = vld [vmem:[#allocation12 + $0x310] sm:$0xff]
    %v2412 = vld [vmem:[#allocation12 + $0x318] sm:$0xff]
    %v2413 = vld [vmem:[#allocation12 + $0x320] sm:$0xff]
    %v2414 = vld [vmem:[#allocation12 + $0x328] sm:$0xff]
    %v2415 = vld [vmem:[#allocation12 + $0x330] sm:$0xff]
    %v2416 = vld [vmem:[#allocation12 + $0x338] sm:$0xff]
    %v2417 = vld [vmem:[#allocation12 + $0x340] sm:$0xff]
    %v2418 = vld [vmem:[#allocation12 + $0x348] sm:$0xff]
    %v2419 = vld [vmem:[#allocation12 + $0x350] sm:$0xff]
    %v2420 = vld [vmem:[#allocation12 + $0x358] sm:$0xff]
    %v2421 = vld [vmem:[#allocation12 + $0x360] sm:$0xff]
    %v2422 = vld [vmem:[#allocation12 + $0x368] sm:$0xff]
    %v2423 = vld [vmem:[#allocation12 + $0x370] sm:$0xff]
    %v2424 = vld [vmem:[#allocation12 + $0x378] sm:$0xff]
    %v2425 = vld [vmem:[#allocation12 + $0x380] sm:$0xff]
    %v2426 = vld [vmem:[#allocation12 + $0x388] sm:$0xff]
    %v2427 = vld [vmem:[#allocation12 + $0x390] sm:$0xff]
    %v2428 = vld [vmem:[#allocation12 + $0x398] sm:$0xff]
    %v2429 = vld [vmem:[#allocation12 + $0x3a0] sm:$0xff]
    %v2430 = vld [vmem:[#allocation12 + $0x3a8] sm:$0xff]
    %v2431 = vld [vmem:[#allocation12 + $0x3b0] sm:$0xff]
    %v2432 = vld [vmem:[#allocation12 + $0x3b8] sm:$0xff]
    %v2433 = vld [vmem:[#allocation12 + $0x3c0] sm:$0xff]
    %v2434 = vld [vmem:[#allocation12 + $0x3c8] sm:$0xff]
    %v2435 = vld [vmem:[#allocation12 + $0x3d0] sm:$0xff]
    %v2436 = vld [vmem:[#allocation12 + $0x3d8] sm:$0xff]
    %v2437 = vld [vmem:[#allocation12 + $0x3e0] sm:$0xff]
    %v2438 = vld [vmem:[#allocation12 + $0x3e8] sm:$0xff]
    %v2439 = vld [vmem:[#allocation12 + $0x3f0] sm:$0xff]
    %v2440 = vld [vmem:[#allocation12 + $0x3f8] sm:$0xff]
    %v2441 = vld [vmem:[#allocation3] sm:$0xfc]
    %v2442 = vld [vmem:[#allocation3 + $0x8] sm:$0xfc]
    %v2443 = vld [vmem:[#allocation3 + $0x10] sm:$0xff]
    %v2444 = vld [vmem:[#allocation3 + $0x18] sm:$0xff]
    %v2445 = vld [vmem:[#allocation3 + $0x20] sm:$0xff]
    %v2446 = vld [vmem:[#allocation3 + $0x28] sm:$0xff]
    %v2447 = vld [vmem:[#allocation3 + $0x30] sm:$0xff]
    %v2448 = vld [vmem:[#allocation3 + $0x38] sm:$0xff]
    %v2449 = vld [vmem:[#allocation3 + $0x40] sm:$0xff]
    %v2450 = vld [vmem:[#allocation3 + $0x48] sm:$0xff]
    %v2451 = vld [vmem:[#allocation3 + $0x50] sm:$0xff]
    %v2452 = vld [vmem:[#allocation3 + $0x58] sm:$0xff]
    %v2453 = vld [vmem:[#allocation3 + $0x60] sm:$0xff]
    %v2454 = vld [vmem:[#allocation3 + $0x68] sm:$0xff]
    %v2455 = vld [vmem:[#allocation3 + $0x70] sm:$0xff]
    %v2456 = vld [vmem:[#allocation3 + $0x78] sm:$0xff]
    %v2457 = vld [vmem:[#allocation3 + $0x80] sm:$0xff]
    %v2458 = vld [vmem:[#allocation3 + $0x88] sm:$0xff]
    %v2459 = vld [vmem:[#allocation3 + $0x90] sm:$0x3]
    %v2460 = vld [vmem:[#allocation3 + $0x98] sm:$0x3]
    %v2461 = vld [vmem:[#allocation12 + $0x400] sm:$0xff]
    %v2462 = vld [vmem:[#allocation12 + $0x408] sm:$0xff]
    %v2463 = vld [vmem:[#allocation12 + $0x410] sm:$0xff]
    %v2464 = vld [vmem:[#allocation12 + $0x418] sm:$0xff]
    %v2465 = vld [vmem:[#allocation12 + $0x420] sm:$0xff]
    %v2466 = vld [vmem:[#allocation12 + $0x428] sm:$0xff]
    %v2467 = vld [vmem:[#allocation12 + $0x430] sm:$0xff]
    %v2468 = vld [vmem:[#allocation12 + $0x438] sm:$0xff]
    %v2469 = vld [vmem:[#allocation12 + $0x440] sm:$0xff]
    %v2470 = vld [vmem:[#allocation12 + $0x448] sm:$0xff]
    %v2471 = vld [vmem:[#allocation12 + $0x450] sm:$0xff]
    %v2472 = vld [vmem:[#allocation12 + $0x458] sm:$0xff]
    %v2473 = vld [vmem:[#allocation12 + $0x460] sm:$0xff]
    %v2474 = vld [vmem:[#allocation12 + $0x468] sm:$0xff]
    %v2475 = vld [vmem:[#allocation12 + $0x470] sm:$0xff]
    %v2476 = vld [vmem:[#allocation12 + $0x478] sm:$0xff]
    %v2477 = vld [vmem:[#allocation12 + $0x480] sm:$0xff]
    %v2478 = vld [vmem:[#allocation12 + $0x488] sm:$0xff]
    %v2479 = vld [vmem:[#allocation12 + $0x490] sm:$0xff]
    %v2480 = vld [vmem:[#allocation12 + $0x498] sm:$0xff]
    %v2481 = vld [vmem:[#allocation12 + $0x4a0] sm:$0xff]
    %v2482 = vld [vmem:[#allocation12 + $0x4a8] sm:$0xff]
    %v2483 = vld [vmem:[#allocation12 + $0x4b0] sm:$0xff]
    %v2484 = vld [vmem:[#allocation12 + $0x4b8] sm:$0xff]
    %v2485 = vld [vmem:[#allocation12 + $0x4c0] sm:$0xff]
    %v2486 = vld [vmem:[#allocation12 + $0x4c8] sm:$0xff]
    %v2487 = vld [vmem:[#allocation12 + $0x4d0] sm:$0xff]
    %v2488 = vld [vmem:[#allocation12 + $0x4d8] sm:$0xff]
    %v2489 = vld [vmem:[#allocation12 + $0x4e0] sm:$0xff]
    %v2490 = vld [vmem:[#allocation12 + $0x4e8] sm:$0xff]
    %v2491 = vld [vmem:[#allocation12 + $0x4f0] sm:$0xff]
    %v2492 = vld [vmem:[#allocation12 + $0x4f8] sm:$0xff]
    %v2493 = vld [vmem:[#allocation12 + $0x500] sm:$0xff]
    %v2494 = vld [vmem:[#allocation12 + $0x508] sm:$0xff]
    %v2495 = vld [vmem:[#allocation12 + $0x510] sm:$0xff]
    %v2496 = vld [vmem:[#allocation12 + $0x518] sm:$0xff]
    %v2497 = vld [vmem:[#allocation12 + $0x520] sm:$0xff]
    %v2498 = vld [vmem:[#allocation12 + $0x528] sm:$0xff]
    %v2499 = vld [vmem:[#allocation12 + $0x530] sm:$0xff]
    %v2500 = vld [vmem:[#allocation12 + $0x538] sm:$0xff]
    %v2501 = vld [vmem:[#allocation12 + $0x540] sm:$0xff]
    %v2502 = vld [vmem:[#allocation12 + $0x548] sm:$0xff]
    %v2503 = vld [vmem:[#allocation12 + $0x550] sm:$0xff]
    %v2504 = vld [vmem:[#allocation12 + $0x558] sm:$0xff]
    %v2505 = vld [vmem:[#allocation12 + $0x560] sm:$0xff]
    %v2506 = vld [vmem:[#allocation12 + $0x568] sm:$0xff]
    %v2507 = vld [vmem:[#allocation12 + $0x570] sm:$0xff]
    %v2508 = vld [vmem:[#allocation12 + $0x578] sm:$0xff]
    %v2509 = vld [vmem:[#allocation12 + $0x580] sm:$0xff]
    %v2510 = vld [vmem:[#allocation12 + $0x588] sm:$0xff]
    %v2511 = vld [vmem:[#allocation12 + $0x590] sm:$0xff]
    %v2512 = vld [vmem:[#allocation12 + $0x598] sm:$0xff]
    %v2513 = vld [vmem:[#allocation12 + $0x5a0] sm:$0xff]
    %v2514 = vld [vmem:[#allocation12 + $0x5a8] sm:$0xff]
    %v2515 = vld [vmem:[#allocation12 + $0x5b0] sm:$0xff]
    %v2516 = vld [vmem:[#allocation12 + $0x5b8] sm:$0xff]
    %v2517 = vld [vmem:[#allocation12 + $0x5c0] sm:$0xff]
    %v2518 = vld [vmem:[#allocation12 + $0x5c8] sm:$0xff]
    %v2519 = vld [vmem:[#allocation12 + $0x5d0] sm:$0xff]
    %v2520 = vld [vmem:[#allocation12 + $0x5d8] sm:$0xff]
    %v2521 = vld [vmem:[#allocation12 + $0x5e0] sm:$0xff]
    %v2522 = vld [vmem:[#allocation12 + $0x5e8] sm:$0xff]
    %v2523 = vld [vmem:[#allocation12 + $0x5f0] sm:$0xff]
    %v2524 = vld [vmem:[#allocation12 + $0x5f8] sm:$0xff]
    %v2525 = vld [vmem:[#allocation12 + $0x600] sm:$0xff]
    %v2526 = vld [vmem:[#allocation12 + $0x608] sm:$0xff]
    %v2527 = vld [vmem:[#allocation12 + $0x610] sm:$0xff]
    %v2528 = vld [vmem:[#allocation12 + $0x618] sm:$0xff]
    %v2529 = vld [vmem:[#allocation12 + $0x620] sm:$0xff]
    %v2530 = vld [vmem:[#allocation12 + $0x628] sm:$0xff]
    %v2531 = vld [vmem:[#allocation12 + $0x630] sm:$0xff]
    %v2532 = vld [vmem:[#allocation12 + $0x638] sm:$0xff]
    %v2533 = vld [vmem:[#allocation12 + $0x640] sm:$0xff]
    %v2534 = vld [vmem:[#allocation12 + $0x648] sm:$0xff]
    %v2535 = vld [vmem:[#allocation12 + $0x650] sm:$0xff]
    %v2536 = vld [vmem:[#allocation12 + $0x658] sm:$0xff]
    %v2537 = vld [vmem:[#allocation12 + $0x660] sm:$0xff]
    %v2538 = vld [vmem:[#allocation12 + $0x668] sm:$0xff]
    %v2539 = vld [vmem:[#allocation12 + $0x670] sm:$0xff]
    %v2540 = vld [vmem:[#allocation12 + $0x678] sm:$0xff]
    %v2541 = vld [vmem:[#allocation12 + $0x680] sm:$0xff]
    %v2542 = vld [vmem:[#allocation12 + $0x688] sm:$0xff]
    %v2543 = vld [vmem:[#allocation12 + $0x690] sm:$0xff]
    %v2544 = vld [vmem:[#allocation12 + $0x698] sm:$0xff]
    %v2545 = vld [vmem:[#allocation12 + $0x6a0] sm:$0xff]
    %v2546 = vld [vmem:[#allocation12 + $0x6a8] sm:$0xff]
    %v2547 = vld [vmem:[#allocation12 + $0x6b0] sm:$0xff]
    %v2548 = vld [vmem:[#allocation12 + $0x6b8] sm:$0xff]
    %v2549 = vld [vmem:[#allocation12 + $0x6c0] sm:$0xff]
    %v2550 = vld [vmem:[#allocation12 + $0x6c8] sm:$0xff]
    %v2551 = vld [vmem:[#allocation12 + $0x6d0] sm:$0xff]
    %v2552 = vld [vmem:[#allocation12 + $0x6d8] sm:$0xff]
    %v2553 = vld [vmem:[#allocation12 + $0x6e0] sm:$0xff]
    %v2554 = vld [vmem:[#allocation12 + $0x6e8] sm:$0xff]
    %v2555 = vld [vmem:[#allocation12 + $0x6f0] sm:$0xff]
    %v2556 = vld [vmem:[#allocation12 + $0x6f8] sm:$0xff]
    %v2557 = vld [vmem:[#allocation12 + $0x700] sm:$0xff]
    %v2558 = vld [vmem:[#allocation12 + $0x708] sm:$0xff]
    %v2559 = vld [vmem:[#allocation12 + $0x710] sm:$0xff]
    %v2560 = vld [vmem:[#allocation12 + $0x718] sm:$0xff]
    %v2561 = vld [vmem:[#allocation12 + $0x720] sm:$0xff]
    %v2562 = vld [vmem:[#allocation12 + $0x728] sm:$0xff]
    %v2563 = vld [vmem:[#allocation12 + $0x730] sm:$0xff]
    %v2564 = vld [vmem:[#allocation12 + $0x738] sm:$0xff]
    %v2565 = vld [vmem:[#allocation12 + $0x740] sm:$0xff]
    %v2566 = vld [vmem:[#allocation12 + $0x748] sm:$0xff]
    %v2567 = vld [vmem:[#allocation12 + $0x750] sm:$0xff]
    %v2568 = vld [vmem:[#allocation12 + $0x758] sm:$0xff]
    %v2569 = vld [vmem:[#allocation12 + $0x760] sm:$0xff]
    %v2570 = vld [vmem:[#allocation12 + $0x768] sm:$0xff]
    %v2571 = vld [vmem:[#allocation12 + $0x770] sm:$0xff]
    %v2572 = vld [vmem:[#allocation12 + $0x778] sm:$0xff]
    %v2573 = vld [vmem:[#allocation12 + $0x780] sm:$0xff]
    %v2574 = vld [vmem:[#allocation12 + $0x788] sm:$0xff]
    %v2575 = vld [vmem:[#allocation12 + $0x790] sm:$0xff]
    %v2576 = vld [vmem:[#allocation12 + $0x798] sm:$0xff]
    %v2577 = vld [vmem:[#allocation12 + $0x7a0] sm:$0xff]
    %v2578 = vld [vmem:[#allocation12 + $0x7a8] sm:$0xff]
    %v2579 = vld [vmem:[#allocation12 + $0x7b0] sm:$0xff]
    %v2580 = vld [vmem:[#allocation12 + $0x7b8] sm:$0xff]
    %v2581 = vld [vmem:[#allocation12 + $0x7c0] sm:$0xff]
    %v2582 = vld [vmem:[#allocation12 + $0x7c8] sm:$0xff]
    %v2583 = vld [vmem:[#allocation12 + $0x7d0] sm:$0xff]
    %v2584 = vld [vmem:[#allocation12 + $0x7d8] sm:$0xff]
    %v2585 = vld [vmem:[#allocation12 + $0x7e0] sm:$0xff]
    %v2586 = vld [vmem:[#allocation12 + $0x7e8] sm:$0xff]
    %v2587 = vld [vmem:[#allocation12 + $0x7f0] sm:$0xff]
    %v2588 = vld [vmem:[#allocation12 + $0x7f8] sm:$0xff]
    %vm2609 = vcmask 1045504
    %v2610 = vrot.slane %v2441, 2
    %v2611 = vrot.slane %v2443, 2
    %v2612 = vsel %vm2609, %v2610, %v2611
    %v2613 = vrot.slane %v2442, 2
    %v2614 = vrot.slane %v2444, 2
    %v2615 = vsel %vm2609, %v2613, %v2614
    %v2616 = vrot.slane %v2445, 2
    %v2617 = vsel %vm2609, %v2611, %v2616
    %v2618 = vrot.slane %v2446, 2
    %v2619 = vsel %vm2609, %v2614, %v2618
    %v2620 = vrot.slane %v2447, 2
    %v2621 = vsel %vm2609, %v2616, %v2620
    %v2622 = vrot.slane %v2448, 2
    %v2623 = vsel %vm2609, %v2618, %v2622
    %v2624 = vrot.slane %v2449, 2
    %v2625 = vsel %vm2609, %v2620, %v2624
    %v2626 = vrot.slane %v2450, 2
    %v2627 = vsel %vm2609, %v2622, %v2626
    %v2628 = vrot.slane %v2451, 2
    %v2629 = vsel %vm2609, %v2624, %v2628
    %v2630 = vrot.slane %v2452, 2
    %v2631 = vsel %vm2609, %v2626, %v2630
    %v2632 = vrot.slane %v2453, 2
    %v2633 = vsel %vm2609, %v2628, %v2632
    %v2634 = vrot.slane %v2454, 2
    %v2635 = vsel %vm2609, %v2630, %v2634
    %v2636 = vrot.slane %v2455, 2
    %v2637 = vsel %vm2609, %v2632, %v2636
    %v2638 = vrot.slane %v2456, 2
    %v2639 = vsel %vm2609, %v2634, %v2638
    %v2640 = vrot.slane %v2457, 2
    %v2641 = vsel %vm2609, %v2636, %v2640
    %v2642 = vrot.slane %v2458, 2
    %v2643 = vsel %vm2609, %v2638, %v2642
    %v2644 = vrot.slane %v2459, 2
    %v2645 = vsel %vm2609, %v2640, %v2644
    %v2646 = vrot.slane %v2460, 2
    %v2647 = vsel %vm2609, %v2642, %v2646
    %2666 = vmatprep.subr.mxu0 %v2522
    %2667 = vmatpush1.msra.mxu0 %v2521
    %2668 = vmatprep.subr.mxu0 %v2518
    %2669 = vmatpush1.msra.mxu0 %v2517
    %2670 = vmatprep.subr.mxu0 %v2514
    %2671 = vmatpush1.msra.mxu0 %v2513
    %2672 = vmatprep.subr.mxu0 %v2510
    %2673 = vmatpush1.msra.mxu0 %v2509
    %2674 = vmatprep.subr.mxu0 %v2506
    %2675 = vmatpush1.msra.mxu0 %v2505
    %2676 = vmatprep.subr.mxu0 %v2502
    %2677 = vmatpush1.msra.mxu0 %v2501
    %2678 = vmatprep.subr.mxu0 %v2498
    %2679 = vmatpush1.msra.mxu0 %v2497
    %2680 = vmatprep.subr.mxu0 %v2494
    %2681 = vmatpush1.msra.mxu0 %v2493
    %2682 = vmatprep.subr.mxu0 %v2490
    %2683 = vmatpush1.msra.mxu0 %v2489
    %2684 = vmatprep.subr.mxu0 %v2486
    %2685 = vmatpush1.msra.mxu0 %v2485
    %2686 = vmatprep.subr.mxu0 %v2482
    %2687 = vmatpush1.msra.mxu0 %v2481
    %2688 = vmatprep.subr.mxu0 %v2478
    %2689 = vmatpush1.msra.mxu0 %v2477
    %2690 = vmatprep.subr.mxu0 %v2474
    %2691 = vmatpush1.msra.mxu0 %v2473
    %2692 = vmatprep.subr.mxu0 %v2470
    %2693 = vmatpush1.msra.mxu0 %v2469
    %2694 = vmatprep.subr.mxu0 %v2466
    %2695 = vmatpush1.msra.mxu0 %v2465
    %2696 = vmatprep.subr.mxu0 %v2462
    %2697 = vmatpush1.msra.mxu0 %v2461
    %2698 = vmatprep.subr.mxu0 %v2586
    %2699 = vmatpush2.msra.mxu0 %v2585
    %2700 = vmatprep.subr.mxu0 %v2582
    %2701 = vmatpush2.msra.mxu0 %v2581
    %2702 = vmatprep.subr.mxu0 %v2578
    %2703 = vmatpush2.msra.mxu0 %v2577
    %2704 = vmatprep.subr.mxu0 %v2574
    %2705 = vmatpush2.msra.mxu0 %v2573
    %2706 = vmatprep.subr.mxu0 %v2570
    %2707 = vmatpush2.msra.mxu0 %v2569
    %2708 = vmatprep.subr.mxu0 %v2566
    %2709 = vmatpush2.msra.mxu0 %v2565
    %2710 = vmatprep.subr.mxu0 %v2562
    %2711 = vmatpush2.msra.mxu0 %v2561
    %2712 = vmatprep.subr.mxu0 %v2558
    %2713 = vmatpush2.msra.mxu0 %v2557
    %2714 = vmatprep.subr.mxu0 %v2554
    %2715 = vmatpush2.msra.mxu0 %v2553
    %2716 = vmatprep.subr.mxu0 %v2550
    %2717 = vmatpush2.msra.mxu0 %v2549
    %2718 = vmatprep.subr.mxu0 %v2546
    %2719 = vmatpush2.msra.mxu0 %v2545
    %2720 = vmatprep.subr.mxu0 %v2542
    %2721 = vmatpush2.msra.mxu0 %v2541
    %2722 = vmatprep.subr.mxu0 %v2538
    %2723 = vmatpush2.msra.mxu0 %v2537
    %2724 = vmatprep.subr.mxu0 %v2534
    %2725 = vmatpush2.msra.mxu0 %v2533
    %2726 = vmatprep.subr.mxu0 %v2530
    %2727 = vmatpush2.msra.mxu0 %v2529
    %2728 = vmatprep.subr.mxu0 %v2526
    %2729 = vmatpush2.msra.mxu0 %v2525
    %2730 = vmatprep.mubr.f32.mxu0 %v2615
    %2731 = vmatmul.mubr.f32.gmra.mxu0 %v2612
    %v2732 = vpop.f32.mrf.mxu0
    %v2733 = vadd.f32 0.0, %v2732
    %v2734 = vpop.f32.mrf.mxu0
    %v2735 = vadd.f32 0.0, %v2734
    %2736 = vmatprep.mubr.f32.mxu0 %v2619
    %2737 = vmatmul.mubr.f32.gmra.mxu0 %v2617
    %v2738 = vpop.f32.mrf.mxu0
    %v2739 = vadd.f32 0.0, %v2738
    %v2740 = vpop.f32.mrf.mxu0
    %v2741 = vadd.f32 0.0, %v2740
    %2742 = vmatprep.mubr.f32.mxu0 %v2623
    %2743 = vmatmul.mubr.f32.gmra.mxu0 %v2621
    %v2744 = vpop.f32.mrf.mxu0
    %v2745 = vadd.f32 0.0, %v2744
    %v2746 = vpop.f32.mrf.mxu0
    %v2747 = vadd.f32 0.0, %v2746
    %2748 = vmatprep.mubr.f32.mxu0 %v2627
    %2749 = vmatmul.mubr.f32.gmra.mxu0 %v2625
    %v2750 = vpop.f32.mrf.mxu0
    %v2751 = vadd.f32 0.0, %v2750
    %v2752 = vpop.f32.mrf.mxu0
    %v2753 = vadd.f32 0.0, %v2752
    %2754 = vmatprep.mubr.f32.mxu0 %v2631
    %2755 = vmatmul.mubr.f32.gmra.mxu0 %v2629
    %v2756 = vpop.f32.mrf.mxu0
    %v2757 = vadd.f32 0.0, %v2756
    %v2758 = vpop.f32.mrf.mxu0
    %v2759 = vadd.f32 0.0, %v2758
    %2760 = vmatprep.mubr.f32.mxu0 %v2635
    %2761 = vmatmul.mubr.f32.gmra.mxu0 %v2633
    %v2762 = vpop.f32.mrf.mxu0
    %v2763 = vadd.f32 0.0, %v2762
    %v2764 = vpop.f32.mrf.mxu0
    %v2765 = vadd.f32 0.0, %v2764
    %2766 = vmatprep.mubr.f32.mxu0 %v2639
    %2767 = vmatmul.mubr.f32.gmra.mxu0 %v2637
    %v2768 = vpop.f32.mrf.mxu0
    %v2769 = vadd.f32 0.0, %v2768
    %v2770 = vpop.f32.mrf.mxu0
    %v2771 = vadd.f32 0.0, %v2770
    %2772 = vmatprep.mubr.f32.mxu0 %v2643
    %2773 = vmatmul.mubr.f32.gmra.mxu0 %v2641
    %v2774 = vpop.f32.mrf.mxu0
    %v2775 = vadd.f32 0.0, %v2774
    %v2776 = vpop.f32.mrf.mxu0
    %v2777 = vadd.f32 0.0, %v2776
    %2778 = vmatprep.mubr.f32.mxu0 %v2647
    %2779 = vmatmul.mubr.f32.gmra.mxu0 %v2645
    %v2780 = vpop.f32.mrf.mxu0
    %v2781 = vadd.f32 0.0, %v2780
    %v2782 = vpop.f32.mrf.mxu0
    %v2783 = vadd.f32 0.0, %v2782
    %2784 = vdwg.mxu0
    %2785 = vmatprep.subr.mxu0 %v2524
    %2786 = vmatpush1.msra.mxu0 %v2523
    %2787 = vmatprep.subr.mxu0 %v2520
    %2788 = vmatpush1.msra.mxu0 %v2519
    %2789 = vmatprep.subr.mxu0 %v2516
    %2790 = vmatpush1.msra.mxu0 %v2515
    %2791 = vmatprep.subr.mxu0 %v2512
    %2792 = vmatpush1.msra.mxu0 %v2511
    %2793 = vmatprep.subr.mxu0 %v2508
    %2794 = vmatpush1.msra.mxu0 %v2507
    %2795 = vmatprep.subr.mxu0 %v2504
    %2796 = vmatpush1.msra.mxu0 %v2503
    %2797 = vmatprep.subr.mxu0 %v2500
    %2798 = vmatpush1.msra.mxu0 %v2499
    %2799 = vmatprep.subr.mxu0 %v2496
    %2800 = vmatpush1.msra.mxu0 %v2495
    %2801 = vmatprep.subr.mxu0 %v2492
    %2802 = vmatpush1.msra.mxu0 %v2491
    %2803 = vmatprep.subr.mxu0 %v2488
    %2804 = vmatpush1.msra.mxu0 %v2487
    %2805 = vmatprep.subr.mxu0 %v2484
    %2806 = vmatpush1.msra.mxu0 %v2483
    %2807 = vmatprep.subr.mxu0 %v2480
    %2808 = vmatpush1.msra.mxu0 %v2479
    %2809 = vmatprep.subr.mxu0 %v2476
    %2810 = vmatpush1.msra.mxu0 %v2475
    %2811 = vmatprep.subr.mxu0 %v2472
    %2812 = vmatpush1.msra.mxu0 %v2471
    %2813 = vmatprep.subr.mxu0 %v2468
    %2814 = vmatpush1.msra.mxu0 %v2467
    %2815 = vmatprep.subr.mxu0 %v2464
    %2816 = vmatpush1.msra.mxu0 %v2463
    %2817 = vmatprep.subr.mxu0 %v2588
    %2818 = vmatpush2.msra.mxu0 %v2587
    %2819 = vmatprep.subr.mxu0 %v2584
    %2820 = vmatpush2.msra.mxu0 %v2583
    %2821 = vmatprep.subr.mxu0 %v2580
    %2822 = vmatpush2.msra.mxu0 %v2579
    %2823 = vmatprep.subr.mxu0 %v2576
    %2824 = vmatpush2.msra.mxu0 %v2575
    %2825 = vmatprep.subr.mxu0 %v2572
    %2826 = vmatpush2.msra.mxu0 %v2571
    %2827 = vmatprep.subr.mxu0 %v2568
    %2828 = vmatpush2.msra.mxu0 %v2567
    %2829 = vmatprep.subr.mxu0 %v2564
    %2830 = vmatpush2.msra.mxu0 %v2563
    %2831 = vmatprep.subr.mxu0 %v2560
    %2832 = vmatpush2.msra.mxu0 %v2559
    %2833 = vmatprep.subr.mxu0 %v2556
    %2834 = vmatpush2.msra.mxu0 %v2555
    %2835 = vmatprep.subr.mxu0 %v2552
    %2836 = vmatpush2.msra.mxu0 %v2551
    %2837 = vmatprep.subr.mxu0 %v2548
    %2838 = vmatpush2.msra.mxu0 %v2547
    %2839 = vmatprep.subr.mxu0 %v2544
    %2840 = vmatpush2.msra.mxu0 %v2543
    %2841 = vmatprep.subr.mxu0 %v2540
    %2842 = vmatpush2.msra.mxu0 %v2539
    %2843 = vmatprep.subr.mxu0 %v2536
    %2844 = vmatpush2.msra.mxu0 %v2535
    %2845 = vmatprep.subr.mxu0 %v2532
    %2846 = vmatpush2.msra.mxu0 %v2531
    %2847 = vmatprep.subr.mxu0 %v2528
    %2848 = vmatpush2.msra.mxu0 %v2527
    %2849 = vmatprep.mubr.f32.mxu0 %v2615
    %2850 = vmatmul.mubr.f32.gmra.mxu0 %v2612
    %v2851 = vpop.f32.mrf.mxu0
    %v2852 = vadd.f32 0.0, %v2851
    %v2853 = vpop.f32.mrf.mxu0
    %v2854 = vadd.f32 0.0, %v2853
    %2855 = vmatprep.mubr.f32.mxu0 %v2619
    %2856 = vmatmul.mubr.f32.gmra.mxu0 %v2617
    %v2857 = vpop.f32.mrf.mxu0
    %v2858 = vadd.f32 0.0, %v2857
    %v2859 = vpop.f32.mrf.mxu0
    %v2860 = vadd.f32 0.0, %v2859
    %2861 = vmatprep.mubr.f32.mxu0 %v2623
    %2862 = vmatmul.mubr.f32.gmra.mxu0 %v2621
    %v2863 = vpop.f32.mrf.mxu0
    %v2864 = vadd.f32 0.0, %v2863
    %v2865 = vpop.f32.mrf.mxu0
    %v2866 = vadd.f32 0.0, %v2865
    %2867 = vmatprep.mubr.f32.mxu0 %v2627
    %2868 = vmatmul.mubr.f32.gmra.mxu0 %v2625
    %v2869 = vpop.f32.mrf.mxu0
    %v2870 = vadd.f32 0.0, %v2869
    %v2871 = vpop.f32.mrf.mxu0
    %v2872 = vadd.f32 0.0, %v2871
    %2873 = vmatprep.mubr.f32.mxu0 %v2631
    %2874 = vmatmul.mubr.f32.gmra.mxu0 %v2629
    %v2875 = vpop.f32.mrf.mxu0
    %v2876 = vadd.f32 0.0, %v2875
    %v2877 = vpop.f32.mrf.mxu0
    %v2878 = vadd.f32 0.0, %v2877
    %2879 = vmatprep.mubr.f32.mxu0 %v2635
    %2880 = vmatmul.mubr.f32.gmra.mxu0 %v2633
    %v2881 = vpop.f32.mrf.mxu0
    %v2882 = vadd.f32 0.0, %v2881
    %v2883 = vpop.f32.mrf.mxu0
    %v2884 = vadd.f32 0.0, %v2883
    %2885 = vmatprep.mubr.f32.mxu0 %v2639
    %2886 = vmatmul.mubr.f32.gmra.mxu0 %v2637
    %v2887 = vpop.f32.mrf.mxu0
    %v2888 = vadd.f32 0.0, %v2887
    %v2889 = vpop.f32.mrf.mxu0
    %v2890 = vadd.f32 0.0, %v2889
    %2891 = vmatprep.mubr.f32.mxu0 %v2643
    %2892 = vmatmul.mubr.f32.gmra.mxu0 %v2641
    %v2893 = vpop.f32.mrf.mxu0
    %v2894 = vadd.f32 0.0, %v2893
    %v2895 = vpop.f32.mrf.mxu0
    %v2896 = vadd.f32 0.0, %v2895
    %2897 = vmatprep.mubr.f32.mxu0 %v2647
    %2898 = vmatmul.mubr.f32.gmra.mxu0 %v2645
    %v2899 = vpop.f32.mrf.mxu0
    %v2900 = vadd.f32 0.0, %v2899
    %v2901 = vpop.f32.mrf.mxu0
    %v2902 = vadd.f32 0.0, %v2901
    %2903 = vdwg.mxu0
    %2904 = vmatprep.subr.mxu0 %v2374
    %2905 = vmatpush1.msra.mxu0 %v2373
    %2906 = vmatprep.subr.mxu0 %v2370
    %2907 = vmatpush1.msra.mxu0 %v2369
    %2908 = vmatprep.subr.mxu0 %v2366
    %2909 = vmatpush1.msra.mxu0 %v2365
    %2910 = vmatprep.subr.mxu0 %v2362
    %2911 = vmatpush1.msra.mxu0 %v2361
    %2912 = vmatprep.subr.mxu0 %v2358
    %2913 = vmatpush1.msra.mxu0 %v2357
    %2914 = vmatprep.subr.mxu0 %v2354
    %2915 = vmatpush1.msra.mxu0 %v2353
    %2916 = vmatprep.subr.mxu0 %v2350
    %2917 = vmatpush1.msra.mxu0 %v2349
    %2918 = vmatprep.subr.mxu0 %v2346
    %2919 = vmatpush1.msra.mxu0 %v2345
    %2920 = vmatprep.subr.mxu0 %v2342
    %2921 = vmatpush1.msra.mxu0 %v2341
    %2922 = vmatprep.subr.mxu0 %v2338
    %2923 = vmatpush1.msra.mxu0 %v2337
    %2924 = vmatprep.subr.mxu0 %v2334
    %2925 = vmatpush1.msra.mxu0 %v2333
    %2926 = vmatprep.subr.mxu0 %v2330
    %2927 = vmatpush1.msra.mxu0 %v2329
    %2928 = vmatprep.subr.mxu0 %v2326
    %2929 = vmatpush1.msra.mxu0 %v2325
    %2930 = vmatprep.subr.mxu0 %v2322
    %2931 = vmatpush1.msra.mxu0 %v2321
    %2932 = vmatprep.subr.mxu0 %v2318
    %2933 = vmatpush1.msra.mxu0 %v2317
    %2934 = vmatprep.subr.mxu0 %v2314
    %2935 = vmatpush1.msra.mxu0 %v2313
    %2936 = vmatprep.subr.mxu0 %v2438
    %2937 = vmatpush2.msra.mxu0 %v2437
    %2938 = vmatprep.subr.mxu0 %v2434
    %2939 = vmatpush2.msra.mxu0 %v2433
    %2940 = vmatprep.subr.mxu0 %v2430
    %2941 = vmatpush2.msra.mxu0 %v2429
    %2942 = vmatprep.subr.mxu0 %v2426
    %2943 = vmatpush2.msra.mxu0 %v2425
    %2944 = vmatprep.subr.mxu0 %v2422
    %2945 = vmatpush2.msra.mxu0 %v2421
    %2946 = vmatprep.subr.mxu0 %v2418
    %2947 = vmatpush2.msra.mxu0 %v2417
    %2948 = vmatprep.subr.mxu0 %v2414
    %2949 = vmatpush2.msra.mxu0 %v2413
    %2950 = vmatprep.subr.mxu0 %v2410
    %2951 = vmatpush2.msra.mxu0 %v2409
    %2952 = vmatprep.subr.mxu0 %v2406
    %2953 = vmatpush2.msra.mxu0 %v2405
    %2954 = vmatprep.subr.mxu0 %v2402
    %2955 = vmatpush2.msra.mxu0 %v2401
    %2956 = vmatprep.subr.mxu0 %v2398
    %2957 = vmatpush2.msra.mxu0 %v2397
    %2958 = vmatprep.subr.mxu0 %v2394
    %2959 = vmatpush2.msra.mxu0 %v2393
    %2960 = vmatprep.subr.mxu0 %v2390
    %2961 = vmatpush2.msra.mxu0 %v2389
    %2962 = vmatprep.subr.mxu0 %v2386
    %2963 = vmatpush2.msra.mxu0 %v2385
    %2964 = vmatprep.subr.mxu0 %v2382
    %2965 = vmatpush2.msra.mxu0 %v2381
    %2966 = vmatprep.subr.mxu0 %v2378
    %2967 = vmatpush2.msra.mxu0 %v2377
    %2968 = vmatprep.mubr.f32.mxu0 %v2296
    %2969 = vmatmul.mubr.f32.gmra.mxu0 %v2295
    %v2970 = vpop.f32.mrf.mxu0
    %v2971 = vadd.f32 %v2733, %v2970
    %v2972 = vpop.f32.mrf.mxu0
    %v2973 = vadd.f32 %v2735, %v2972
    %2974 = vmatprep.mubr.f32.mxu0 %v2298
    %2975 = vmatmul.mubr.f32.gmra.mxu0 %v2297
    %v2976 = vpop.f32.mrf.mxu0
    %v2977 = vadd.f32 %v2739, %v2976
    %v2978 = vpop.f32.mrf.mxu0
    %v2979 = vadd.f32 %v2741, %v2978
    %2980 = vmatprep.mubr.f32.mxu0 %v2300
    %2981 = vmatmul.mubr.f32.gmra.mxu0 %v2299
    %v2982 = vpop.f32.mrf.mxu0
    %v2983 = vadd.f32 %v2745, %v2982
    %v2984 = vpop.f32.mrf.mxu0
    %v2985 = vadd.f32 %v2747, %v2984
    %2986 = vmatprep.mubr.f32.mxu0 %v2302
    %2987 = vmatmul.mubr.f32.gmra.mxu0 %v2301
    %v2988 = vpop.f32.mrf.mxu0
    %v2989 = vadd.f32 %v2751, %v2988
    %v2990 = vpop.f32.mrf.mxu0
    %v2991 = vadd.f32 %v2753, %v2990
    %2992 = vmatprep.mubr.f32.mxu0 %v2304
    %2993 = vmatmul.mubr.f32.gmra.mxu0 %v2303
    %v2994 = vpop.f32.mrf.mxu0
    %v2995 = vadd.f32 %v2757, %v2994
    %v2996 = vpop.f32.mrf.mxu0
    %v2997 = vadd.f32 %v2759, %v2996
    %2998 = vmatprep.mubr.f32.mxu0 %v2306
    %2999 = vmatmul.mubr.f32.gmra.mxu0 %v2305
    %v3000 = vpop.f32.mrf.mxu0
    %v3001 = vadd.f32 %v2763, %v3000
    %v3002 = vpop.f32.mrf.mxu0
    %v3003 = vadd.f32 %v2765, %v3002
    %3004 = vmatprep.mubr.f32.mxu0 %v2308
    %3005 = vmatmul.mubr.f32.gmra.mxu0 %v2307
    %v3006 = vpop.f32.mrf.mxu0
    %v3007 = vadd.f32 %v2769, %v3006
    %v3008 = vpop.f32.mrf.mxu0
    %v3009 = vadd.f32 %v2771, %v3008
    %3010 = vmatprep.mubr.f32.mxu0 %v2310
    %3011 = vmatmul.mubr.f32.gmra.mxu0 %v2309
    %v3012 = vpop.f32.mrf.mxu0
    %v3013 = vadd.f32 %v2775, %v3012
    %v3014 = vpop.f32.mrf.mxu0
    %v3015 = vadd.f32 %v2777, %v3014
    %3016 = vmatprep.mubr.f32.mxu0 %v2312
    %3017 = vmatmul.mubr.f32.gmra.mxu0 %v2311
    %v3018 = vpop.f32.mrf.mxu0
    %v3019 = vadd.f32 %v2781, %v3018
    %v3020 = vpop.f32.mrf.mxu0
    %v3021 = vadd.f32 %v2783, %v3020
    %3022 = vdwg.mxu0
    %3023 = vmatprep.subr.mxu0 %v2376
    %3024 = vmatpush1.msra.mxu0 %v2375
    %3025 = vmatprep.subr.mxu0 %v2372
    %3026 = vmatpush1.msra.mxu0 %v2371
    %3027 = vmatprep.subr.mxu0 %v2368
    %3028 = vmatpush1.msra.mxu0 %v2367
    %3029 = vmatprep.subr.mxu0 %v2364
    %3030 = vmatpush1.msra.mxu0 %v2363
    %3031 = vmatprep.subr.mxu0 %v2360
    %3032 = vmatpush1.msra.mxu0 %v2359
    %3033 = vmatprep.subr.mxu0 %v2356
    %3034 = vmatpush1.msra.mxu0 %v2355
    %3035 = vmatprep.subr.mxu0 %v2352
    %3036 = vmatpush1.msra.mxu0 %v2351
    %3037 = vmatprep.subr.mxu0 %v2348
    %3038 = vmatpush1.msra.mxu0 %v2347
    %3039 = vmatprep.subr.mxu0 %v2344
    %3040 = vmatpush1.msra.mxu0 %v2343
    %3041 = vmatprep.subr.mxu0 %v2340
    %3042 = vmatpush1.msra.mxu0 %v2339
    %3043 = vmatprep.subr.mxu0 %v2336
    %3044 = vmatpush1.msra.mxu0 %v2335
    %3045 = vmatprep.subr.mxu0 %v2332
    %3046 = vmatpush1.msra.mxu0 %v2331
    %3047 = vmatprep.subr.mxu0 %v2328
    %3048 = vmatpush1.msra.mxu0 %v2327
    %3049 = vmatprep.subr.mxu0 %v2324
    %3050 = vmatpush1.msra.mxu0 %v2323
    %3051 = vmatprep.subr.mxu0 %v2320
    %3052 = vmatpush1.msra.mxu0 %v2319
    %3053 = vmatprep.subr.mxu0 %v2316
    %3054 = vmatpush1.msra.mxu0 %v2315
    %3055 = vmatprep.subr.mxu0 %v2440
    %3056 = vmatpush2.msra.mxu0 %v2439
    %3057 = vmatprep.subr.mxu0 %v2436
    %3058 = vmatpush2.msra.mxu0 %v2435
    %3059 = vmatprep.subr.mxu0 %v2432
    %3060 = vmatpush2.msra.mxu0 %v2431
    %3061 = vmatprep.subr.mxu0 %v2428
    %3062 = vmatpush2.msra.mxu0 %v2427
    %3063 = vmatprep.subr.mxu0 %v2424
    %3064 = vmatpush2.msra.mxu0 %v2423
    %3065 = vmatprep.subr.mxu0 %v2420
    %3066 = vmatpush2.msra.mxu0 %v2419
    %3067 = vmatprep.subr.mxu0 %v2416
    %3068 = vmatpush2.msra.mxu0 %v2415
    %3069 = vmatprep.subr.mxu0 %v2412
    %3070 = vmatpush2.msra.mxu0 %v2411
    %3071 = vmatprep.subr.mxu0 %v2408
    %3072 = vmatpush2.msra.mxu0 %v2407
    %3073 = vmatprep.subr.mxu0 %v2404
    %3074 = vmatpush2.msra.mxu0 %v2403
    %3075 = vmatprep.subr.mxu0 %v2400
    %3076 = vmatpush2.msra.mxu0 %v2399
    %3077 = vmatprep.subr.mxu0 %v2396
    %3078 = vmatpush2.msra.mxu0 %v2395
    %3079 = vmatprep.subr.mxu0 %v2392
    %3080 = vmatpush2.msra.mxu0 %v2391
    %3081 = vmatprep.subr.mxu0 %v2388
    %3082 = vmatpush2.msra.mxu0 %v2387
    %3083 = vmatprep.subr.mxu0 %v2384
    %3084 = vmatpush2.msra.mxu0 %v2383
    %3085 = vmatprep.subr.mxu0 %v2380
    %3086 = vmatpush2.msra.mxu0 %v2379
    %3087 = vmatprep.mubr.f32.mxu0 %v2296
    %3088 = vmatmul.mubr.f32.gmra.mxu0 %v2295
    %v3089 = vpop.f32.mrf.mxu0
    %v3090 = vadd.f32 %v2852, %v3089
    %v3091 = vpop.f32.mrf.mxu0
    %v3092 = vadd.f32 %v2854, %v3091
    %3093 = vmatprep.mubr.f32.mxu0 %v2298
    %3094 = vmatmul.mubr.f32.gmra.mxu0 %v2297
    %v3095 = vpop.f32.mrf.mxu0
    %v3096 = vadd.f32 %v2858, %v3095
    %v3097 = vpop.f32.mrf.mxu0
    %v3098 = vadd.f32 %v2860, %v3097
    %3099 = vmatprep.mubr.f32.mxu0 %v2300
    %3100 = vmatmul.mubr.f32.gmra.mxu0 %v2299
    %v3101 = vpop.f32.mrf.mxu0
    %v3102 = vadd.f32 %v2864, %v3101
    %v3103 = vpop.f32.mrf.mxu0
    %v3104 = vadd.f32 %v2866, %v3103
    %3105 = vmatprep.mubr.f32.mxu0 %v2302
    %3106 = vmatmul.mubr.f32.gmra.mxu0 %v2301
    %v3107 = vpop.f32.mrf.mxu0
    %v3108 = vadd.f32 %v2870, %v3107
    %v3109 = vpop.f32.mrf.mxu0
    %v3110 = vadd.f32 %v2872, %v3109
    %3111 = vmatprep.mubr.f32.mxu0 %v2304
    %3112 = vmatmul.mubr.f32.gmra.mxu0 %v2303
    %v3113 = vpop.f32.mrf.mxu0
    %v3114 = vadd.f32 %v2876, %v3113
    %v3115 = vpop.f32.mrf.mxu0
    %v3116 = vadd.f32 %v2878, %v3115
    %3117 = vmatprep.mubr.f32.mxu0 %v2306
    %3118 = vmatmul.mubr.f32.gmra.mxu0 %v2305
    %v3119 = vpop.f32.mrf.mxu0
    %v3120 = vadd.f32 %v2882, %v3119
    %v3121 = vpop.f32.mrf.mxu0
    %v3122 = vadd.f32 %v2884, %v3121
    %3123 = vmatprep.mubr.f32.mxu0 %v2308
    %3124 = vmatmul.mubr.f32.gmra.mxu0 %v2307
    %v3125 = vpop.f32.mrf.mxu0
    %v3126 = vadd.f32 %v2888, %v3125
    %v3127 = vpop.f32.mrf.mxu0
    %v3128 = vadd.f32 %v2890, %v3127
    %3129 = vmatprep.mubr.f32.mxu0 %v2310
    %3130 = vmatmul.mubr.f32.gmra.mxu0 %v2309
    %v3131 = vpop.f32.mrf.mxu0
    %v3132 = vadd.f32 %v2894, %v3131
    %v3133 = vpop.f32.mrf.mxu0
    %v3134 = vadd.f32 %v2896, %v3133
    %3135 = vmatprep.mubr.f32.mxu0 %v2312
    %3136 = vmatmul.mubr.f32.gmra.mxu0 %v2311
    %v3137 = vpop.f32.mrf.mxu0
    %v3138 = vadd.f32 %v2900, %v3137
    %v3139 = vpop.f32.mrf.mxu0
    %v3140 = vadd.f32 %v2902, %v3139
    %3141 = vdwg.mxu0
    %v3142 = vld [vmem:[#allocation3] sm:$0xf0]
    %v3143 = vld [vmem:[#allocation3 + $0x8] sm:$0xf0]
    %v3144 = vld [vmem:[#allocation3 + $0x90] sm:$0xf]
    %v3145 = vld [vmem:[#allocation3 + $0x98] sm:$0xf]
    %v3146 = vld [vmem:[#allocation12 + $0x800] sm:$0xff]
    %v3147 = vld [vmem:[#allocation12 + $0x808] sm:$0xff]
    %v3148 = vld [vmem:[#allocation12 + $0x810] sm:$0xff]
    %v3149 = vld [vmem:[#allocation12 + $0x818] sm:$0xff]
    %v3150 = vld [vmem:[#allocation12 + $0x820] sm:$0xff]
    %v3151 = vld [vmem:[#allocation12 + $0x828] sm:$0xff]
    %v3152 = vld [vmem:[#allocation12 + $0x830] sm:$0xff]
    %v3153 = vld [vmem:[#allocation12 + $0x838] sm:$0xff]
    %v3154 = vld [vmem:[#allocation12 + $0x840] sm:$0xff]
    %v3155 = vld [vmem:[#allocation12 + $0x848] sm:$0xff]
    %v3156 = vld [vmem:[#allocation12 + $0x850] sm:$0xff]
    %v3157 = vld [vmem:[#allocation12 + $0x858] sm:$0xff]
    %v3158 = vld [vmem:[#allocation12 + $0x860] sm:$0xff]
    %v3159 = vld [vmem:[#allocation12 + $0x868] sm:$0xff]
    %v3160 = vld [vmem:[#allocation12 + $0x870] sm:$0xff]
    %v3161 = vld [vmem:[#allocation12 + $0x878] sm:$0xff]
    %v3162 = vld [vmem:[#allocation12 + $0x880] sm:$0xff]
    %v3163 = vld [vmem:[#allocation12 + $0x888] sm:$0xff]
    %v3164 = vld [vmem:[#allocation12 + $0x890] sm:$0xff]
    %v3165 = vld [vmem:[#allocation12 + $0x898] sm:$0xff]
    %v3166 = vld [vmem:[#allocation12 + $0x8a0] sm:$0xff]
    %v3167 = vld [vmem:[#allocation12 + $0x8a8] sm:$0xff]
    %v3168 = vld [vmem:[#allocation12 + $0x8b0] sm:$0xff]
    %v3169 = vld [vmem:[#allocation12 + $0x8b8] sm:$0xff]
    %v3170 = vld [vmem:[#allocation12 + $0x8c0] sm:$0xff]
    %v3171 = vld [vmem:[#allocation12 + $0x8c8] sm:$0xff]
    %v3172 = vld [vmem:[#allocation12 + $0x8d0] sm:$0xff]
    %v3173 = vld [vmem:[#allocation12 + $0x8d8] sm:$0xff]
    %v3174 = vld [vmem:[#allocation12 + $0x8e0] sm:$0xff]
    %v3175 = vld [vmem:[#allocation12 + $0x8e8] sm:$0xff]
    %v3176 = vld [vmem:[#allocation12 + $0x8f0] sm:$0xff]
    %v3177 = vld [vmem:[#allocation12 + $0x8f8] sm:$0xff]
    %v3178 = vld [vmem:[#allocation12 + $0x900] sm:$0xff]
    %v3179 = vld [vmem:[#allocation12 + $0x908] sm:$0xff]
    %v3180 = vld [vmem:[#allocation12 + $0x910] sm:$0xff]
    %v3181 = vld [vmem:[#allocation12 + $0x918] sm:$0xff]
    %v3182 = vld [vmem:[#allocation12 + $0x920] sm:$0xff]
    %v3183 = vld [vmem:[#allocation12 + $0x928] sm:$0xff]
    %v3184 = vld [vmem:[#allocation12 + $0x930] sm:$0xff]
    %v3185 = vld [vmem:[#allocation12 + $0x938] sm:$0xff]
    %v3186 = vld [vmem:[#allocation12 + $0x940] sm:$0xff]
    %v3187 = vld [vmem:[#allocation12 + $0x948] sm:$0xff]
    %v3188 = vld [vmem:[#allocation12 + $0x950] sm:$0xff]
    %v3189 = vld [vmem:[#allocation12 + $0x958] sm:$0xff]
    %v3190 = vld [vmem:[#allocation12 + $0x960] sm:$0xff]
    %v3191 = vld [vmem:[#allocation12 + $0x968] sm:$0xff]
    %v3192 = vld [vmem:[#allocation12 + $0x970] sm:$0xff]
    %v3193 = vld [vmem:[#allocation12 + $0x978] sm:$0xff]
    %v3194 = vld [vmem:[#allocation12 + $0x980] sm:$0xff]
    %v3195 = vld [vmem:[#allocation12 + $0x988] sm:$0xff]
    %v3196 = vld [vmem:[#allocation12 + $0x990] sm:$0xff]
    %v3197 = vld [vmem:[#allocation12 + $0x998] sm:$0xff]
    %v3198 = vld [vmem:[#allocation12 + $0x9a0] sm:$0xff]
    %v3199 = vld [vmem:[#allocation12 + $0x9a8] sm:$0xff]
    %v3200 = vld [vmem:[#allocation12 + $0x9b0] sm:$0xff]
    %v3201 = vld [vmem:[#allocation12 + $0x9b8] sm:$0xff]
    %v3202 = vld [vmem:[#allocation12 + $0x9c0] sm:$0xff]
    %v3203 = vld [vmem:[#allocation12 + $0x9c8] sm:$0xff]
    %v3204 = vld [vmem:[#allocation12 + $0x9d0] sm:$0xff]
    %v3205 = vld [vmem:[#allocation12 + $0x9d8] sm:$0xff]
    %v3206 = vld [vmem:[#allocation12 + $0x9e0] sm:$0xff]
    %v3207 = vld [vmem:[#allocation12 + $0x9e8] sm:$0xff]
    %v3208 = vld [vmem:[#allocation12 + $0x9f0] sm:$0xff]
    %v3209 = vld [vmem:[#allocation12 + $0x9f8] sm:$0xff]
    %v3210 = vld [vmem:[#allocation12 + $0xa00] sm:$0xff]
    %v3211 = vld [vmem:[#allocation12 + $0xa08] sm:$0xff]
    %v3212 = vld [vmem:[#allocation12 + $0xa10] sm:$0xff]
    %v3213 = vld [vmem:[#allocation12 + $0xa18] sm:$0xff]
    %v3214 = vld [vmem:[#allocation12 + $0xa20] sm:$0xff]
    %v3215 = vld [vmem:[#allocation12 + $0xa28] sm:$0xff]
    %v3216 = vld [vmem:[#allocation12 + $0xa30] sm:$0xff]
    %v3217 = vld [vmem:[#allocation12 + $0xa38] sm:$0xff]
    %v3218 = vld [vmem:[#allocation12 + $0xa40] sm:$0xff]
    %v3219 = vld [vmem:[#allocation12 + $0xa48] sm:$0xff]
    %v3220 = vld [vmem:[#allocation12 + $0xa50] sm:$0xff]
    %v3221 = vld [vmem:[#allocation12 + $0xa58] sm:$0xff]
    %v3222 = vld [vmem:[#allocation12 + $0xa60] sm:$0xff]
    %v3223 = vld [vmem:[#allocation12 + $0xa68] sm:$0xff]
    %v3224 = vld [vmem:[#allocation12 + $0xa70] sm:$0xff]
    %v3225 = vld [vmem:[#allocation12 + $0xa78] sm:$0xff]
    %v3226 = vld [vmem:[#allocation12 + $0xa80] sm:$0xff]
    %v3227 = vld [vmem:[#allocation12 + $0xa88] sm:$0xff]
    %v3228 = vld [vmem:[#allocation12 + $0xa90] sm:$0xff]
    %v3229 = vld [vmem:[#allocation12 + $0xa98] sm:$0xff]
    %v3230 = vld [vmem:[#allocation12 + $0xaa0] sm:$0xff]
    %v3231 = vld [vmem:[#allocation12 + $0xaa8] sm:$0xff]
    %v3232 = vld [vmem:[#allocation12 + $0xab0] sm:$0xff]
    %v3233 = vld [vmem:[#allocation12 + $0xab8] sm:$0xff]
    %v3234 = vld [vmem:[#allocation12 + $0xac0] sm:$0xff]
    %v3235 = vld [vmem:[#allocation12 + $0xac8] sm:$0xff]
    %v3236 = vld [vmem:[#allocation12 + $0xad0] sm:$0xff]
    %v3237 = vld [vmem:[#allocation12 + $0xad8] sm:$0xff]
    %v3238 = vld [vmem:[#allocation12 + $0xae0] sm:$0xff]
    %v3239 = vld [vmem:[#allocation12 + $0xae8] sm:$0xff]
    %v3240 = vld [vmem:[#allocation12 + $0xaf0] sm:$0xff]
    %v3241 = vld [vmem:[#allocation12 + $0xaf8] sm:$0xff]
    %v3242 = vld [vmem:[#allocation12 + $0xb00] sm:$0xff]
    %v3243 = vld [vmem:[#allocation12 + $0xb08] sm:$0xff]
    %v3244 = vld [vmem:[#allocation12 + $0xb10] sm:$0xff]
    %v3245 = vld [vmem:[#allocation12 + $0xb18] sm:$0xff]
    %v3246 = vld [vmem:[#allocation12 + $0xb20] sm:$0xff]
    %v3247 = vld [vmem:[#allocation12 + $0xb28] sm:$0xff]
    %v3248 = vld [vmem:[#allocation12 + $0xb30] sm:$0xff]
    %v3249 = vld [vmem:[#allocation12 + $0xb38] sm:$0xff]
    %v3250 = vld [vmem:[#allocation12 + $0xb40] sm:$0xff]
    %v3251 = vld [vmem:[#allocation12 + $0xb48] sm:$0xff]
    %v3252 = vld [vmem:[#allocation12 + $0xb50] sm:$0xff]
    %v3253 = vld [vmem:[#allocation12 + $0xb58] sm:$0xff]
    %v3254 = vld [vmem:[#allocation12 + $0xb60] sm:$0xff]
    %v3255 = vld [vmem:[#allocation12 + $0xb68] sm:$0xff]
    %v3256 = vld [vmem:[#allocation12 + $0xb70] sm:$0xff]
    %v3257 = vld [vmem:[#allocation12 + $0xb78] sm:$0xff]
    %v3258 = vld [vmem:[#allocation12 + $0xb80] sm:$0xff]
    %v3259 = vld [vmem:[#allocation12 + $0xb88] sm:$0xff]
    %v3260 = vld [vmem:[#allocation12 + $0xb90] sm:$0xff]
    %v3261 = vld [vmem:[#allocation12 + $0xb98] sm:$0xff]
    %v3262 = vld [vmem:[#allocation12 + $0xba0] sm:$0xff]
    %v3263 = vld [vmem:[#allocation12 + $0xba8] sm:$0xff]
    %v3264 = vld [vmem:[#allocation12 + $0xbb0] sm:$0xff]
    %v3265 = vld [vmem:[#allocation12 + $0xbb8] sm:$0xff]
    %v3266 = vld [vmem:[#allocation12 + $0xbc0] sm:$0xff]
    %v3267 = vld [vmem:[#allocation12 + $0xbc8] sm:$0xff]
    %v3268 = vld [vmem:[#allocation12 + $0xbd0] sm:$0xff]
    %v3269 = vld [vmem:[#allocation12 + $0xbd8] sm:$0xff]
    %v3270 = vld [vmem:[#allocation12 + $0xbe0] sm:$0xff]
    %v3271 = vld [vmem:[#allocation12 + $0xbe8] sm:$0xff]
    %v3272 = vld [vmem:[#allocation12 + $0xbf0] sm:$0xff]
    %v3273 = vld [vmem:[#allocation12 + $0xbf8] sm:$0xff]
    %vm3278 = vcmask 1043456
    %v3279 = vrot.slane %v3142, 4
    %v3280 = vrot.slane %v2443, 4
    %v3281 = vsel %vm3278, %v3279, %v3280
    %v3282 = vrot.slane %v3143, 4
    %v3283 = vrot.slane %v2444, 4
    %v3284 = vsel %vm3278, %v3282, %v3283
    %v3285 = vrot.slane %v2445, 4
    %v3286 = vsel %vm3278, %v3280, %v3285
    %v3287 = vrot.slane %v2446, 4
    %v3288 = vsel %vm3278, %v3283, %v3287
    %v3289 = vrot.slane %v2447, 4
    %v3290 = vsel %vm3278, %v3285, %v3289
    %v3291 = vrot.slane %v2448, 4
    %v3292 = vsel %vm3278, %v3287, %v3291
    %v3293 = vrot.slane %v2449, 4
    %v3294 = vsel %vm3278, %v3289, %v3293
    %v3295 = vrot.slane %v2450, 4
    %v3296 = vsel %vm3278, %v3291, %v3295
    %v3297 = vrot.slane %v2451, 4
    %v3298 = vsel %vm3278, %v3293, %v3297
    %v3299 = vrot.slane %v2452, 4
    %v3300 = vsel %vm3278, %v3295, %v3299
    %v3301 = vrot.slane %v2453, 4
    %v3302 = vsel %vm3278, %v3297, %v3301
    %v3303 = vrot.slane %v2454, 4
    %v3304 = vsel %vm3278, %v3299, %v3303
    %v3305 = vrot.slane %v2455, 4
    %v3306 = vsel %vm3278, %v3301, %v3305
    %v3307 = vrot.slane %v2456, 4
    %v3308 = vsel %vm3278, %v3303, %v3307
    %v3309 = vrot.slane %v2457, 4
    %v3310 = vsel %vm3278, %v3305, %v3309
    %v3311 = vrot.slane %v2458, 4
    %v3312 = vsel %vm3278, %v3307, %v3311
    %v3313 = vrot.slane %v3144, 4
    %v3314 = vsel %vm3278, %v3309, %v3313
    %v3315 = vrot.slane %v3145, 4
    %v3316 = vsel %vm3278, %v3311, %v3315
    %3335 = vmatprep.subr.mxu0 %v3207
    %3336 = vmatpush1.msra.mxu0 %v3206
    %3337 = vmatprep.subr.mxu0 %v3203
    %3338 = vmatpush1.msra.mxu0 %v3202
    %3339 = vmatprep.subr.mxu0 %v3199
    %3340 = vmatpush1.msra.mxu0 %v3198
    %3341 = vmatprep.subr.mxu0 %v3195
    %3342 = vmatpush1.msra.mxu0 %v3194
    %3343 = vmatprep.subr.mxu0 %v3191
    %3344 = vmatpush1.msra.mxu0 %v3190
    %3345 = vmatprep.subr.mxu0 %v3187
    %3346 = vmatpush1.msra.mxu0 %v3186
    %3347 = vmatprep.subr.mxu0 %v3183
    %3348 = vmatpush1.msra.mxu0 %v3182
    %3349 = vmatprep.subr.mxu0 %v3179
    %3350 = vmatpush1.msra.mxu0 %v3178
    %3351 = vmatprep.subr.mxu0 %v3175
    %3352 = vmatpush1.msra.mxu0 %v3174
    %3353 = vmatprep.subr.mxu0 %v3171
    %3354 = vmatpush1.msra.mxu0 %v3170
    %3355 = vmatprep.subr.mxu0 %v3167
    %3356 = vmatpush1.msra.mxu0 %v3166
    %3357 = vmatprep.subr.mxu0 %v3163
    %3358 = vmatpush1.msra.mxu0 %v3162
    %3359 = vmatprep.subr.mxu0 %v3159
    %3360 = vmatpush1.msra.mxu0 %v3158
    %3361 = vmatprep.subr.mxu0 %v3155
    %3362 = vmatpush1.msra.mxu0 %v3154
    %3363 = vmatprep.subr.mxu0 %v3151
    %3364 = vmatpush1.msra.mxu0 %v3150
    %3365 = vmatprep.subr.mxu0 %v3147
    %3366 = vmatpush1.msra.mxu0 %v3146
    %3367 = vmatprep.subr.mxu0 %v3271
    %3368 = vmatpush2.msra.mxu0 %v3270
    %3369 = vmatprep.subr.mxu0 %v3267
    %3370 = vmatpush2.msra.mxu0 %v3266
    %3371 = vmatprep.subr.mxu0 %v3263
    %3372 = vmatpush2.msra.mxu0 %v3262
    %3373 = vmatprep.subr.mxu0 %v3259
    %3374 = vmatpush2.msra.mxu0 %v3258
    %3375 = vmatprep.subr.mxu0 %v3255
    %3376 = vmatpush2.msra.mxu0 %v3254
    %3377 = vmatprep.subr.mxu0 %v3251
    %3378 = vmatpush2.msra.mxu0 %v3250
    %3379 = vmatprep.subr.mxu0 %v3247
    %3380 = vmatpush2.msra.mxu0 %v3246
    %3381 = vmatprep.subr.mxu0 %v3243
    %3382 = vmatpush2.msra.mxu0 %v3242
    %3383 = vmatprep.subr.mxu0 %v3239
    %3384 = vmatpush2.msra.mxu0 %v3238
    %3385 = vmatprep.subr.mxu0 %v3235
    %3386 = vmatpush2.msra.mxu0 %v3234
    %3387 = vmatprep.subr.mxu0 %v3231
    %3388 = vmatpush2.msra.mxu0 %v3230
    %3389 = vmatprep.subr.mxu0 %v3227
    %3390 = vmatpush2.msra.mxu0 %v3226
    %3391 = vmatprep.subr.mxu0 %v3223
    %3392 = vmatpush2.msra.mxu0 %v3222
    %3393 = vmatprep.subr.mxu0 %v3219
    %3394 = vmatpush2.msra.mxu0 %v3218
    %3395 = vmatprep.subr.mxu0 %v3215
    %3396 = vmatpush2.msra.mxu0 %v3214
    %3397 = vmatprep.subr.mxu0 %v3211
    %3398 = vmatpush2.msra.mxu0 %v3210
    %3399 = vmatprep.mubr.f32.mxu0 %v3284
    %3400 = vmatmul.mubr.f32.gmra.mxu0 %v3281
    %v3401 = vpop.f32.mrf.mxu0
    %v3402 = vadd.f32 0.0, %v3401
    %v3403 = vpop.f32.mrf.mxu0
    %v3404 = vadd.f32 0.0, %v3403
    %3405 = vmatprep.mubr.f32.mxu0 %v3288
    %3406 = vmatmul.mubr.f32.gmra.mxu0 %v3286
    %v3407 = vpop.f32.mrf.mxu0
    %v3408 = vadd.f32 0.0, %v3407
    %v3409 = vpop.f32.mrf.mxu0
    %v3410 = vadd.f32 0.0, %v3409
    %3411 = vmatprep.mubr.f32.mxu0 %v3292
    %3412 = vmatmul.mubr.f32.gmra.mxu0 %v3290
    %v3413 = vpop.f32.mrf.mxu0
    %v3414 = vadd.f32 0.0, %v3413
    %v3415 = vpop.f32.mrf.mxu0
    %v3416 = vadd.f32 0.0, %v3415
    %3417 = vmatprep.mubr.f32.mxu0 %v3296
    %3418 = vmatmul.mubr.f32.gmra.mxu0 %v3294
    %v3419 = vpop.f32.mrf.mxu0
    %v3420 = vadd.f32 0.0, %v3419
    %v3421 = vpop.f32.mrf.mxu0
    %v3422 = vadd.f32 0.0, %v3421
    %3423 = vmatprep.mubr.f32.mxu0 %v3300
    %3424 = vmatmul.mubr.f32.gmra.mxu0 %v3298
    %v3425 = vpop.f32.mrf.mxu0
    %v3426 = vadd.f32 0.0, %v3425
    %v3427 = vpop.f32.mrf.mxu0
    %v3428 = vadd.f32 0.0, %v3427
    %3429 = vmatprep.mubr.f32.mxu0 %v3304
    %3430 = vmatmul.mubr.f32.gmra.mxu0 %v3302
    %v3431 = vpop.f32.mrf.mxu0
    %v3432 = vadd.f32 0.0, %v3431
    %v3433 = vpop.f32.mrf.mxu0
    %v3434 = vadd.f32 0.0, %v3433
    %3435 = vmatprep.mubr.f32.mxu0 %v3308
    %3436 = vmatmul.mubr.f32.gmra.mxu0 %v3306
    %v3437 = vpop.f32.mrf.mxu0
    %v3438 = vadd.f32 0.0, %v3437
    %v3439 = vpop.f32.mrf.mxu0
    %v3440 = vadd.f32 0.0, %v3439
    %3441 = vmatprep.mubr.f32.mxu0 %v3312
    %3442 = vmatmul.mubr.f32.gmra.mxu0 %v3310
    %v3443 = vpop.f32.mrf.mxu0
    %v3444 = vadd.f32 0.0, %v3443
    %v3445 = vpop.f32.mrf.mxu0
    %v3446 = vadd.f32 0.0, %v3445
    %3447 = vmatprep.mubr.f32.mxu0 %v3316
    %3448 = vmatmul.mubr.f32.gmra.mxu0 %v3314
    %v3449 = vpop.f32.mrf.mxu0
    %v3450 = vadd.f32 0.0, %v3449
    %v3451 = vpop.f32.mrf.mxu0
    %v3452 = vadd.f32 0.0, %v3451
    %3453 = vdwg.mxu0
    %3454 = vmatprep.subr.mxu0 %v3209
    %3455 = vmatpush1.msra.mxu0 %v3208
    %3456 = vmatprep.subr.mxu0 %v3205
    %3457 = vmatpush1.msra.mxu0 %v3204
    %3458 = vmatprep.subr.mxu0 %v3201
    %3459 = vmatpush1.msra.mxu0 %v3200
    %3460 = vmatprep.subr.mxu0 %v3197
    %3461 = vmatpush1.msra.mxu0 %v3196
    %3462 = vmatprep.subr.mxu0 %v3193
    %3463 = vmatpush1.msra.mxu0 %v3192
    %3464 = vmatprep.subr.mxu0 %v3189
    %3465 = vmatpush1.msra.mxu0 %v3188
    %3466 = vmatprep.subr.mxu0 %v3185
    %3467 = vmatpush1.msra.mxu0 %v3184
    %3468 = vmatprep.subr.mxu0 %v3181
    %3469 = vmatpush1.msra.mxu0 %v3180
    %3470 = vmatprep.subr.mxu0 %v3177
    %3471 = vmatpush1.msra.mxu0 %v3176
    %3472 = vmatprep.subr.mxu0 %v3173
    %3473 = vmatpush1.msra.mxu0 %v3172
    %3474 = vmatprep.subr.mxu0 %v3169
    %3475 = vmatpush1.msra.mxu0 %v3168
    %3476 = vmatprep.subr.mxu0 %v3165
    %3477 = vmatpush1.msra.mxu0 %v3164
    %3478 = vmatprep.subr.mxu0 %v3161
    %3479 = vmatpush1.msra.mxu0 %v3160
    %3480 = vmatprep.subr.mxu0 %v3157
    %3481 = vmatpush1.msra.mxu0 %v3156
    %3482 = vmatprep.subr.mxu0 %v3153
    %3483 = vmatpush1.msra.mxu0 %v3152
    %3484 = vmatprep.subr.mxu0 %v3149
    %3485 = vmatpush1.msra.mxu0 %v3148
    %3486 = vmatprep.subr.mxu0 %v3273
    %3487 = vmatpush2.msra.mxu0 %v3272
    %3488 = vmatprep.subr.mxu0 %v3269
    %3489 = vmatpush2.msra.mxu0 %v3268
    %3490 = vmatprep.subr.mxu0 %v3265
    %3491 = vmatpush2.msra.mxu0 %v3264
    %3492 = vmatprep.subr.mxu0 %v3261
    %3493 = vmatpush2.msra.mxu0 %v3260
    %3494 = vmatprep.subr.mxu0 %v3257
    %3495 = vmatpush2.msra.mxu0 %v3256
    %3496 = vmatprep.subr.mxu0 %v3253
    %3497 = vmatpush2.msra.mxu0 %v3252
    %3498 = vmatprep.subr.mxu0 %v3249
    %3499 = vmatpush2.msra.mxu0 %v3248
    %3500 = vmatprep.subr.mxu0 %v3245
    %3501 = vmatpush2.msra.mxu0 %v3244
    %3502 = vmatprep.subr.mxu0 %v3241
    %3503 = vmatpush2.msra.mxu0 %v3240
    %3504 = vmatprep.subr.mxu0 %v3237
    %3505 = vmatpush2.msra.mxu0 %v3236
    %3506 = vmatprep.subr.mxu0 %v3233
    %3507 = vmatpush2.msra.mxu0 %v3232
    %3508 = vmatprep.subr.mxu0 %v3229
    %3509 = vmatpush2.msra.mxu0 %v3228
    %3510 = vmatprep.subr.mxu0 %v3225
    %3511 = vmatpush2.msra.mxu0 %v3224
    %3512 = vmatprep.subr.mxu0 %v3221
    %3513 = vmatpush2.msra.mxu0 %v3220
    %3514 = vmatprep.subr.mxu0 %v3217
    %3515 = vmatpush2.msra.mxu0 %v3216
    %3516 = vmatprep.subr.mxu0 %v3213
    %3517 = vmatpush2.msra.mxu0 %v3212
    %3518 = vmatprep.mubr.f32.mxu0 %v3284
    %3519 = vmatmul.mubr.f32.gmra.mxu0 %v3281
    %v3520 = vpop.f32.mrf.mxu0
    %v3521 = vadd.f32 0.0, %v3520
    %v3522 = vpop.f32.mrf.mxu0
    %v3523 = vadd.f32 0.0, %v3522
    %3524 = vmatprep.mubr.f32.mxu0 %v3288
    %3525 = vmatmul.mubr.f32.gmra.mxu0 %v3286
    %v3526 = vpop.f32.mrf.mxu0
    %v3527 = vadd.f32 0.0, %v3526
    %v3528 = vpop.f32.mrf.mxu0
    %v3529 = vadd.f32 0.0, %v3528
    %3530 = vmatprep.mubr.f32.mxu0 %v3292
    %3531 = vmatmul.mubr.f32.gmra.mxu0 %v3290
    %v3532 = vpop.f32.mrf.mxu0
    %v3533 = vadd.f32 0.0, %v3532
    %v3534 = vpop.f32.mrf.mxu0
    %v3535 = vadd.f32 0.0, %v3534
    %3536 = vmatprep.mubr.f32.mxu0 %v3296
    %3537 = vmatmul.mubr.f32.gmra.mxu0 %v3294
    %v3538 = vpop.f32.mrf.mxu0
    %v3539 = vadd.f32 0.0, %v3538
    %v3540 = vpop.f32.mrf.mxu0
    %v3541 = vadd.f32 0.0, %v3540
    %3542 = vmatprep.mubr.f32.mxu0 %v3300
    %3543 = vmatmul.mubr.f32.gmra.mxu0 %v3298
    %v3544 = vpop.f32.mrf.mxu0
    %v3545 = vadd.f32 0.0, %v3544
    %v3546 = vpop.f32.mrf.mxu0
    %v3547 = vadd.f32 0.0, %v3546
    %3548 = vmatprep.mubr.f32.mxu0 %v3304
    %3549 = vmatmul.mubr.f32.gmra.mxu0 %v3302
    %v3550 = vpop.f32.mrf.mxu0
    %v3551 = vadd.f32 0.0, %v3550
    %v3552 = vpop.f32.mrf.mxu0
    %v3553 = vadd.f32 0.0, %v3552
    %3554 = vmatprep.mubr.f32.mxu0 %v3308
    %3555 = vmatmul.mubr.f32.gmra.mxu0 %v3306
    %v3556 = vpop.f32.mrf.mxu0
    %v3557 = vadd.f32 0.0, %v3556
    %v3558 = vpop.f32.mrf.mxu0
    %v3559 = vadd.f32 0.0, %v3558
    %3560 = vmatprep.mubr.f32.mxu0 %v3312
    %3561 = vmatmul.mubr.f32.gmra.mxu0 %v3310
    %v3562 = vpop.f32.mrf.mxu0
    %v3563 = vadd.f32 0.0, %v3562
    %v3564 = vpop.f32.mrf.mxu0
    %v3565 = vadd.f32 0.0, %v3564
    %3566 = vmatprep.mubr.f32.mxu0 %v3316
    %3567 = vmatmul.mubr.f32.gmra.mxu0 %v3314
    %v3568 = vpop.f32.mrf.mxu0
    %v3569 = vadd.f32 0.0, %v3568
    %v3570 = vpop.f32.mrf.mxu0
    %v3571 = vadd.f32 0.0, %v3570
    %3572 = vdwg.mxu0
    %v3573 = vadd.f32 %v2971, %v3402
    %v3574 = vadd.f32 %v2973, %v3404
    %v3575 = vadd.f32 %v3090, %v3521
    %v3576 = vadd.f32 %v3092, %v3523
    %v3577 = vadd.f32 %v2977, %v3408
    %v3578 = vadd.f32 %v2979, %v3410
    %v3579 = vadd.f32 %v3096, %v3527
    %v3580 = vadd.f32 %v3098, %v3529
    %v3581 = vadd.f32 %v2983, %v3414
    %v3582 = vadd.f32 %v2985, %v3416
    %v3583 = vadd.f32 %v3102, %v3533
    %v3584 = vadd.f32 %v3104, %v3535
    %v3585 = vadd.f32 %v2989, %v3420
    %v3586 = vadd.f32 %v2991, %v3422
    %v3587 = vadd.f32 %v3108, %v3539
    %v3588 = vadd.f32 %v3110, %v3541
    %v3589 = vadd.f32 %v2995, %v3426
    %v3590 = vadd.f32 %v2997, %v3428
    %v3591 = vadd.f32 %v3114, %v3545
    %v3592 = vadd.f32 %v3116, %v3547
    %v3593 = vadd.f32 %v3001, %v3432
    %v3594 = vadd.f32 %v3003, %v3434
    %v3595 = vadd.f32 %v3120, %v3551
    %v3596 = vadd.f32 %v3122, %v3553
    %v3597 = vadd.f32 %v3007, %v3438
    %v3598 = vadd.f32 %v3009, %v3440
    %v3599 = vadd.f32 %v3126, %v3557
    %v3600 = vadd.f32 %v3128, %v3559
    %v3601 = vadd.f32 %v3013, %v3444
    %v3602 = vadd.f32 %v3015, %v3446
    %v3603 = vadd.f32 %v3132, %v3563
    %v3604 = vadd.f32 %v3134, %v3565
    %v3605 = vadd.f32 %v3019, %v3450
    %v3606 = vadd.f32 %v3021, %v3452
    %v3607 = vadd.f32 %v3138, %v3569
    %v3608 = vadd.f32 %v3140, %v3571
    %v3609 = vld [vmem:[#allocation3] sm:$0xc0]
    %v3610 = vld [vmem:[#allocation3 + $0x8] sm:$0xc0]
    %v3611 = vld [vmem:[#allocation3 + $0x90] sm:$0x3f]
    %v3612 = vld [vmem:[#allocation3 + $0x98] sm:$0x3f]
    %v3613 = vld [vmem:[#allocation12 + $0xc00] sm:$0xff]
    %v3614 = vld [vmem:[#allocation12 + $0xc08] sm:$0xff]
    %v3615 = vld [vmem:[#allocation12 + $0xc10] sm:$0xff]
    %v3616 = vld [vmem:[#allocation12 + $0xc18] sm:$0xff]
    %v3617 = vld [vmem:[#allocation12 + $0xc20] sm:$0xff]
    %v3618 = vld [vmem:[#allocation12 + $0xc28] sm:$0xff]
    %v3619 = vld [vmem:[#allocation12 + $0xc30] sm:$0xff]
    %v3620 = vld [vmem:[#allocation12 + $0xc38] sm:$0xff]
    %v3621 = vld [vmem:[#allocation12 + $0xc40] sm:$0xff]
    %v3622 = vld [vmem:[#allocation12 + $0xc48] sm:$0xff]
    %v3623 = vld [vmem:[#allocation12 + $0xc50] sm:$0xff]
    %v3624 = vld [vmem:[#allocation12 + $0xc58] sm:$0xff]
    %v3625 = vld [vmem:[#allocation12 + $0xc60] sm:$0xff]
    %v3626 = vld [vmem:[#allocation12 + $0xc68] sm:$0xff]
    %v3627 = vld [vmem:[#allocation12 + $0xc70] sm:$0xff]
    %v3628 = vld [vmem:[#allocation12 + $0xc78] sm:$0xff]
    %v3629 = vld [vmem:[#allocation12 + $0xc80] sm:$0xff]
    %v3630 = vld [vmem:[#allocation12 + $0xc88] sm:$0xff]
    %v3631 = vld [vmem:[#allocation12 + $0xc90] sm:$0xff]
    %v3632 = vld [vmem:[#allocation12 + $0xc98] sm:$0xff]
    %v3633 = vld [vmem:[#allocation12 + $0xca0] sm:$0xff]
    %v3634 = vld [vmem:[#allocation12 + $0xca8] sm:$0xff]
    %v3635 = vld [vmem:[#allocation12 + $0xcb0] sm:$0xff]
    %v3636 = vld [vmem:[#allocation12 + $0xcb8] sm:$0xff]
    %v3637 = vld [vmem:[#allocation12 + $0xcc0] sm:$0xff]
    %v3638 = vld [vmem:[#allocation12 + $0xcc8] sm:$0xff]
    %v3639 = vld [vmem:[#allocation12 + $0xcd0] sm:$0xff]
    %v3640 = vld [vmem:[#allocation12 + $0xcd8] sm:$0xff]
    %v3641 = vld [vmem:[#allocation12 + $0xce0] sm:$0xff]
    %v3642 = vld [vmem:[#allocation12 + $0xce8] sm:$0xff]
    %v3643 = vld [vmem:[#allocation12 + $0xcf0] sm:$0xff]
    %v3644 = vld [vmem:[#allocation12 + $0xcf8] sm:$0xff]
    %v3645 = vld [vmem:[#allocation12 + $0xd00] sm:$0xff]
    %v3646 = vld [vmem:[#allocation12 + $0xd08] sm:$0xff]
    %v3647 = vld [vmem:[#allocation12 + $0xd10] sm:$0xff]
    %v3648 = vld [vmem:[#allocation12 + $0xd18] sm:$0xff]
    %v3649 = vld [vmem:[#allocation12 + $0xd20] sm:$0xff]
    %v3650 = vld [vmem:[#allocation12 + $0xd28] sm:$0xff]
    %v3651 = vld [vmem:[#allocation12 + $0xd30] sm:$0xff]
    %v3652 = vld [vmem:[#allocation12 + $0xd38] sm:$0xff]
    %v3653 = vld [vmem:[#allocation12 + $0xd40] sm:$0xff]
    %v3654 = vld [vmem:[#allocation12 + $0xd48] sm:$0xff]
    %v3655 = vld [vmem:[#allocation12 + $0xd50] sm:$0xff]
    %v3656 = vld [vmem:[#allocation12 + $0xd58] sm:$0xff]
    %v3657 = vld [vmem:[#allocation12 + $0xd60] sm:$0xff]
    %v3658 = vld [vmem:[#allocation12 + $0xd68] sm:$0xff]
    %v3659 = vld [vmem:[#allocation12 + $0xd70] sm:$0xff]
    %v3660 = vld [vmem:[#allocation12 + $0xd78] sm:$0xff]
    %v3661 = vld [vmem:[#allocation12 + $0xd80] sm:$0xff]
    %v3662 = vld [vmem:[#allocation12 + $0xd88] sm:$0xff]
    %v3663 = vld [vmem:[#allocation12 + $0xd90] sm:$0xff]
    %v3664 = vld [vmem:[#allocation12 + $0xd98] sm:$0xff]
    %v3665 = vld [vmem:[#allocation12 + $0xda0] sm:$0xff]
    %v3666 = vld [vmem:[#allocation12 + $0xda8] sm:$0xff]
    %v3667 = vld [vmem:[#allocation12 + $0xdb0] sm:$0xff]
    %v3668 = vld [vmem:[#allocation12 + $0xdb8] sm:$0xff]
    %v3669 = vld [vmem:[#allocation12 + $0xdc0] sm:$0xff]
    %v3670 = vld [vmem:[#allocation12 + $0xdc8] sm:$0xff]
    %v3671 = vld [vmem:[#allocation12 + $0xdd0] sm:$0xff]
    %v3672 = vld [vmem:[#allocation12 + $0xdd8] sm:$0xff]
    %v3673 = vld [vmem:[#allocation12 + $0xde0] sm:$0xff]
    %v3674 = vld [vmem:[#allocation12 + $0xde8] sm:$0xff]
    %v3675 = vld [vmem:[#allocation12 + $0xdf0] sm:$0xff]
    %v3676 = vld [vmem:[#allocation12 + $0xdf8] sm:$0xff]
    %v3677 = vld [vmem:[#allocation12 + $0xe00] sm:$0xff]
    %v3678 = vld [vmem:[#allocation12 + $0xe08] sm:$0xff]
    %v3679 = vld [vmem:[#allocation12 + $0xe10] sm:$0xff]
    %v3680 = vld [vmem:[#allocation12 + $0xe18] sm:$0xff]
    %v3681 = vld [vmem:[#allocation12 + $0xe20] sm:$0xff]
    %v3682 = vld [vmem:[#allocation12 + $0xe28] sm:$0xff]
    %v3683 = vld [vmem:[#allocation12 + $0xe30] sm:$0xff]
    %v3684 = vld [vmem:[#allocation12 + $0xe38] sm:$0xff]
    %v3685 = vld [vmem:[#allocation12 + $0xe40] sm:$0xff]
    %v3686 = vld [vmem:[#allocation12 + $0xe48] sm:$0xff]
    %v3687 = vld [vmem:[#allocation12 + $0xe50] sm:$0xff]
    %v3688 = vld [vmem:[#allocation12 + $0xe58] sm:$0xff]
    %v3689 = vld [vmem:[#allocation12 + $0xe60] sm:$0xff]
    %v3690 = vld [vmem:[#allocation12 + $0xe68] sm:$0xff]
    %v3691 = vld [vmem:[#allocation12 + $0xe70] sm:$0xff]
    %v3692 = vld [vmem:[#allocation12 + $0xe78] sm:$0xff]
    %v3693 = vld [vmem:[#allocation12 + $0xe80] sm:$0xff]
    %v3694 = vld [vmem:[#allocation12 + $0xe88] sm:$0xff]
    %v3695 = vld [vmem:[#allocation12 + $0xe90] sm:$0xff]
    %v3696 = vld [vmem:[#allocation12 + $0xe98] sm:$0xff]
    %v3697 = vld [vmem:[#allocation12 + $0xea0] sm:$0xff]
    %v3698 = vld [vmem:[#allocation12 + $0xea8] sm:$0xff]
    %v3699 = vld [vmem:[#allocation12 + $0xeb0] sm:$0xff]
    %v3700 = vld [vmem:[#allocation12 + $0xeb8] sm:$0xff]
    %v3701 = vld [vmem:[#allocation12 + $0xec0] sm:$0xff]
    %v3702 = vld [vmem:[#allocation12 + $0xec8] sm:$0xff]
    %v3703 = vld [vmem:[#allocation12 + $0xed0] sm:$0xff]
    %v3704 = vld [vmem:[#allocation12 + $0xed8] sm:$0xff]
    %v3705 = vld [vmem:[#allocation12 + $0xee0] sm:$0xff]
    %v3706 = vld [vmem:[#allocation12 + $0xee8] sm:$0xff]
    %v3707 = vld [vmem:[#allocation12 + $0xef0] sm:$0xff]
    %v3708 = vld [vmem:[#allocation12 + $0xef8] sm:$0xff]
    %v3709 = vld [vmem:[#allocation12 + $0xf00] sm:$0xff]
    %v3710 = vld [vmem:[#allocation12 + $0xf08] sm:$0xff]
    %v3711 = vld [vmem:[#allocation12 + $0xf10] sm:$0xff]
    %v3712 = vld [vmem:[#allocation12 + $0xf18] sm:$0xff]
    %v3713 = vld [vmem:[#allocation12 + $0xf20] sm:$0xff]
    %v3714 = vld [vmem:[#allocation12 + $0xf28] sm:$0xff]
    %v3715 = vld [vmem:[#allocation12 + $0xf30] sm:$0xff]
    %v3716 = vld [vmem:[#allocation12 + $0xf38] sm:$0xff]
    %v3717 = vld [vmem:[#allocation12 + $0xf40] sm:$0xff]
    %v3718 = vld [vmem:[#allocation12 + $0xf48] sm:$0xff]
    %v3719 = vld [vmem:[#allocation12 + $0xf50] sm:$0xff]
    %v3720 = vld [vmem:[#allocation12 + $0xf58] sm:$0xff]
    %v3721 = vld [vmem:[#allocation12 + $0xf60] sm:$0xff]
    %v3722 = vld [vmem:[#allocation12 + $0xf68] sm:$0xff]
    %v3723 = vld [vmem:[#allocation12 + $0xf70] sm:$0xff]
    %v3724 = vld [vmem:[#allocation12 + $0xf78] sm:$0xff]
    %v3725 = vld [vmem:[#allocation12 + $0xf80] sm:$0xff]
    %v3726 = vld [vmem:[#allocation12 + $0xf88] sm:$0xff]
    %v3727 = vld [vmem:[#allocation12 + $0xf90] sm:$0xff]
    %v3728 = vld [vmem:[#allocation12 + $0xf98] sm:$0xff]
    %v3729 = vld [vmem:[#allocation12 + $0xfa0] sm:$0xff]
    %v3730 = vld [vmem:[#allocation12 + $0xfa8] sm:$0xff]
    %v3731 = vld [vmem:[#allocation12 + $0xfb0] sm:$0xff]
    %v3732 = vld [vmem:[#allocation12 + $0xfb8] sm:$0xff]
    %v3733 = vld [vmem:[#allocation12 + $0xfc0] sm:$0xff]
    %v3734 = vld [vmem:[#allocation12 + $0xfc8] sm:$0xff]
    %v3735 = vld [vmem:[#allocation12 + $0xfd0] sm:$0xff]
    %v3736 = vld [vmem:[#allocation12 + $0xfd8] sm:$0xff]
    %v3737 = vld [vmem:[#allocation12 + $0xfe0] sm:$0xff]
    %v3738 = vld [vmem:[#allocation12 + $0xfe8] sm:$0xff]
    %v3739 = vld [vmem:[#allocation12 + $0xff0] sm:$0xff]
    %v3740 = vld [vmem:[#allocation12 + $0xff8] sm:$0xff]
    %vm3745 = vcmask 1041408
    %v3746 = vrot.slane %v3609, 6
    %v3747 = vrot.slane %v2443, 6
    %v3748 = vsel %vm3745, %v3746, %v3747
    %v3749 = vrot.slane %v3610, 6
    %v3750 = vrot.slane %v2444, 6
    %v3751 = vsel %vm3745, %v3749, %v3750
    %v3752 = vrot.slane %v2445, 6
    %v3753 = vsel %vm3745, %v3747, %v3752
    %v3754 = vrot.slane %v2446, 6
    %v3755 = vsel %vm3745, %v3750, %v3754
    %v3756 = vrot.slane %v2447, 6
    %v3757 = vsel %vm3745, %v3752, %v3756
    %v3758 = vrot.slane %v2448, 6
    %v3759 = vsel %vm3745, %v3754, %v3758
    %v3760 = vrot.slane %v2449, 6
    %v3761 = vsel %vm3745, %v3756, %v3760
    %v3762 = vrot.slane %v2450, 6
    %v3763 = vsel %vm3745, %v3758, %v3762
    %v3764 = vrot.slane %v2451, 6
    %v3765 = vsel %vm3745, %v3760, %v3764
    %v3766 = vrot.slane %v2452, 6
    %v3767 = vsel %vm3745, %v3762, %v3766
    %v3768 = vrot.slane %v2453, 6
    %v3769 = vsel %vm3745, %v3764, %v3768
    %v3770 = vrot.slane %v2454, 6
    %v3771 = vsel %vm3745, %v3766, %v3770
    %v3772 = vrot.slane %v2455, 6
    %v3773 = vsel %vm3745, %v3768, %v3772
    %v3774 = vrot.slane %v2456, 6
    %v3775 = vsel %vm3745, %v3770, %v3774
    %v3776 = vrot.slane %v2457, 6
    %v3777 = vsel %vm3745, %v3772, %v3776
    %v3778 = vrot.slane %v2458, 6
    %v3779 = vsel %vm3745, %v3774, %v3778
    %v3780 = vrot.slane %v3611, 6
    %v3781 = vsel %vm3745, %v3776, %v3780
    %v3782 = vrot.slane %v3612, 6
    %v3783 = vsel %vm3745, %v3778, %v3782
    %3802 = vmatprep.subr.mxu0 %v3674
    %3803 = vmatpush1.msra.mxu0 %v3673
    %3804 = vmatprep.subr.mxu0 %v3670
    %3805 = vmatpush1.msra.mxu0 %v3669
    %3806 = vmatprep.subr.mxu0 %v3666
    %3807 = vmatpush1.msra.mxu0 %v3665
    %3808 = vmatprep.subr.mxu0 %v3662
    %3809 = vmatpush1.msra.mxu0 %v3661
    %3810 = vmatprep.subr.mxu0 %v3658
    %3811 = vmatpush1.msra.mxu0 %v3657
    %3812 = vmatprep.subr.mxu0 %v3654
    %3813 = vmatpush1.msra.mxu0 %v3653
    %3814 = vmatprep.subr.mxu0 %v3650
    %3815 = vmatpush1.msra.mxu0 %v3649
    %3816 = vmatprep.subr.mxu0 %v3646
    %3817 = vmatpush1.msra.mxu0 %v3645
    %3818 = vmatprep.subr.mxu0 %v3642
    %3819 = vmatpush1.msra.mxu0 %v3641
    %3820 = vmatprep.subr.mxu0 %v3638
    %3821 = vmatpush1.msra.mxu0 %v3637
    %3822 = vmatprep.subr.mxu0 %v3634
    %3823 = vmatpush1.msra.mxu0 %v3633
    %3824 = vmatprep.subr.mxu0 %v3630
    %3825 = vmatpush1.msra.mxu0 %v3629
    %3826 = vmatprep.subr.mxu0 %v3626
    %3827 = vmatpush1.msra.mxu0 %v3625
    %3828 = vmatprep.subr.mxu0 %v3622
    %3829 = vmatpush1.msra.mxu0 %v3621
    %3830 = vmatprep.subr.mxu0 %v3618
    %3831 = vmatpush1.msra.mxu0 %v3617
    %3832 = vmatprep.subr.mxu0 %v3614
    %3833 = vmatpush1.msra.mxu0 %v3613
    %3834 = vmatprep.subr.mxu0 %v3738
    %3835 = vmatpush2.msra.mxu0 %v3737
    %3836 = vmatprep.subr.mxu0 %v3734
    %3837 = vmatpush2.msra.mxu0 %v3733
    %3838 = vmatprep.subr.mxu0 %v3730
    %3839 = vmatpush2.msra.mxu0 %v3729
    %3840 = vmatprep.subr.mxu0 %v3726
    %3841 = vmatpush2.msra.mxu0 %v3725
    %3842 = vmatprep.subr.mxu0 %v3722
    %3843 = vmatpush2.msra.mxu0 %v3721
    %3844 = vmatprep.subr.mxu0 %v3718
    %3845 = vmatpush2.msra.mxu0 %v3717
    %3846 = vmatprep.subr.mxu0 %v3714
    %3847 = vmatpush2.msra.mxu0 %v3713
    %3848 = vmatprep.subr.mxu0 %v3710
    %3849 = vmatpush2.msra.mxu0 %v3709
    %3850 = vmatprep.subr.mxu0 %v3706
    %3851 = vmatpush2.msra.mxu0 %v3705
    %3852 = vmatprep.subr.mxu0 %v3702
    %3853 = vmatpush2.msra.mxu0 %v3701
    %3854 = vmatprep.subr.mxu0 %v3698
    %3855 = vmatpush2.msra.mxu0 %v3697
    %3856 = vmatprep.subr.mxu0 %v3694
    %3857 = vmatpush2.msra.mxu0 %v3693
    %3858 = vmatprep.subr.mxu0 %v3690
    %3859 = vmatpush2.msra.mxu0 %v3689
    %3860 = vmatprep.subr.mxu0 %v3686
    %3861 = vmatpush2.msra.mxu0 %v3685
    %3862 = vmatprep.subr.mxu0 %v3682
    %3863 = vmatpush2.msra.mxu0 %v3681
    %3864 = vmatprep.subr.mxu0 %v3678
    %3865 = vmatpush2.msra.mxu0 %v3677
    %3866 = vmatprep.mubr.f32.mxu0 %v3751
    %3867 = vmatmul.mubr.f32.gmra.mxu0 %v3748
    %v3868 = vpop.f32.mrf.mxu0
    %v3869 = vadd.f32 0.0, %v3868
    %v3870 = vpop.f32.mrf.mxu0
    %v3871 = vadd.f32 0.0, %v3870
    %3872 = vmatprep.mubr.f32.mxu0 %v3755
    %3873 = vmatmul.mubr.f32.gmra.mxu0 %v3753
    %v3874 = vpop.f32.mrf.mxu0
    %v3875 = vadd.f32 0.0, %v3874
    %v3876 = vpop.f32.mrf.mxu0
    %v3877 = vadd.f32 0.0, %v3876
    %3878 = vmatprep.mubr.f32.mxu0 %v3759
    %3879 = vmatmul.mubr.f32.gmra.mxu0 %v3757
    %v3880 = vpop.f32.mrf.mxu0
    %v3881 = vadd.f32 0.0, %v3880
    %v3882 = vpop.f32.mrf.mxu0
    %v3883 = vadd.f32 0.0, %v3882
    %3884 = vmatprep.mubr.f32.mxu0 %v3763
    %3885 = vmatmul.mubr.f32.gmra.mxu0 %v3761
    %v3886 = vpop.f32.mrf.mxu0
    %v3887 = vadd.f32 0.0, %v3886
    %v3888 = vpop.f32.mrf.mxu0
    %v3889 = vadd.f32 0.0, %v3888
    %3890 = vmatprep.mubr.f32.mxu0 %v3767
    %3891 = vmatmul.mubr.f32.gmra.mxu0 %v3765
    %v3892 = vpop.f32.mrf.mxu0
    %v3893 = vadd.f32 0.0, %v3892
    %v3894 = vpop.f32.mrf.mxu0
    %v3895 = vadd.f32 0.0, %v3894
    %3896 = vmatprep.mubr.f32.mxu0 %v3771
    %3897 = vmatmul.mubr.f32.gmra.mxu0 %v3769
    %v3898 = vpop.f32.mrf.mxu0
    %v3899 = vadd.f32 0.0, %v3898
    %v3900 = vpop.f32.mrf.mxu0
    %v3901 = vadd.f32 0.0, %v3900
    %3902 = vmatprep.mubr.f32.mxu0 %v3775
    %3903 = vmatmul.mubr.f32.gmra.mxu0 %v3773
    %v3904 = vpop.f32.mrf.mxu0
    %v3905 = vadd.f32 0.0, %v3904
    %v3906 = vpop.f32.mrf.mxu0
    %v3907 = vadd.f32 0.0, %v3906
    %3908 = vmatprep.mubr.f32.mxu0 %v3779
    %3909 = vmatmul.mubr.f32.gmra.mxu0 %v3777
    %v3910 = vpop.f32.mrf.mxu0
    %v3911 = vadd.f32 0.0, %v3910
    %v3912 = vpop.f32.mrf.mxu0
    %v3913 = vadd.f32 0.0, %v3912
    %3914 = vmatprep.mubr.f32.mxu0 %v3783
    %3915 = vmatmul.mubr.f32.gmra.mxu0 %v3781
    %v3916 = vpop.f32.mrf.mxu0
    %v3917 = vadd.f32 0.0, %v3916
    %v3918 = vpop.f32.mrf.mxu0
    %v3919 = vadd.f32 0.0, %v3918
    %3920 = vdwg.mxu0
    %3921 = vmatprep.subr.mxu0 %v3676
    %3922 = vmatpush1.msra.mxu0 %v3675
    %3923 = vmatprep.subr.mxu0 %v3672
    %3924 = vmatpush1.msra.mxu0 %v3671
    %3925 = vmatprep.subr.mxu0 %v3668
    %3926 = vmatpush1.msra.mxu0 %v3667
    %3927 = vmatprep.subr.mxu0 %v3664
    %3928 = vmatpush1.msra.mxu0 %v3663
    %3929 = vmatprep.subr.mxu0 %v3660
    %3930 = vmatpush1.msra.mxu0 %v3659
    %3931 = vmatprep.subr.mxu0 %v3656
    %3932 = vmatpush1.msra.mxu0 %v3655
    %3933 = vmatprep.subr.mxu0 %v3652
    %3934 = vmatpush1.msra.mxu0 %v3651
    %3935 = vmatprep.subr.mxu0 %v3648
    %3936 = vmatpush1.msra.mxu0 %v3647
    %3937 = vmatprep.subr.mxu0 %v3644
    %3938 = vmatpush1.msra.mxu0 %v3643
    %3939 = vmatprep.subr.mxu0 %v3640
    %3940 = vmatpush1.msra.mxu0 %v3639
    %3941 = vmatprep.subr.mxu0 %v3636
    %3942 = vmatpush1.msra.mxu0 %v3635
    %3943 = vmatprep.subr.mxu0 %v3632
    %3944 = vmatpush1.msra.mxu0 %v3631
    %3945 = vmatprep.subr.mxu0 %v3628
    %3946 = vmatpush1.msra.mxu0 %v3627
    %3947 = vmatprep.subr.mxu0 %v3624
    %3948 = vmatpush1.msra.mxu0 %v3623
    %3949 = vmatprep.subr.mxu0 %v3620
    %3950 = vmatpush1.msra.mxu0 %v3619
    %3951 = vmatprep.subr.mxu0 %v3616
    %3952 = vmatpush1.msra.mxu0 %v3615
    %3953 = vmatprep.subr.mxu0 %v3740
    %3954 = vmatpush2.msra.mxu0 %v3739
    %3955 = vmatprep.subr.mxu0 %v3736
    %3956 = vmatpush2.msra.mxu0 %v3735
    %3957 = vmatprep.subr.mxu0 %v3732
    %3958 = vmatpush2.msra.mxu0 %v3731
    %3959 = vmatprep.subr.mxu0 %v3728
    %3960 = vmatpush2.msra.mxu0 %v3727
    %3961 = vmatprep.subr.mxu0 %v3724
    %3962 = vmatpush2.msra.mxu0 %v3723
    %3963 = vmatprep.subr.mxu0 %v3720
    %3964 = vmatpush2.msra.mxu0 %v3719
    %3965 = vmatprep.subr.mxu0 %v3716
    %3966 = vmatpush2.msra.mxu0 %v3715
    %3967 = vmatprep.subr.mxu0 %v3712
    %3968 = vmatpush2.msra.mxu0 %v3711
    %3969 = vmatprep.subr.mxu0 %v3708
    %3970 = vmatpush2.msra.mxu0 %v3707
    %3971 = vmatprep.subr.mxu0 %v3704
    %3972 = vmatpush2.msra.mxu0 %v3703
    %3973 = vmatprep.subr.mxu0 %v3700
    %3974 = vmatpush2.msra.mxu0 %v3699
    %3975 = vmatprep.subr.mxu0 %v3696
    %3976 = vmatpush2.msra.mxu0 %v3695
    %3977 = vmatprep.subr.mxu0 %v3692
    %3978 = vmatpush2.msra.mxu0 %v3691
    %3979 = vmatprep.subr.mxu0 %v3688
    %3980 = vmatpush2.msra.mxu0 %v3687
    %3981 = vmatprep.subr.mxu0 %v3684
    %3982 = vmatpush2.msra.mxu0 %v3683
    %3983 = vmatprep.subr.mxu0 %v3680
    %3984 = vmatpush2.msra.mxu0 %v3679
    %3985 = vmatprep.mubr.f32.mxu0 %v3751
    %3986 = vmatmul.mubr.f32.gmra.mxu0 %v3748
    %v3987 = vpop.f32.mrf.mxu0
    %v3988 = vadd.f32 0.0, %v3987
    %v3989 = vpop.f32.mrf.mxu0
    %v3990 = vadd.f32 0.0, %v3989
    %3991 = vmatprep.mubr.f32.mxu0 %v3755
    %3992 = vmatmul.mubr.f32.gmra.mxu0 %v3753
    %v3993 = vpop.f32.mrf.mxu0
    %v3994 = vadd.f32 0.0, %v3993
    %v3995 = vpop.f32.mrf.mxu0
    %v3996 = vadd.f32 0.0, %v3995
    %3997 = vmatprep.mubr.f32.mxu0 %v3759
    %3998 = vmatmul.mubr.f32.gmra.mxu0 %v3757
    %v3999 = vpop.f32.mrf.mxu0
    %v4000 = vadd.f32 0.0, %v3999
    %v4001 = vpop.f32.mrf.mxu0
    %v4002 = vadd.f32 0.0, %v4001
    %4003 = vmatprep.mubr.f32.mxu0 %v3763
    %4004 = vmatmul.mubr.f32.gmra.mxu0 %v3761
    %v4005 = vpop.f32.mrf.mxu0
    %v4006 = vadd.f32 0.0, %v4005
    %v4007 = vpop.f32.mrf.mxu0
    %v4008 = vadd.f32 0.0, %v4007
    %4009 = vmatprep.mubr.f32.mxu0 %v3767
    %4010 = vmatmul.mubr.f32.gmra.mxu0 %v3765
    %v4011 = vpop.f32.mrf.mxu0
    %v4012 = vadd.f32 0.0, %v4011
    %v4013 = vpop.f32.mrf.mxu0
    %v4014 = vadd.f32 0.0, %v4013
    %4015 = vmatprep.mubr.f32.mxu0 %v3771
    %4016 = vmatmul.mubr.f32.gmra.mxu0 %v3769
    %v4017 = vpop.f32.mrf.mxu0
    %v4018 = vadd.f32 0.0, %v4017
    %v4019 = vpop.f32.mrf.mxu0
    %v4020 = vadd.f32 0.0, %v4019
    %4021 = vmatprep.mubr.f32.mxu0 %v3775
    %4022 = vmatmul.mubr.f32.gmra.mxu0 %v3773
    %v4023 = vpop.f32.mrf.mxu0
    %v4024 = vadd.f32 0.0, %v4023
    %v4025 = vpop.f32.mrf.mxu0
    %v4026 = vadd.f32 0.0, %v4025
    %4027 = vmatprep.mubr.f32.mxu0 %v3779
    %4028 = vmatmul.mubr.f32.gmra.mxu0 %v3777
    %v4029 = vpop.f32.mrf.mxu0
    %v4030 = vadd.f32 0.0, %v4029
    %v4031 = vpop.f32.mrf.mxu0
    %v4032 = vadd.f32 0.0, %v4031
    %4033 = vmatprep.mubr.f32.mxu0 %v3783
    %4034 = vmatmul.mubr.f32.gmra.mxu0 %v3781
    %v4035 = vpop.f32.mrf.mxu0
    %v4036 = vadd.f32 0.0, %v4035
    %v4037 = vpop.f32.mrf.mxu0
    %v4038 = vadd.f32 0.0, %v4037
    %4039 = vdwg.mxu0
    %v4040 = vadd.f32 %v3573, %v3869
    %v4041 = vadd.f32 %v3574, %v3871
    %v4042 = vadd.f32 %v3575, %v3988
    %v4043 = vadd.f32 %v3576, %v3990
    %v4044 = vadd.f32 %v3577, %v3875
    %v4045 = vadd.f32 %v3578, %v3877
    %v4046 = vadd.f32 %v3579, %v3994
    %v4047 = vadd.f32 %v3580, %v3996
    %v4048 = vadd.f32 %v3581, %v3881
    %v4049 = vadd.f32 %v3582, %v3883
    %v4050 = vadd.f32 %v3583, %v4000
    %v4051 = vadd.f32 %v3584, %v4002
    %v4052 = vadd.f32 %v3585, %v3887
    %v4053 = vadd.f32 %v3586, %v3889
    %v4054 = vadd.f32 %v3587, %v4006
    %v4055 = vadd.f32 %v3588, %v4008
    %v4056 = vadd.f32 %v3589, %v3893
    %v4057 = vadd.f32 %v3590, %v3895
    %v4058 = vadd.f32 %v3591, %v4012
    %v4059 = vadd.f32 %v3592, %v4014
    %v4060 = vadd.f32 %v3593, %v3899
    %v4061 = vadd.f32 %v3594, %v3901
    %v4062 = vadd.f32 %v3595, %v4018
    %v4063 = vadd.f32 %v3596, %v4020
    %v4064 = vadd.f32 %v3597, %v3905
    %v4065 = vadd.f32 %v3598, %v3907
    %v4066 = vadd.f32 %v3599, %v4024
    %v4067 = vadd.f32 %v3600, %v4026
    %v4068 = vadd.f32 %v3601, %v3911
    %v4069 = vadd.f32 %v3602, %v3913
    %v4070 = vadd.f32 %v3603, %v4030
    %v4071 = vadd.f32 %v3604, %v4032
    %v4072 = vadd.f32 %v3605, %v3917
    %v4073 = vadd.f32 %v3606, %v3919
    %v4074 = vadd.f32 %v3607, %v4036
    %v4075 = vadd.f32 %v3608, %v4038
    %v4076 = vld [vmem:[#allocation3 + $0x90] sm:$0xff]
    %v4077 = vld [vmem:[#allocation3 + $0x98] sm:$0xff]
    %v4078 = vld [vmem:[#allocation12 + $0x1000] sm:$0xff]
    %v4079 = vld [vmem:[#allocation12 + $0x1008] sm:$0xff]
    %v4080 = vld [vmem:[#allocation12 + $0x1010] sm:$0xff]
    %v4081 = vld [vmem:[#allocation12 + $0x1018] sm:$0xff]
    %v4082 = vld [vmem:[#allocation12 + $0x1020] sm:$0xff]
    %v4083 = vld [vmem:[#allocation12 + $0x1028] sm:$0xff]
    %v4084 = vld [vmem:[#allocation12 + $0x1030] sm:$0xff]
    %v4085 = vld [vmem:[#allocation12 + $0x1038] sm:$0xff]
    %v4086 = vld [vmem:[#allocation12 + $0x1040] sm:$0xff]
    %v4087 = vld [vmem:[#allocation12 + $0x1048] sm:$0xff]
    %v4088 = vld [vmem:[#allocation12 + $0x1050] sm:$0xff]
    %v4089 = vld [vmem:[#allocation12 + $0x1058] sm:$0xff]
    %v4090 = vld [vmem:[#allocation12 + $0x1060] sm:$0xff]
    %v4091 = vld [vmem:[#allocation12 + $0x1068] sm:$0xff]
    %v4092 = vld [vmem:[#allocation12 + $0x1070] sm:$0xff]
    %v4093 = vld [vmem:[#allocation12 + $0x1078] sm:$0xff]
    %v4094 = vld [vmem:[#allocation12 + $0x1080] sm:$0xff]
    %v4095 = vld [vmem:[#allocation12 + $0x1088] sm:$0xff]
    %v4096 = vld [vmem:[#allocation12 + $0x1090] sm:$0xff]
    %v4097 = vld [vmem:[#allocation12 + $0x1098] sm:$0xff]
    %v4098 = vld [vmem:[#allocation12 + $0x10a0] sm:$0xff]
    %v4099 = vld [vmem:[#allocation12 + $0x10a8] sm:$0xff]
    %v4100 = vld [vmem:[#allocation12 + $0x10b0] sm:$0xff]
    %v4101 = vld [vmem:[#allocation12 + $0x10b8] sm:$0xff]
    %v4102 = vld [vmem:[#allocation12 + $0x10c0] sm:$0xff]
    %v4103 = vld [vmem:[#allocation12 + $0x10c8] sm:$0xff]
    %v4104 = vld [vmem:[#allocation12 + $0x10d0] sm:$0xff]
    %v4105 = vld [vmem:[#allocation12 + $0x10d8] sm:$0xff]
    %v4106 = vld [vmem:[#allocation12 + $0x10e0] sm:$0xff]
    %v4107 = vld [vmem:[#allocation12 + $0x10e8] sm:$0xff]
    %v4108 = vld [vmem:[#allocation12 + $0x10f0] sm:$0xff]
    %v4109 = vld [vmem:[#allocation12 + $0x10f8] sm:$0xff]
    %v4110 = vld [vmem:[#allocation12 + $0x1100] sm:$0xff]
    %v4111 = vld [vmem:[#allocation12 + $0x1108] sm:$0xff]
    %v4112 = vld [vmem:[#allocation12 + $0x1110] sm:$0xff]
    %v4113 = vld [vmem:[#allocation12 + $0x1118] sm:$0xff]
    %v4114 = vld [vmem:[#allocation12 + $0x1120] sm:$0xff]
    %v4115 = vld [vmem:[#allocation12 + $0x1128] sm:$0xff]
    %v4116 = vld [vmem:[#allocation12 + $0x1130] sm:$0xff]
    %v4117 = vld [vmem:[#allocation12 + $0x1138] sm:$0xff]
    %v4118 = vld [vmem:[#allocation12 + $0x1140] sm:$0xff]
    %v4119 = vld [vmem:[#allocation12 + $0x1148] sm:$0xff]
    %v4120 = vld [vmem:[#allocation12 + $0x1150] sm:$0xff]
    %v4121 = vld [vmem:[#allocation12 + $0x1158] sm:$0xff]
    %v4122 = vld [vmem:[#allocation12 + $0x1160] sm:$0xff]
    %v4123 = vld [vmem:[#allocation12 + $0x1168] sm:$0xff]
    %v4124 = vld [vmem:[#allocation12 + $0x1170] sm:$0xff]
    %v4125 = vld [vmem:[#allocation12 + $0x1178] sm:$0xff]
    %v4126 = vld [vmem:[#allocation12 + $0x1180] sm:$0xff]
    %v4127 = vld [vmem:[#allocation12 + $0x1188] sm:$0xff]
    %v4128 = vld [vmem:[#allocation12 + $0x1190] sm:$0xff]
    %v4129 = vld [vmem:[#allocation12 + $0x1198] sm:$0xff]
    %v4130 = vld [vmem:[#allocation12 + $0x11a0] sm:$0xff]
    %v4131 = vld [vmem:[#allocation12 + $0x11a8] sm:$0xff]
    %v4132 = vld [vmem:[#allocation12 + $0x11b0] sm:$0xff]
    %v4133 = vld [vmem:[#allocation12 + $0x11b8] sm:$0xff]
    %v4134 = vld [vmem:[#allocation12 + $0x11c0] sm:$0xff]
    %v4135 = vld [vmem:[#allocation12 + $0x11c8] sm:$0xff]
    %v4136 = vld [vmem:[#allocation12 + $0x11d0] sm:$0xff]
    %v4137 = vld [vmem:[#allocation12 + $0x11d8] sm:$0xff]
    %v4138 = vld [vmem:[#allocation12 + $0x11e0] sm:$0xff]
    %v4139 = vld [vmem:[#allocation12 + $0x11e8] sm:$0xff]
    %v4140 = vld [vmem:[#allocation12 + $0x11f0] sm:$0xff]
    %v4141 = vld [vmem:[#allocation12 + $0x11f8] sm:$0xff]
    %v4142 = vld [vmem:[#allocation12 + $0x1200] sm:$0xff]
    %v4143 = vld [vmem:[#allocation12 + $0x1208] sm:$0xff]
    %v4144 = vld [vmem:[#allocation12 + $0x1210] sm:$0xff]
    %v4145 = vld [vmem:[#allocation12 + $0x1218] sm:$0xff]
    %v4146 = vld [vmem:[#allocation12 + $0x1220] sm:$0xff]
    %v4147 = vld [vmem:[#allocation12 + $0x1228] sm:$0xff]
    %v4148 = vld [vmem:[#allocation12 + $0x1230] sm:$0xff]
    %v4149 = vld [vmem:[#allocation12 + $0x1238] sm:$0xff]
    %v4150 = vld [vmem:[#allocation12 + $0x1240] sm:$0xff]
    %v4151 = vld [vmem:[#allocation12 + $0x1248] sm:$0xff]
    %v4152 = vld [vmem:[#allocation12 + $0x1250] sm:$0xff]
    %v4153 = vld [vmem:[#allocation12 + $0x1258] sm:$0xff]
    %v4154 = vld [vmem:[#allocation12 + $0x1260] sm:$0xff]
    %v4155 = vld [vmem:[#allocation12 + $0x1268] sm:$0xff]
    %v4156 = vld [vmem:[#allocation12 + $0x1270] sm:$0xff]
    %v4157 = vld [vmem:[#allocation12 + $0x1278] sm:$0xff]
    %v4158 = vld [vmem:[#allocation12 + $0x1280] sm:$0xff]
    %v4159 = vld [vmem:[#allocation12 + $0x1288] sm:$0xff]
    %v4160 = vld [vmem:[#allocation12 + $0x1290] sm:$0xff]
    %v4161 = vld [vmem:[#allocation12 + $0x1298] sm:$0xff]
    %v4162 = vld [vmem:[#allocation12 + $0x12a0] sm:$0xff]
    %v4163 = vld [vmem:[#allocation12 + $0x12a8] sm:$0xff]
    %v4164 = vld [vmem:[#allocation12 + $0x12b0] sm:$0xff]
    %v4165 = vld [vmem:[#allocation12 + $0x12b8] sm:$0xff]
    %v4166 = vld [vmem:[#allocation12 + $0x12c0] sm:$0xff]
    %v4167 = vld [vmem:[#allocation12 + $0x12c8] sm:$0xff]
    %v4168 = vld [vmem:[#allocation12 + $0x12d0] sm:$0xff]
    %v4169 = vld [vmem:[#allocation12 + $0x12d8] sm:$0xff]
    %v4170 = vld [vmem:[#allocation12 + $0x12e0] sm:$0xff]
    %v4171 = vld [vmem:[#allocation12 + $0x12e8] sm:$0xff]
    %v4172 = vld [vmem:[#allocation12 + $0x12f0] sm:$0xff]
    %v4173 = vld [vmem:[#allocation12 + $0x12f8] sm:$0xff]
    %v4174 = vld [vmem:[#allocation12 + $0x1300] sm:$0xff]
    %v4175 = vld [vmem:[#allocation12 + $0x1308] sm:$0xff]
    %v4176 = vld [vmem:[#allocation12 + $0x1310] sm:$0xff]
    %v4177 = vld [vmem:[#allocation12 + $0x1318] sm:$0xff]
    %v4178 = vld [vmem:[#allocation12 + $0x1320] sm:$0xff]
    %v4179 = vld [vmem:[#allocation12 + $0x1328] sm:$0xff]
    %v4180 = vld [vmem:[#allocation12 + $0x1330] sm:$0xff]
    %v4181 = vld [vmem:[#allocation12 + $0x1338] sm:$0xff]
    %v4182 = vld [vmem:[#allocation12 + $0x1340] sm:$0xff]
    %v4183 = vld [vmem:[#allocation12 + $0x1348] sm:$0xff]
    %v4184 = vld [vmem:[#allocation12 + $0x1350] sm:$0xff]
    %v4185 = vld [vmem:[#allocation12 + $0x1358] sm:$0xff]
    %v4186 = vld [vmem:[#allocation12 + $0x1360] sm:$0xff]
    %v4187 = vld [vmem:[#allocation12 + $0x1368] sm:$0xff]
    %v4188 = vld [vmem:[#allocation12 + $0x1370] sm:$0xff]
    %v4189 = vld [vmem:[#allocation12 + $0x1378] sm:$0xff]
    %v4190 = vld [vmem:[#allocation12 + $0x1380] sm:$0xff]
    %v4191 = vld [vmem:[#allocation12 + $0x1388] sm:$0xff]
    %v4192 = vld [vmem:[#allocation12 + $0x1390] sm:$0xff]
    %v4193 = vld [vmem:[#allocation12 + $0x1398] sm:$0xff]
    %v4194 = vld [vmem:[#allocation12 + $0x13a0] sm:$0xff]
    %v4195 = vld [vmem:[#allocation12 + $0x13a8] sm:$0xff]
    %v4196 = vld [vmem:[#allocation12 + $0x13b0] sm:$0xff]
    %v4197 = vld [vmem:[#allocation12 + $0x13b8] sm:$0xff]
    %v4198 = vld [vmem:[#allocation12 + $0x13c0] sm:$0xff]
    %v4199 = vld [vmem:[#allocation12 + $0x13c8] sm:$0xff]
    %v4200 = vld [vmem:[#allocation12 + $0x13d0] sm:$0xff]
    %v4201 = vld [vmem:[#allocation12 + $0x13d8] sm:$0xff]
    %v4202 = vld [vmem:[#allocation12 + $0x13e0] sm:$0xff]
    %v4203 = vld [vmem:[#allocation12 + $0x13e8] sm:$0xff]
    %v4204 = vld [vmem:[#allocation12 + $0x13f0] sm:$0xff]
    %v4205 = vld [vmem:[#allocation12 + $0x13f8] sm:$0xff]
    %4206 = vmatprep.subr.mxu0 %v4139
    %4207 = vmatpush1.msra.mxu0 %v4138
    %4208 = vmatprep.subr.mxu0 %v4135
    %4209 = vmatpush1.msra.mxu0 %v4134
    %4210 = vmatprep.subr.mxu0 %v4131
    %4211 = vmatpush1.msra.mxu0 %v4130
    %4212 = vmatprep.subr.mxu0 %v4127
    %4213 = vmatpush1.msra.mxu0 %v4126
    %4214 = vmatprep.subr.mxu0 %v4123
    %4215 = vmatpush1.msra.mxu0 %v4122
    %4216 = vmatprep.subr.mxu0 %v4119
    %4217 = vmatpush1.msra.mxu0 %v4118
    %4218 = vmatprep.subr.mxu0 %v4115
    %4219 = vmatpush1.msra.mxu0 %v4114
    %4220 = vmatprep.subr.mxu0 %v4111
    %4221 = vmatpush1.msra.mxu0 %v4110
    %4222 = vmatprep.subr.mxu0 %v4107
    %4223 = vmatpush1.msra.mxu0 %v4106
    %4224 = vmatprep.subr.mxu0 %v4103
    %4225 = vmatpush1.msra.mxu0 %v4102
    %4226 = vmatprep.subr.mxu0 %v4099
    %4227 = vmatpush1.msra.mxu0 %v4098
    %4228 = vmatprep.subr.mxu0 %v4095
    %4229 = vmatpush1.msra.mxu0 %v4094
    %4230 = vmatprep.subr.mxu0 %v4091
    %4231 = vmatpush1.msra.mxu0 %v4090
    %4232 = vmatprep.subr.mxu0 %v4087
    %4233 = vmatpush1.msra.mxu0 %v4086
    %4234 = vmatprep.subr.mxu0 %v4083
    %4235 = vmatpush1.msra.mxu0 %v4082
    %4236 = vmatprep.subr.mxu0 %v4079
    %4237 = vmatpush1.msra.mxu0 %v4078
    %4238 = vmatprep.subr.mxu0 %v4203
    %4239 = vmatpush2.msra.mxu0 %v4202
    %4240 = vmatprep.subr.mxu0 %v4199
    %4241 = vmatpush2.msra.mxu0 %v4198
    %4242 = vmatprep.subr.mxu0 %v4195
    %4243 = vmatpush2.msra.mxu0 %v4194
    %4244 = vmatprep.subr.mxu0 %v4191
    %4245 = vmatpush2.msra.mxu0 %v4190
    %4246 = vmatprep.subr.mxu0 %v4187
    %4247 = vmatpush2.msra.mxu0 %v4186
    %4248 = vmatprep.subr.mxu0 %v4183
    %4249 = vmatpush2.msra.mxu0 %v4182
    %4250 = vmatprep.subr.mxu0 %v4179
    %4251 = vmatpush2.msra.mxu0 %v4178
    %4252 = vmatprep.subr.mxu0 %v4175
    %4253 = vmatpush2.msra.mxu0 %v4174
    %4254 = vmatprep.subr.mxu0 %v4171
    %4255 = vmatpush2.msra.mxu0 %v4170
    %4256 = vmatprep.subr.mxu0 %v4167
    %4257 = vmatpush2.msra.mxu0 %v4166
    %4258 = vmatprep.subr.mxu0 %v4163
    %4259 = vmatpush2.msra.mxu0 %v4162
    %4260 = vmatprep.subr.mxu0 %v4159
    %4261 = vmatpush2.msra.mxu0 %v4158
    %4262 = vmatprep.subr.mxu0 %v4155
    %4263 = vmatpush2.msra.mxu0 %v4154
    %4264 = vmatprep.subr.mxu0 %v4151
    %4265 = vmatpush2.msra.mxu0 %v4150
    %4266 = vmatprep.subr.mxu0 %v4147
    %4267 = vmatpush2.msra.mxu0 %v4146
    %4268 = vmatprep.subr.mxu0 %v4143
    %4269 = vmatpush2.msra.mxu0 %v4142
    %4270 = vmatprep.mubr.f32.mxu0 %v2444
    %4271 = vmatmul.mubr.f32.gmra.mxu0 %v2443
    %v4272 = vpop.f32.mrf.mxu0
    %v4273 = vadd.f32 0.0, %v4272
    %v4274 = vpop.f32.mrf.mxu0
    %v4275 = vadd.f32 0.0, %v4274
    %4276 = vmatprep.mubr.f32.mxu0 %v2446
    %4277 = vmatmul.mubr.f32.gmra.mxu0 %v2445
    %v4278 = vpop.f32.mrf.mxu0
    %v4279 = vadd.f32 0.0, %v4278
    %v4280 = vpop.f32.mrf.mxu0
    %v4281 = vadd.f32 0.0, %v4280
    %4282 = vmatprep.mubr.f32.mxu0 %v2448
    %4283 = vmatmul.mubr.f32.gmra.mxu0 %v2447
    %v4284 = vpop.f32.mrf.mxu0
    %v4285 = vadd.f32 0.0, %v4284
    %v4286 = vpop.f32.mrf.mxu0
    %v4287 = vadd.f32 0.0, %v4286
    %4288 = vmatprep.mubr.f32.mxu0 %v2450
    %4289 = vmatmul.mubr.f32.gmra.mxu0 %v2449
    %v4290 = vpop.f32.mrf.mxu0
    %v4291 = vadd.f32 0.0, %v4290
    %v4292 = vpop.f32.mrf.mxu0
    %v4293 = vadd.f32 0.0, %v4292
    %4294 = vmatprep.mubr.f32.mxu0 %v2452
    %4295 = vmatmul.mubr.f32.gmra.mxu0 %v2451
    %v4296 = vpop.f32.mrf.mxu0
    %v4297 = vadd.f32 0.0, %v4296
    %v4298 = vpop.f32.mrf.mxu0
    %v4299 = vadd.f32 0.0, %v4298
    %4300 = vmatprep.mubr.f32.mxu0 %v2454
    %4301 = vmatmul.mubr.f32.gmra.mxu0 %v2453
    %v4302 = vpop.f32.mrf.mxu0
    %v4303 = vadd.f32 0.0, %v4302
    %v4304 = vpop.f32.mrf.mxu0
    %v4305 = vadd.f32 0.0, %v4304
    %4306 = vmatprep.mubr.f32.mxu0 %v2456
    %4307 = vmatmul.mubr.f32.gmra.mxu0 %v2455
    %v4308 = vpop.f32.mrf.mxu0
    %v4309 = vadd.f32 0.0, %v4308
    %v4310 = vpop.f32.mrf.mxu0
    %v4311 = vadd.f32 0.0, %v4310
    %4312 = vmatprep.mubr.f32.mxu0 %v2458
    %4313 = vmatmul.mubr.f32.gmra.mxu0 %v2457
    %v4314 = vpop.f32.mrf.mxu0
    %v4315 = vadd.f32 0.0, %v4314
    %v4316 = vpop.f32.mrf.mxu0
    %v4317 = vadd.f32 0.0, %v4316
    %4318 = vmatprep.mubr.f32.mxu0 %v4077
    %4319 = vmatmul.mubr.f32.gmra.mxu0 %v4076
    %v4320 = vpop.f32.mrf.mxu0
    %v4321 = vadd.f32 0.0, %v4320
    %v4322 = vpop.f32.mrf.mxu0
    %v4323 = vadd.f32 0.0, %v4322
    %4324 = vdwg.mxu0
    %4325 = vmatprep.subr.mxu0 %v4141
    %4326 = vmatpush1.msra.mxu0 %v4140
    %4327 = vmatprep.subr.mxu0 %v4137
    %4328 = vmatpush1.msra.mxu0 %v4136
    %4329 = vmatprep.subr.mxu0 %v4133
    %4330 = vmatpush1.msra.mxu0 %v4132
    %4331 = vmatprep.subr.mxu0 %v4129
    %4332 = vmatpush1.msra.mxu0 %v4128
    %4333 = vmatprep.subr.mxu0 %v4125
    %4334 = vmatpush1.msra.mxu0 %v4124
    %4335 = vmatprep.subr.mxu0 %v4121
    %4336 = vmatpush1.msra.mxu0 %v4120
    %4337 = vmatprep.subr.mxu0 %v4117
    %4338 = vmatpush1.msra.mxu0 %v4116
    %4339 = vmatprep.subr.mxu0 %v4113
    %4340 = vmatpush1.msra.mxu0 %v4112
    %4341 = vmatprep.subr.mxu0 %v4109
    %4342 = vmatpush1.msra.mxu0 %v4108
    %4343 = vmatprep.subr.mxu0 %v4105
    %4344 = vmatpush1.msra.mxu0 %v4104
    %4345 = vmatprep.subr.mxu0 %v4101
    %4346 = vmatpush1.msra.mxu0 %v4100
    %4347 = vmatprep.subr.mxu0 %v4097
    %4348 = vmatpush1.msra.mxu0 %v4096
    %4349 = vmatprep.subr.mxu0 %v4093
    %4350 = vmatpush1.msra.mxu0 %v4092
    %4351 = vmatprep.subr.mxu0 %v4089
    %4352 = vmatpush1.msra.mxu0 %v4088
    %4353 = vmatprep.subr.mxu0 %v4085
    %4354 = vmatpush1.msra.mxu0 %v4084
    %4355 = vmatprep.subr.mxu0 %v4081
    %4356 = vmatpush1.msra.mxu0 %v4080
    %4357 = vmatprep.subr.mxu0 %v4205
    %4358 = vmatpush2.msra.mxu0 %v4204
    %4359 = vmatprep.subr.mxu0 %v4201
    %4360 = vmatpush2.msra.mxu0 %v4200
    %4361 = vmatprep.subr.mxu0 %v4197
    %4362 = vmatpush2.msra.mxu0 %v4196
    %4363 = vmatprep.subr.mxu0 %v4193
    %4364 = vmatpush2.msra.mxu0 %v4192
    %4365 = vmatprep.subr.mxu0 %v4189
    %4366 = vmatpush2.msra.mxu0 %v4188
    %4367 = vmatprep.subr.mxu0 %v4185
    %4368 = vmatpush2.msra.mxu0 %v4184
    %4369 = vmatprep.subr.mxu0 %v4181
    %4370 = vmatpush2.msra.mxu0 %v4180
    %4371 = vmatprep.subr.mxu0 %v4177
    %4372 = vmatpush2.msra.mxu0 %v4176
    %4373 = vmatprep.subr.mxu0 %v4173
    %4374 = vmatpush2.msra.mxu0 %v4172
    %4375 = vmatprep.subr.mxu0 %v4169
    %4376 = vmatpush2.msra.mxu0 %v4168
    %4377 = vmatprep.subr.mxu0 %v4165
    %4378 = vmatpush2.msra.mxu0 %v4164
    %4379 = vmatprep.subr.mxu0 %v4161
    %4380 = vmatpush2.msra.mxu0 %v4160
    %4381 = vmatprep.subr.mxu0 %v4157
    %4382 = vmatpush2.msra.mxu0 %v4156
    %4383 = vmatprep.subr.mxu0 %v4153
    %4384 = vmatpush2.msra.mxu0 %v4152
    %4385 = vmatprep.subr.mxu0 %v4149
    %4386 = vmatpush2.msra.mxu0 %v4148
    %4387 = vmatprep.subr.mxu0 %v4145
    %4388 = vmatpush2.msra.mxu0 %v4144
    %4389 = vmatprep.mubr.f32.mxu0 %v2444
    %4390 = vmatmul.mubr.f32.gmra.mxu0 %v2443
    %v4391 = vpop.f32.mrf.mxu0
    %v4392 = vadd.f32 0.0, %v4391
    %v4393 = vpop.f32.mrf.mxu0
    %v4394 = vadd.f32 0.0, %v4393
    %4395 = vmatprep.mubr.f32.mxu0 %v2446
    %4396 = vmatmul.mubr.f32.gmra.mxu0 %v2445
    %v4397 = vpop.f32.mrf.mxu0
    %v4398 = vadd.f32 0.0, %v4397
    %v4399 = vpop.f32.mrf.mxu0
    %v4400 = vadd.f32 0.0, %v4399
    %4401 = vmatprep.mubr.f32.mxu0 %v2448
    %4402 = vmatmul.mubr.f32.gmra.mxu0 %v2447
    %v4403 = vpop.f32.mrf.mxu0
    %v4404 = vadd.f32 0.0, %v4403
    %v4405 = vpop.f32.mrf.mxu0
    %v4406 = vadd.f32 0.0, %v4405
    %4407 = vmatprep.mubr.f32.mxu0 %v2450
    %4408 = vmatmul.mubr.f32.gmra.mxu0 %v2449
    %v4409 = vpop.f32.mrf.mxu0
    %v4410 = vadd.f32 0.0, %v4409
    %v4411 = vpop.f32.mrf.mxu0
    %v4412 = vadd.f32 0.0, %v4411
    %4413 = vmatprep.mubr.f32.mxu0 %v2452
    %4414 = vmatmul.mubr.f32.gmra.mxu0 %v2451
    %v4415 = vpop.f32.mrf.mxu0
    %v4416 = vadd.f32 0.0, %v4415
    %v4417 = vpop.f32.mrf.mxu0
    %v4418 = vadd.f32 0.0, %v4417
    %4419 = vmatprep.mubr.f32.mxu0 %v2454
    %4420 = vmatmul.mubr.f32.gmra.mxu0 %v2453
    %v4421 = vpop.f32.mrf.mxu0
    %v4422 = vadd.f32 0.0, %v4421
    %v4423 = vpop.f32.mrf.mxu0
    %v4424 = vadd.f32 0.0, %v4423
    %4425 = vmatprep.mubr.f32.mxu0 %v2456
    %4426 = vmatmul.mubr.f32.gmra.mxu0 %v2455
    %v4427 = vpop.f32.mrf.mxu0
    %v4428 = vadd.f32 0.0, %v4427
    %v4429 = vpop.f32.mrf.mxu0
    %v4430 = vadd.f32 0.0, %v4429
    %4431 = vmatprep.mubr.f32.mxu0 %v2458
    %4432 = vmatmul.mubr.f32.gmra.mxu0 %v2457
    %v4433 = vpop.f32.mrf.mxu0
    %v4434 = vadd.f32 0.0, %v4433
    %v4435 = vpop.f32.mrf.mxu0
    %v4436 = vadd.f32 0.0, %v4435
    %4437 = vmatprep.mubr.f32.mxu0 %v4077
    %4438 = vmatmul.mubr.f32.gmra.mxu0 %v4076
    %v4439 = vpop.f32.mrf.mxu0
    %v4440 = vadd.f32 0.0, %v4439
    %v4441 = vpop.f32.mrf.mxu0
    %v4442 = vadd.f32 0.0, %v4441
    %4443 = vdwg.mxu0
    %v4444 = vadd.f32 %v4040, %v4273
    %v4445 = vadd.f32 %v4041, %v4275
    %v4446 = vadd.f32 %v4042, %v4392
    %v4447 = vadd.f32 %v4043, %v4394
    %v4448 = vadd.f32 %v4044, %v4279
    %v4449 = vadd.f32 %v4045, %v4281
    %v4450 = vadd.f32 %v4046, %v4398
    %v4451 = vadd.f32 %v4047, %v4400
    %v4452 = vadd.f32 %v4048, %v4285
    %v4453 = vadd.f32 %v4049, %v4287
    %v4454 = vadd.f32 %v4050, %v4404
    %v4455 = vadd.f32 %v4051, %v4406
    %v4456 = vadd.f32 %v4052, %v4291
    %v4457 = vadd.f32 %v4053, %v4293
    %v4458 = vadd.f32 %v4054, %v4410
    %v4459 = vadd.f32 %v4055, %v4412
    %v4460 = vadd.f32 %v4056, %v4297
    %v4461 = vadd.f32 %v4057, %v4299
    %v4462 = vadd.f32 %v4058, %v4416
    %v4463 = vadd.f32 %v4059, %v4418
    %v4464 = vadd.f32 %v4060, %v4303
    %v4465 = vadd.f32 %v4061, %v4305
    %v4466 = vadd.f32 %v4062, %v4422
    %v4467 = vadd.f32 %v4063, %v4424
    %v4468 = vadd.f32 %v4064, %v4309
    %v4469 = vadd.f32 %v4065, %v4311
    %v4470 = vadd.f32 %v4066, %v4428
    %v4471 = vadd.f32 %v4067, %v4430
    %v4472 = vadd.f32 %v4068, %v4315
    %v4473 = vadd.f32 %v4069, %v4317
    %v4474 = vadd.f32 %v4070, %v4434
    %v4475 = vadd.f32 %v4071, %v4436
    %v4476 = vadd.f32 %v4072, %v4321
    %v4477 = vadd.f32 %v4073, %v4323
    %v4478 = vadd.f32 %v4074, %v4440
    %v4479 = vadd.f32 %v4075, %v4442
    %v4480 = vld [vmem:[#allocation13] sm:$0xf]
    %v4482 = vlaneseq
    %v4483 = vshrl.u32 %v4482, 7
    %v4484 = vsub.s32 0, %v4483
    %v4485 = vrot.slane %v4480, %v4484
    %v4486 = vlaneseq
    %v4487 = vshrl.u32 %v4486, 7
    %v4488 = vsub.s32 1, %v4487
    %v4489 = vrot.slane %v4480, %v4488
    %v4490 = vlaneseq
    %v4491 = vshrl.u32 %v4490, 7
    %v4492 = vsub.s32 2, %v4491
    %v4493 = vrot.slane %v4480, %v4492
    %v4494 = vlaneseq
    %v4495 = vshrl.u32 %v4494, 7
    %v4496 = vsub.s32 3, %v4495
    %v4497 = vrot.slane %v4480, %v4496
    %v4502 = vadd.f32 %v4444, %v4485
    %v4503 = vadd.f32 %v4445, %v4489
    %v4504 = vadd.f32 %v4446, %v4493
    %v4505 = vadd.f32 %v4447, %v4497
    %v4506 = vadd.f32 %v4448, %v4485
    %v4507 = vadd.f32 %v4449, %v4489
    %v4508 = vadd.f32 %v4450, %v4493
    %v4509 = vadd.f32 %v4451, %v4497
    %v4510 = vadd.f32 %v4452, %v4485
    %v4511 = vadd.f32 %v4453, %v4489
    %v4512 = vadd.f32 %v4454, %v4493
    %v4513 = vadd.f32 %v4455, %v4497
    %v4514 = vadd.f32 %v4456, %v4485
    %v4515 = vadd.f32 %v4457, %v4489
    %v4516 = vadd.f32 %v4458, %v4493
    %v4517 = vadd.f32 %v4459, %v4497
    %v4518 = vadd.f32 %v4460, %v4485
    %v4519 = vadd.f32 %v4461, %v4489
    %v4520 = vadd.f32 %v4462, %v4493
    %v4521 = vadd.f32 %v4463, %v4497
    %v4522 = vadd.f32 %v4464, %v4485
    %v4523 = vadd.f32 %v4465, %v4489
    %v4524 = vadd.f32 %v4466, %v4493
    %v4525 = vadd.f32 %v4467, %v4497
    %v4526 = vadd.f32 %v4468, %v4485
    %v4527 = vadd.f32 %v4469, %v4489
    %v4528 = vadd.f32 %v4470, %v4493
    %v4529 = vadd.f32 %v4471, %v4497
    %v4530 = vadd.f32 %v4472, %v4485
    %v4531 = vadd.f32 %v4473, %v4489
    %v4532 = vadd.f32 %v4474, %v4493
    %v4533 = vadd.f32 %v4475, %v4497
    %v4534 = vadd.f32 %v4476, %v4485
    %v4535 = vadd.f32 %v4477, %v4489
    %v4536 = vadd.f32 %v4478, %v4493
    %v4537 = vadd.f32 %v4479, %v4497
    %v4538 = vmax.f32 %v4502, 0.0
    %v4539 = vmax.f32 %v4503, 0.0
    %v4540 = vmax.f32 %v4504, 0.0
    %v4541 = vmax.f32 %v4505, 0.0
    %v4542 = vmax.f32 %v4506, 0.0
    %v4543 = vmax.f32 %v4507, 0.0
    %v4544 = vmax.f32 %v4508, 0.0
    %v4545 = vmax.f32 %v4509, 0.0
    %v4546 = vmax.f32 %v4510, 0.0
    %v4547 = vmax.f32 %v4511, 0.0
    %v4548 = vmax.f32 %v4512, 0.0
    %v4549 = vmax.f32 %v4513, 0.0
    %v4550 = vmax.f32 %v4514, 0.0
    %v4551 = vmax.f32 %v4515, 0.0
    %v4552 = vmax.f32 %v4516, 0.0
    %v4553 = vmax.f32 %v4517, 0.0
    %v4554 = vmax.f32 %v4518, 0.0
    %v4555 = vmax.f32 %v4519, 0.0
    %v4556 = vmax.f32 %v4520, 0.0
    %v4557 = vmax.f32 %v4521, 0.0
    %v4558 = vmax.f32 %v4522, 0.0
    %v4559 = vmax.f32 %v4523, 0.0
    %v4560 = vmax.f32 %v4524, 0.0
    %v4561 = vmax.f32 %v4525, 0.0
    %v4562 = vmax.f32 %v4526, 0.0
    %v4563 = vmax.f32 %v4527, 0.0
    %v4564 = vmax.f32 %v4528, 0.0
    %v4565 = vmax.f32 %v4529, 0.0
    %v4566 = vmax.f32 %v4530, 0.0
    %v4567 = vmax.f32 %v4531, 0.0
    %v4568 = vmax.f32 %v4532, 0.0
    %v4569 = vmax.f32 %v4533, 0.0
    %v4570 = vmax.f32 %v4534, 0.0
    %v4571 = vmax.f32 %v4535, 0.0
    %v4572 = vmax.f32 %v4536, 0.0
    %v4573 = vmax.f32 %v4537, 0.0
    %4574 = vst [vmem:[#allocation4] sm:$0xff] %v4538
    %4575 = vst [vmem:[#allocation4 + $0x8] sm:$0xff] %v4539
    %4576 = vst [vmem:[#allocation4 + $0x10] sm:$0xff] %v4540
    %4577 = vst [vmem:[#allocation4 + $0x18] sm:$0xff] %v4541
    %4578 = vst [vmem:[#allocation4 + $0x20] sm:$0xff] %v4542
    %4579 = vst [vmem:[#allocation4 + $0x28] sm:$0xff] %v4543
    %4580 = vst [vmem:[#allocation4 + $0x30] sm:$0xff] %v4544
    %4581 = vst [vmem:[#allocation4 + $0x38] sm:$0xff] %v4545
    %4582 = vst [vmem:[#allocation4 + $0x40] sm:$0xff] %v4546
    %4583 = vst [vmem:[#allocation4 + $0x48] sm:$0xff] %v4547
    %4584 = vst [vmem:[#allocation4 + $0x50] sm:$0xff] %v4548
    %4585 = vst [vmem:[#allocation4 + $0x58] sm:$0xff] %v4549
    %4586 = vst [vmem:[#allocation4 + $0x60] sm:$0xff] %v4550
    %4587 = vst [vmem:[#allocation4 + $0x68] sm:$0xff] %v4551
    %4588 = vst [vmem:[#allocation4 + $0x70] sm:$0xff] %v4552
    %4589 = vst [vmem:[#allocation4 + $0x78] sm:$0xff] %v4553
    %4590 = vst [vmem:[#allocation4 + $0x80] sm:$0xff] %v4554
    %4591 = vst [vmem:[#allocation4 + $0x88] sm:$0xff] %v4555
    %4592 = vst [vmem:[#allocation4 + $0x90] sm:$0xff] %v4556
    %4593 = vst [vmem:[#allocation4 + $0x98] sm:$0xff] %v4557
    %4594 = vst [vmem:[#allocation4 + $0xa0] sm:$0xff] %v4558
    %4595 = vst [vmem:[#allocation4 + $0xa8] sm:$0xff] %v4559
    %4596 = vst [vmem:[#allocation4 + $0xb0] sm:$0xff] %v4560
    %4597 = vst [vmem:[#allocation4 + $0xb8] sm:$0xff] %v4561
    %4598 = vst [vmem:[#allocation4 + $0xc0] sm:$0xff] %v4562
    %4599 = vst [vmem:[#allocation4 + $0xc8] sm:$0xff] %v4563
    %4600 = vst [vmem:[#allocation4 + $0xd0] sm:$0xff] %v4564
    %4601 = vst [vmem:[#allocation4 + $0xd8] sm:$0xff] %v4565
    %4602 = vst [vmem:[#allocation4 + $0xe0] sm:$0xff] %v4566
    %4603 = vst [vmem:[#allocation4 + $0xe8] sm:$0xff] %v4567
    %4604 = vst [vmem:[#allocation4 + $0xf0] sm:$0xff] %v4568
    %4605 = vst [vmem:[#allocation4 + $0xf8] sm:$0xff] %v4569
    %4606 = vst [vmem:[#allocation4 + $0x100] sm:$0xff] %v4570
    %4607 = vst [vmem:[#allocation4 + $0x108] sm:$0xff] %v4571
    %4608 = vst [vmem:[#allocation4 + $0x110] sm:$0xff] %v4572
    %4609 = vst [vmem:[#allocation4 + $0x118] sm:$0xff] %v4573
    %v4610 = vld [vmem:[#allocation4] sm:$0xff]
    %v4611 = vld [vmem:[#allocation4 + $0x8] sm:$0xff]
    %v4612 = vld [vmem:[#allocation4 + $0x20] sm:$0xff]
    %v4613 = vld [vmem:[#allocation4 + $0x28] sm:$0xff]
    %v4614 = vld [vmem:[#allocation4 + $0x40] sm:$0xff]
    %v4615 = vld [vmem:[#allocation4 + $0x48] sm:$0xff]
    %v4616 = vld [vmem:[#allocation4 + $0x60] sm:$0xff]
    %v4617 = vld [vmem:[#allocation4 + $0x68] sm:$0xff]
    %v4618 = vld [vmem:[#allocation4 + $0x80] sm:$0xff]
    %v4619 = vld [vmem:[#allocation4 + $0x88] sm:$0xff]
    %v4620 = vld [vmem:[#allocation4 + $0xa0] sm:$0xff]
    %v4621 = vld [vmem:[#allocation4 + $0xa8] sm:$0xff]
    %v4622 = vld [vmem:[#allocation4 + $0xc0] sm:$0xff]
    %v4623 = vld [vmem:[#allocation4 + $0xc8] sm:$0xff]
    %v4624 = vld [vmem:[#allocation4 + $0xe0] sm:$0xff]
    %v4625 = vld [vmem:[#allocation4 + $0xe8] sm:$0xff]
    %v4626 = vld [vmem:[#allocation4 + $0x10] sm:$0xff]
    %v4627 = vld [vmem:[#allocation4 + $0x18] sm:$0xff]
    %v4628 = vld [vmem:[#allocation4 + $0x30] sm:$0xff]
    %v4629 = vld [vmem:[#allocation4 + $0x38] sm:$0xff]
    %v4630 = vld [vmem:[#allocation4 + $0x50] sm:$0xff]
    %v4631 = vld [vmem:[#allocation4 + $0x58] sm:$0xff]
    %v4632 = vld [vmem:[#allocation4 + $0x70] sm:$0xff]
    %v4633 = vld [vmem:[#allocation4 + $0x78] sm:$0xff]
    %v4634 = vld [vmem:[#allocation4 + $0x90] sm:$0xff]
    %v4635 = vld [vmem:[#allocation4 + $0x98] sm:$0xff]
    %v4636 = vld [vmem:[#allocation4 + $0xb0] sm:$0xff]
    %v4637 = vld [vmem:[#allocation4 + $0xb8] sm:$0xff]
    %v4638 = vld [vmem:[#allocation4 + $0xd0] sm:$0xff]
    %v4639 = vld [vmem:[#allocation4 + $0xd8] sm:$0xff]
    %v4640 = vld [vmem:[#allocation4 + $0xf0] sm:$0xff]
    %v4641 = vld [vmem:[#allocation4 + $0xf8] sm:$0xff]
    %v4642 = vmax.f32 %v4610, %v4626
    %v4643 = vmax.f32 %v4611, %v4627
    %v4644 = vmax.f32 %v4612, %v4628
    %v4645 = vmax.f32 %v4613, %v4629
    %v4646 = vmax.f32 %v4614, %v4630
    %v4647 = vmax.f32 %v4615, %v4631
    %v4648 = vmax.f32 %v4616, %v4632
    %v4649 = vmax.f32 %v4617, %v4633
    %v4650 = vmax.f32 %v4618, %v4634
    %v4651 = vmax.f32 %v4619, %v4635
    %v4652 = vmax.f32 %v4620, %v4636
    %v4653 = vmax.f32 %v4621, %v4637
    %v4654 = vmax.f32 %v4622, %v4638
    %v4655 = vmax.f32 %v4623, %v4639
    %v4656 = vmax.f32 %v4624, %v4640
    %v4657 = vmax.f32 %v4625, %v4641
    %v4658 = vld [vmem:[#allocation4] sm:$0xfc]
    %v4659 = vld [vmem:[#allocation4 + $0x8] sm:$0xfc]
    %v4660 = vld [vmem:[#allocation4 + $0x100] sm:$0x3]
    %v4661 = vld [vmem:[#allocation4 + $0x108] sm:$0x3]
    %v4662 = vld [vmem:[#allocation4 + $0x10] sm:$0xfc]
    %v4663 = vld [vmem:[#allocation4 + $0x18] sm:$0xfc]
    %v4664 = vld [vmem:[#allocation4 + $0x30] sm:$0xff]
    %v4665 = vld [vmem:[#allocation4 + $0x38] sm:$0xff]
    %v4666 = vld [vmem:[#allocation4 + $0x50] sm:$0xff]
    %v4667 = vld [vmem:[#allocation4 + $0x58] sm:$0xff]
    %v4668 = vld [vmem:[#allocation4 + $0x70] sm:$0xff]
    %v4669 = vld [vmem:[#allocation4 + $0x78] sm:$0xff]
    %v4670 = vld [vmem:[#allocation4 + $0x90] sm:$0xff]
    %v4671 = vld [vmem:[#allocation4 + $0x98] sm:$0xff]
    %v4672 = vld [vmem:[#allocation4 + $0xb0] sm:$0xff]
    %v4673 = vld [vmem:[#allocation4 + $0xb8] sm:$0xff]
    %v4674 = vld [vmem:[#allocation4 + $0xd0] sm:$0xff]
    %v4675 = vld [vmem:[#allocation4 + $0xd8] sm:$0xff]
    %v4676 = vld [vmem:[#allocation4 + $0xf0] sm:$0xff]
    %v4677 = vld [vmem:[#allocation4 + $0xf8] sm:$0xff]
    %v4678 = vld [vmem:[#allocation4 + $0x110] sm:$0x3]
    %v4679 = vld [vmem:[#allocation4 + $0x118] sm:$0x3]
    %v4680 = vmax.f32 %v4658, %v4662
    %v4681 = vmax.f32 %v4659, %v4663
    %v4682 = vmax.f32 %v4612, %v4664
    %v4683 = vmax.f32 %v4613, %v4665
    %v4684 = vmax.f32 %v4614, %v4666
    %v4685 = vmax.f32 %v4615, %v4667
    %v4686 = vmax.f32 %v4616, %v4668
    %v4687 = vmax.f32 %v4617, %v4669
    %v4688 = vmax.f32 %v4618, %v4670
    %v4689 = vmax.f32 %v4619, %v4671
    %v4690 = vmax.f32 %v4620, %v4672
    %v4691 = vmax.f32 %v4621, %v4673
    %v4692 = vmax.f32 %v4622, %v4674
    %v4693 = vmax.f32 %v4623, %v4675
    %v4694 = vmax.f32 %v4624, %v4676
    %v4695 = vmax.f32 %v4625, %v4677
    %v4696 = vmax.f32 %v4660, %v4678
    %v4697 = vmax.f32 %v4661, %v4679
    %v4716 = vrot.slane %v4680, 2
    %v4717 = vrot.slane %v4682, 2
    %v4718 = vsel %vm2609, %v4716, %v4717
    %v4719 = vrot.slane %v4681, 2
    %v4720 = vrot.slane %v4683, 2
    %v4721 = vsel %vm2609, %v4719, %v4720
    %v4722 = vrot.slane %v4684, 2
    %v4723 = vsel %vm2609, %v4717, %v4722
    %v4724 = vrot.slane %v4685, 2
    %v4725 = vsel %vm2609, %v4720, %v4724
    %v4726 = vrot.slane %v4686, 2
    %v4727 = vsel %vm2609, %v4722, %v4726
    %v4728 = vrot.slane %v4687, 2
    %v4729 = vsel %vm2609, %v4724, %v4728
    %v4730 = vrot.slane %v4688, 2
    %v4731 = vsel %vm2609, %v4726, %v4730
    %v4732 = vrot.slane %v4689, 2
    %v4733 = vsel %vm2609, %v4728, %v4732
    %v4734 = vrot.slane %v4690, 2
    %v4735 = vsel %vm2609, %v4730, %v4734
    %v4736 = vrot.slane %v4691, 2
    %v4737 = vsel %vm2609, %v4732, %v4736
    %v4738 = vrot.slane %v4692, 2
    %v4739 = vsel %vm2609, %v4734, %v4738
    %v4740 = vrot.slane %v4693, 2
    %v4741 = vsel %vm2609, %v4736, %v4740
    %v4742 = vrot.slane %v4694, 2
    %v4743 = vsel %vm2609, %v4738, %v4742
    %v4744 = vrot.slane %v4695, 2
    %v4745 = vsel %vm2609, %v4740, %v4744
    %v4746 = vrot.slane %v4696, 2
    %v4747 = vsel %vm2609, %v4742, %v4746
    %v4748 = vrot.slane %v4697, 2
    %v4749 = vsel %vm2609, %v4744, %v4748
    %v4766 = vmax.f32 %v4642, %v4718
    %v4767 = vmax.f32 %v4643, %v4721
    %v4768 = vmax.f32 %v4644, %v4723
    %v4769 = vmax.f32 %v4645, %v4725
    %v4770 = vmax.f32 %v4646, %v4727
    %v4771 = vmax.f32 %v4647, %v4729
    %v4772 = vmax.f32 %v4648, %v4731
    %v4773 = vmax.f32 %v4649, %v4733
    %v4774 = vmax.f32 %v4650, %v4735
    %v4775 = vmax.f32 %v4651, %v4737
    %v4776 = vmax.f32 %v4652, %v4739
    %v4777 = vmax.f32 %v4653, %v4741
    %v4778 = vmax.f32 %v4654, %v4743
    %v4779 = vmax.f32 %v4655, %v4745
    %v4780 = vmax.f32 %v4656, %v4747
    %v4781 = vmax.f32 %v4657, %v4749
    %4782 = vst [vmem:[#allocation5] sm:$0xff] %v4766
    %4783 = vst [vmem:[#allocation5 + $0x8] sm:$0xff] %v4767
    %4784 = vst [vmem:[#allocation5 + $0x10] sm:$0xff] %v4768
    %4785 = vst [vmem:[#allocation5 + $0x18] sm:$0xff] %v4769
    %4786 = vst [vmem:[#allocation5 + $0x20] sm:$0xff] %v4770
    %4787 = vst [vmem:[#allocation5 + $0x28] sm:$0xff] %v4771
    %4788 = vst [vmem:[#allocation5 + $0x30] sm:$0xff] %v4772
    %4789 = vst [vmem:[#allocation5 + $0x38] sm:$0xff] %v4773
    %4790 = vst [vmem:[#allocation5 + $0x40] sm:$0xff] %v4774
    %4791 = vst [vmem:[#allocation5 + $0x48] sm:$0xff] %v4775
    %4792 = vst [vmem:[#allocation5 + $0x50] sm:$0xff] %v4776
    %4793 = vst [vmem:[#allocation5 + $0x58] sm:$0xff] %v4777
    %4794 = vst [vmem:[#allocation5 + $0x60] sm:$0xff] %v4778
    %4795 = vst [vmem:[#allocation5 + $0x68] sm:$0xff] %v4779
    %4796 = vst [vmem:[#allocation5 + $0x70] sm:$0xff] %v4780
    %4797 = vst [vmem:[#allocation5 + $0x78] sm:$0xff] %v4781
    %v4798 = vld [vmem:[#allocation5] ss:$8 sm:$0x3]
    %v4799 = vlaneseq
    %vm4800 = vcmp.ge.s32.totalorder %v4799, 0
    %vm4801 = vcmp.lt.s32.totalorder %v4799, 256
    %vm4802 = vmand %vm4800, %vm4801
    %4803 = vst.msk [vmem:[#allocation6] ss:$2 sm:$0x3] %vm4802, %v4798
    %s4804 = scalar_lea.vmem [#allocation5], 4
    %v4805 = vld [vmem:[%s4804] ss:$8 sm:$0x3]
    %s4806 = scalar_lea.vmem [#allocation6], 4
    %4807 = vst.msk [vmem:[%s4806] ss:$2 sm:$0x3] %vm4802, %v4805
    %s4808 = scalar_lea.vmem [#allocation5], 16
    %v4809 = vld [vmem:[%s4808] ss:$8 sm:$0x3]
    %s4810 = scalar_lea.vmem [#allocation6], 8
    %4811 = vst.msk [vmem:[%s4810] ss:$2 sm:$0x3] %vm4802, %v4809
    %s4812 = scalar_lea.vmem [#allocation5], 20
    %v4813 = vld [vmem:[%s4812] ss:$8 sm:$0x3]
    %s4814 = scalar_lea.vmem [#allocation6], 12
    %4815 = vst.msk [vmem:[%s4814] ss:$2 sm:$0x3] %vm4802, %v4813
    %s4816 = scalar_lea.vmem [#allocation5], 32
    %v4817 = vld [vmem:[%s4816] ss:$8 sm:$0x3]
    %s4818 = scalar_lea.vmem [#allocation6], 16
    %4819 = vst.msk [vmem:[%s4818] ss:$2 sm:$0x3] %vm4802, %v4817
    %s4820 = scalar_lea.vmem [#allocation5], 64
    %v4821 = vld [vmem:[%s4820] ss:$8 sm:$0x3]
    %s4822 = scalar_lea.vmem [#allocation6], 1
    %4823 = vst.msk [vmem:[%s4822] ss:$2 sm:$0x3] %vm4802, %v4821
    %s4824 = scalar_lea.vmem [#allocation5], 68
    %v4825 = vld [vmem:[%s4824] ss:$8 sm:$0x3]
    %s4826 = scalar_lea.vmem [#allocation6], 5
    %4827 = vst.msk [vmem:[%s4826] ss:$2 sm:$0x3] %vm4802, %v4825
    %s4828 = scalar_lea.vmem [#allocation5], 80
    %v4829 = vld [vmem:[%s4828] ss:$8 sm:$0x3]
    %s4830 = scalar_lea.vmem [#allocation6], 9
    %4831 = vst.msk [vmem:[%s4830] ss:$2 sm:$0x3] %vm4802, %v4829
    %s4832 = scalar_lea.vmem [#allocation5], 84
    %v4833 = vld [vmem:[%s4832] ss:$8 sm:$0x3]
    %s4834 = scalar_lea.vmem [#allocation6], 13
    %4835 = vst.msk [vmem:[%s4834] ss:$2 sm:$0x3] %vm4802, %v4833
    %s4836 = scalar_lea.vmem [#allocation5], 96
    %v4837 = vld [vmem:[%s4836] ss:$8 sm:$0x3]
    %s4838 = scalar_lea.vmem [#allocation6], 17
    %4839 = vst.msk [vmem:[%s4838] ss:$2 sm:$0x3] %vm4802, %v4837
    %v4840 = vld [vmem:[#allocation6] sm:$0xff]
    %v4841 = vld [vmem:[#allocation6 + $0x8] sm:$0xff]
    %v4842 = vld [vmem:[#allocation6 + $0x10] sm:$0xf]
    %v4843 = vld [vmem:[#allocation15] sm:$0xff]
    %v4844 = vld [vmem:[#allocation15 + $0x8] sm:$0xff]
    %v4845 = vld [vmem:[#allocation15 + $0x10] sm:$0xff]
    %v4846 = vld [vmem:[#allocation15 + $0x18] sm:$0xff]
    %v4847 = vld [vmem:[#allocation15 + $0x20] sm:$0xff]
    %v4848 = vld [vmem:[#allocation15 + $0x28] sm:$0xff]
    %v4849 = vld [vmem:[#allocation15 + $0x30] sm:$0xff]
    %v4850 = vld [vmem:[#allocation15 + $0x38] sm:$0xff]
    %v4851 = vld [vmem:[#allocation15 + $0x40] sm:$0xff]
    %v4852 = vld [vmem:[#allocation15 + $0x48] sm:$0xff]
    %v4853 = vld [vmem:[#allocation15 + $0x50] sm:$0xff]
    %v4854 = vld [vmem:[#allocation15 + $0x58] sm:$0xff]
    %v4855 = vld [vmem:[#allocation15 + $0x60] sm:$0xff]
    %v4856 = vld [vmem:[#allocation15 + $0x68] sm:$0xff]
    %v4857 = vld [vmem:[#allocation15 + $0x70] sm:$0xff]
    %v4858 = vld [vmem:[#allocation15 + $0x78] sm:$0xff]
    %v4859 = vld [vmem:[#allocation15 + $0x80] sm:$0xff]
    %v4860 = vld [vmem:[#allocation15 + $0x88] sm:$0xff]
    %v4861 = vld [vmem:[#allocation15 + $0x90] sm:$0xff]
    %v4862 = vld [vmem:[#allocation15 + $0x98] sm:$0xff]
    %v4863 = vld [vmem:[#allocation15 + $0xa0] sm:$0xff]
    %v4864 = vld [vmem:[#allocation15 + $0xa8] sm:$0xff]
    %v4865 = vld [vmem:[#allocation15 + $0xb0] sm:$0xff]
    %v4866 = vld [vmem:[#allocation15 + $0xb8] sm:$0xff]
    %v4867 = vld [vmem:[#allocation15 + $0xc0] sm:$0xff]
    %v4868 = vld [vmem:[#allocation15 + $0xc8] sm:$0xff]
    %v4869 = vld [vmem:[#allocation15 + $0xd0] sm:$0xff]
    %v4870 = vld [vmem:[#allocation15 + $0xd8] sm:$0xff]
    %v4871 = vld [vmem:[#allocation15 + $0xe0] sm:$0xff]
    %v4872 = vld [vmem:[#allocation15 + $0xe8] sm:$0xff]
    %v4873 = vld [vmem:[#allocation15 + $0xf0] sm:$0xff]
    %v4874 = vld [vmem:[#allocation15 + $0xf8] sm:$0xff]
    %v4875 = vld [vmem:[#allocation15 + $0x100] sm:$0xff]
    %v4876 = vld [vmem:[#allocation15 + $0x108] sm:$0xff]
    %v4877 = vld [vmem:[#allocation15 + $0x110] sm:$0xff]
    %v4878 = vld [vmem:[#allocation15 + $0x118] sm:$0xff]
    %v4879 = vld [vmem:[#allocation15 + $0x120] sm:$0xff]
    %v4880 = vld [vmem:[#allocation15 + $0x128] sm:$0xff]
    %v4881 = vld [vmem:[#allocation15 + $0x130] sm:$0xff]
    %v4882 = vld [vmem:[#allocation15 + $0x138] sm:$0xff]
    %v4883 = vld [vmem:[#allocation15 + $0x140] sm:$0xff]
    %v4884 = vld [vmem:[#allocation15 + $0x148] sm:$0xff]
    %v4885 = vld [vmem:[#allocation15 + $0x150] sm:$0xff]
    %v4886 = vld [vmem:[#allocation15 + $0x158] sm:$0xff]
    %v4887 = vld [vmem:[#allocation15 + $0x160] sm:$0xff]
    %v4888 = vld [vmem:[#allocation15 + $0x168] sm:$0xff]
    %v4889 = vld [vmem:[#allocation15 + $0x170] sm:$0xff]
    %v4890 = vld [vmem:[#allocation15 + $0x178] sm:$0xff]
    %v4891 = vld [vmem:[#allocation15 + $0x180] sm:$0xff]
    %v4892 = vld [vmem:[#allocation15 + $0x188] sm:$0xff]
    %v4893 = vld [vmem:[#allocation15 + $0x190] sm:$0xff]
    %v4894 = vld [vmem:[#allocation15 + $0x198] sm:$0xff]
    %v4895 = vld [vmem:[#allocation15 + $0x1a0] sm:$0xff]
    %v4896 = vld [vmem:[#allocation15 + $0x1a8] sm:$0xff]
    %v4897 = vld [vmem:[#allocation15 + $0x1b0] sm:$0xff]
    %v4898 = vld [vmem:[#allocation15 + $0x1b8] sm:$0xff]
    %v4899 = vld [vmem:[#allocation15 + $0x1c0] sm:$0xff]
    %v4900 = vld [vmem:[#allocation15 + $0x1c8] sm:$0xff]
    %v4901 = vld [vmem:[#allocation15 + $0x1d0] sm:$0xff]
    %v4902 = vld [vmem:[#allocation15 + $0x1d8] sm:$0xff]
    %v4903 = vld [vmem:[#allocation15 + $0x1e0] sm:$0xff]
    %v4904 = vld [vmem:[#allocation15 + $0x1e8] sm:$0xff]
    %v4905 = vld [vmem:[#allocation15 + $0x1f0] sm:$0xff]
    %v4906 = vld [vmem:[#allocation15 + $0x1f8] sm:$0xff]
    %v4907 = vld [vmem:[#allocation15 + $0x200] sm:$0xff]
    %v4908 = vld [vmem:[#allocation15 + $0x208] sm:$0xff]
    %v4909 = vld [vmem:[#allocation15 + $0x210] sm:$0xff]
    %v4910 = vld [vmem:[#allocation15 + $0x218] sm:$0xff]
    %v4911 = vld [vmem:[#allocation15 + $0x220] sm:$0xff]
    %v4912 = vld [vmem:[#allocation15 + $0x228] sm:$0xff]
    %v4913 = vld [vmem:[#allocation15 + $0x230] sm:$0xff]
    %v4914 = vld [vmem:[#allocation15 + $0x238] sm:$0xff]
    %v4915 = vld [vmem:[#allocation15 + $0x240] sm:$0xff]
    %v4916 = vld [vmem:[#allocation15 + $0x248] sm:$0xff]
    %v4917 = vld [vmem:[#allocation15 + $0x250] sm:$0xff]
    %v4918 = vld [vmem:[#allocation15 + $0x258] sm:$0xff]
    %v4919 = vld [vmem:[#allocation15 + $0x260] sm:$0xff]
    %v4920 = vld [vmem:[#allocation15 + $0x268] sm:$0xff]
    %v4921 = vld [vmem:[#allocation15 + $0x270] sm:$0xff]
    %v4922 = vld [vmem:[#allocation15 + $0x278] sm:$0xff]
    %v4923 = vld [vmem:[#allocation15 + $0x280] sm:$0xff]
    %v4924 = vld [vmem:[#allocation15 + $0x288] sm:$0xff]
    %v4925 = vld [vmem:[#allocation15 + $0x290] sm:$0xff]
    %v4926 = vld [vmem:[#allocation15 + $0x298] sm:$0xff]
    %v4927 = vld [vmem:[#allocation15 + $0x2a0] sm:$0xff]
    %v4928 = vld [vmem:[#allocation15 + $0x2a8] sm:$0xff]
    %v4929 = vld [vmem:[#allocation15 + $0x2b0] sm:$0xff]
    %v4930 = vld [vmem:[#allocation15 + $0x2b8] sm:$0xff]
    %v4931 = vld [vmem:[#allocation15 + $0x2c0] sm:$0xff]
    %v4932 = vld [vmem:[#allocation15 + $0x2c8] sm:$0xff]
    %v4933 = vld [vmem:[#allocation15 + $0x2d0] sm:$0xff]
    %v4934 = vld [vmem:[#allocation15 + $0x2d8] sm:$0xff]
    %v4935 = vld [vmem:[#allocation15 + $0x2e0] sm:$0xff]
    %v4936 = vld [vmem:[#allocation15 + $0x2e8] sm:$0xff]
    %v4937 = vld [vmem:[#allocation15 + $0x2f0] sm:$0xff]
    %v4938 = vld [vmem:[#allocation15 + $0x2f8] sm:$0xff]
    %v4939 = vld [vmem:[#allocation15 + $0x300] sm:$0xff]
    %v4940 = vld [vmem:[#allocation15 + $0x308] sm:$0xff]
    %v4941 = vld [vmem:[#allocation15 + $0x310] sm:$0xff]
    %v4942 = vld [vmem:[#allocation15 + $0x318] sm:$0xff]
    %v4943 = vld [vmem:[#allocation15 + $0x320] sm:$0xff]
    %v4944 = vld [vmem:[#allocation15 + $0x328] sm:$0xff]
    %v4945 = vld [vmem:[#allocation15 + $0x330] sm:$0xff]
    %v4946 = vld [vmem:[#allocation15 + $0x338] sm:$0xff]
    %v4947 = vld [vmem:[#allocation15 + $0x340] sm:$0xff]
    %v4948 = vld [vmem:[#allocation15 + $0x348] sm:$0xff]
    %v4949 = vld [vmem:[#allocation15 + $0x350] sm:$0xff]
    %v4950 = vld [vmem:[#allocation15 + $0x358] sm:$0xff]
    %v4951 = vld [vmem:[#allocation15 + $0x360] sm:$0xff]
    %v4952 = vld [vmem:[#allocation15 + $0x368] sm:$0xff]
    %v4953 = vld [vmem:[#allocation15 + $0x370] sm:$0xff]
    %v4954 = vld [vmem:[#allocation15 + $0x378] sm:$0xff]
    %v4955 = vld [vmem:[#allocation15 + $0x380] sm:$0xff]
    %v4956 = vld [vmem:[#allocation15 + $0x388] sm:$0xff]
    %v4957 = vld [vmem:[#allocation15 + $0x390] sm:$0xff]
    %v4958 = vld [vmem:[#allocation15 + $0x398] sm:$0xff]
    %v4959 = vld [vmem:[#allocation15 + $0x3a0] sm:$0xff]
    %v4960 = vld [vmem:[#allocation15 + $0x3a8] sm:$0xff]
    %v4961 = vld [vmem:[#allocation15 + $0x3b0] sm:$0xff]
    %v4962 = vld [vmem:[#allocation15 + $0x3b8] sm:$0xff]
    %v4963 = vld [vmem:[#allocation15 + $0x3c0] sm:$0xff]
    %v4964 = vld [vmem:[#allocation15 + $0x3c8] sm:$0xff]
    %v4965 = vld [vmem:[#allocation15 + $0x3d0] sm:$0xff]
    %v4966 = vld [vmem:[#allocation15 + $0x3d8] sm:$0xff]
    %v4967 = vld [vmem:[#allocation15 + $0x3e0] sm:$0xff]
    %v4968 = vld [vmem:[#allocation15 + $0x3e8] sm:$0xff]
    %v4969 = vld [vmem:[#allocation15 + $0x3f0] sm:$0xff]
    %v4970 = vld [vmem:[#allocation15 + $0x3f8] sm:$0xff]
    %v4971 = vld [vmem:[#allocation15 + $0x400] sm:$0xff]
    %v4972 = vld [vmem:[#allocation15 + $0x408] sm:$0xff]
    %v4973 = vld [vmem:[#allocation15 + $0x410] sm:$0xff]
    %v4974 = vld [vmem:[#allocation15 + $0x418] sm:$0xff]
    %v4975 = vld [vmem:[#allocation15 + $0x420] sm:$0xff]
    %v4976 = vld [vmem:[#allocation15 + $0x428] sm:$0xff]
    %v4977 = vld [vmem:[#allocation15 + $0x430] sm:$0xff]
    %v4978 = vld [vmem:[#allocation15 + $0x438] sm:$0xff]
    %v4979 = vld [vmem:[#allocation15 + $0x440] sm:$0xff]
    %v4980 = vld [vmem:[#allocation15 + $0x448] sm:$0xff]
    %v4981 = vld [vmem:[#allocation15 + $0x450] sm:$0xff]
    %v4982 = vld [vmem:[#allocation15 + $0x458] sm:$0xff]
    %v4983 = vld [vmem:[#allocation15 + $0x460] sm:$0xff]
    %v4984 = vld [vmem:[#allocation15 + $0x468] sm:$0xff]
    %v4985 = vld [vmem:[#allocation15 + $0x470] sm:$0xff]
    %v4986 = vld [vmem:[#allocation15 + $0x478] sm:$0xff]
    %v4987 = vld [vmem:[#allocation15 + $0x480] sm:$0xff]
    %v4988 = vld [vmem:[#allocation15 + $0x488] sm:$0xff]
    %v4989 = vld [vmem:[#allocation15 + $0x490] sm:$0xff]
    %v4990 = vld [vmem:[#allocation15 + $0x498] sm:$0xff]
    %v4991 = vld [vmem:[#allocation15 + $0x4a0] sm:$0xff]
    %v4992 = vld [vmem:[#allocation15 + $0x4a8] sm:$0xff]
    %v4993 = vld [vmem:[#allocation15 + $0x4b0] sm:$0xff]
    %v4994 = vld [vmem:[#allocation15 + $0x4b8] sm:$0xff]
    %v4995 = vld [vmem:[#allocation15 + $0x4c0] sm:$0xff]
    %v4996 = vld [vmem:[#allocation15 + $0x4c8] sm:$0xff]
    %v4997 = vld [vmem:[#allocation15 + $0x4d0] sm:$0xff]
    %v4998 = vld [vmem:[#allocation15 + $0x4d8] sm:$0xff]
    %v4999 = vld [vmem:[#allocation15 + $0x4e0] sm:$0xff]
    %v5000 = vld [vmem:[#allocation15 + $0x4e8] sm:$0xff]
    %v5001 = vld [vmem:[#allocation15 + $0x4f0] sm:$0xff]
    %v5002 = vld [vmem:[#allocation15 + $0x4f8] sm:$0xff]
    %v5003 = vld [vmem:[#allocation16] sm:$0x1]
    %v5005 = vlaneseq
    %v5006 = vshrl.u32 %v5005, 7
    %v5007 = vsub.s32 0, %v5006
    %v5008 = vrot.slane %v5003, %v5007
    %v5013 = vcombine.high %v4840, %v4840
    %v5015 = vunpack.c.l.s4 1983009808
    %v5016 = vunpack.c.0.s8 %v5015
    %v5017 = vlaneseq
    %v5018 = vshrl.u32 %v5017, 7
    %v5019 = vsub.s32 %v5016, %v5018
    %v5020 = vrot.slane %v4840, %v5019
    %v5022 = vunpack.c.l.s4 1983009808
    %v5023 = vunpack.c.0.s8 %v5022
    %v5024 = vlaneseq
    %v5025 = vshrl.u32 %v5024, 7
    %v5026 = vsub.s32 %v5023, %v5025
    %v5027 = vrot.slane %v5013, %v5026
    %v5028 = vcombine.high %v5020, %v5020
    %v5029 = vcombine.high %v5027, %v5027
    %v5030 = vcombine.high %v4841, %v4841
    %v5032 = vunpack.c.l.s4 1983009808
    %v5033 = vunpack.c.0.s8 %v5032
    %v5034 = vlaneseq
    %v5035 = vshrl.u32 %v5034, 7
    %v5036 = vsub.s32 %v5033, %v5035
    %v5037 = vrot.slane %v4841, %v5036
    %v5039 = vunpack.c.l.s4 1983009808
    %v5040 = vunpack.c.0.s8 %v5039
    %v5041 = vlaneseq
    %v5042 = vshrl.u32 %v5041, 7
    %v5043 = vsub.s32 %v5040, %v5042
    %v5044 = vrot.slane %v5030, %v5043
    %v5045 = vcombine.high %v5037, %v5037
    %v5046 = vcombine.high %v5044, %v5044
    %v5048 = vunpack.c.l.s4 1983009808
    %v5049 = vunpack.c.0.s8 %v5048
    %v5050 = vlaneseq
    %v5051 = vshrl.u32 %v5050, 7
    %v5052 = vsub.s32 %v5049, %v5051
    %v5053 = vrot.slane %v4842, %v5052
    %v5054 = vcombine.high %v5053, %v5053
    %5065 = vmatprep.subr.mxu0 0.0
    %5066 = vmatpush1.msra.mxu0 %v4858
    %5067 = vmatprep.subr.mxu0 0.0
    %5068 = vmatpush1.msra.mxu0 %v4857
    %5069 = vmatprep.subr.mxu0 0.0
    %5070 = vmatpush1.msra.mxu0 %v4856
    %5071 = vmatprep.subr.mxu0 0.0
    %5072 = vmatpush1.msra.mxu0 %v4855
    %5073 = vmatprep.subr.mxu0 0.0
    %5074 = vmatpush1.msra.mxu0 %v4854
    %5075 = vmatprep.subr.mxu0 0.0
    %5076 = vmatpush1.msra.mxu0 %v4853
    %5077 = vmatprep.subr.mxu0 0.0
    %5078 = vmatpush1.msra.mxu0 %v4852
    %5079 = vmatprep.subr.mxu0 0.0
    %5080 = vmatpush1.msra.mxu0 %v4851
    %5081 = vmatprep.subr.mxu0 0.0
    %5082 = vmatpush1.msra.mxu0 %v4850
    %5083 = vmatprep.subr.mxu0 0.0
    %5084 = vmatpush1.msra.mxu0 %v4849
    %5085 = vmatprep.subr.mxu0 0.0
    %5086 = vmatpush1.msra.mxu0 %v4848
    %5087 = vmatprep.subr.mxu0 0.0
    %5088 = vmatpush1.msra.mxu0 %v4847
    %5089 = vmatprep.subr.mxu0 0.0
    %5090 = vmatpush1.msra.mxu0 %v4846
    %5091 = vmatprep.subr.mxu0 0.0
    %5092 = vmatpush1.msra.mxu0 %v4845
    %5093 = vmatprep.subr.mxu0 0.0
    %5094 = vmatpush1.msra.mxu0 %v4844
    %5095 = vmatprep.subr.mxu0 0.0
    %5096 = vmatpush1.msra.mxu0 %v4843
    %5097 = vmatprep.subr.mxu0 0.0
    %5098 = vmatpush2.msra.mxu0 %v4874
    %5099 = vmatprep.subr.mxu0 0.0
    %5100 = vmatpush2.msra.mxu0 %v4873
    %5101 = vmatprep.subr.mxu0 0.0
    %5102 = vmatpush2.msra.mxu0 %v4872
    %5103 = vmatprep.subr.mxu0 0.0
    %5104 = vmatpush2.msra.mxu0 %v4871
    %5105 = vmatprep.subr.mxu0 0.0
    %5106 = vmatpush2.msra.mxu0 %v4870
    %5107 = vmatprep.subr.mxu0 0.0
    %5108 = vmatpush2.msra.mxu0 %v4869
    %5109 = vmatprep.subr.mxu0 0.0
    %5110 = vmatpush2.msra.mxu0 %v4868
    %5111 = vmatprep.subr.mxu0 0.0
    %5112 = vmatpush2.msra.mxu0 %v4867
    %5113 = vmatprep.subr.mxu0 0.0
    %5114 = vmatpush2.msra.mxu0 %v4866
    %5115 = vmatprep.subr.mxu0 0.0
    %5116 = vmatpush2.msra.mxu0 %v4865
    %5117 = vmatprep.subr.mxu0 0.0
    %5118 = vmatpush2.msra.mxu0 %v4864
    %5119 = vmatprep.subr.mxu0 0.0
    %5120 = vmatpush2.msra.mxu0 %v4863
    %5121 = vmatprep.subr.mxu0 0.0
    %5122 = vmatpush2.msra.mxu0 %v4862
    %5123 = vmatprep.subr.mxu0 0.0
    %5124 = vmatpush2.msra.mxu0 %v4861
    %5125 = vmatprep.subr.mxu0 0.0
    %5126 = vmatpush2.msra.mxu0 %v4860
    %5127 = vmatprep.subr.mxu0 0.0
    %5128 = vmatpush2.msra.mxu0 %v4859
    %5129 = vmatprep.mubr.f32.mxu0 %v5028
    %5130 = vmatmul.mubr.f32.gmra.mxu0 %v5020
    %v5131 = vpop.f32.mrf.mxu0
    %v5132 = vadd.f32 %v5008, %v5131
    %v5133 = vpop.f32.mrf.mxu0
    %5134 = vdwg.mxu0
    %5135 = vmatprep.subr.mxu0 0.0
    %5136 = vmatpush1.msra.mxu0 %v4890
    %5137 = vmatprep.subr.mxu0 0.0
    %5138 = vmatpush1.msra.mxu0 %v4889
    %5139 = vmatprep.subr.mxu0 0.0
    %5140 = vmatpush1.msra.mxu0 %v4888
    %5141 = vmatprep.subr.mxu0 0.0
    %5142 = vmatpush1.msra.mxu0 %v4887
    %5143 = vmatprep.subr.mxu0 0.0
    %5144 = vmatpush1.msra.mxu0 %v4886
    %5145 = vmatprep.subr.mxu0 0.0
    %5146 = vmatpush1.msra.mxu0 %v4885
    %5147 = vmatprep.subr.mxu0 0.0
    %5148 = vmatpush1.msra.mxu0 %v4884
    %5149 = vmatprep.subr.mxu0 0.0
    %5150 = vmatpush1.msra.mxu0 %v4883
    %5151 = vmatprep.subr.mxu0 0.0
    %5152 = vmatpush1.msra.mxu0 %v4882
    %5153 = vmatprep.subr.mxu0 0.0
    %5154 = vmatpush1.msra.mxu0 %v4881
    %5155 = vmatprep.subr.mxu0 0.0
    %5156 = vmatpush1.msra.mxu0 %v4880
    %5157 = vmatprep.subr.mxu0 0.0
    %5158 = vmatpush1.msra.mxu0 %v4879
    %5159 = vmatprep.subr.mxu0 0.0
    %5160 = vmatpush1.msra.mxu0 %v4878
    %5161 = vmatprep.subr.mxu0 0.0
    %5162 = vmatpush1.msra.mxu0 %v4877
    %5163 = vmatprep.subr.mxu0 0.0
    %5164 = vmatpush1.msra.mxu0 %v4876
    %5165 = vmatprep.subr.mxu0 0.0
    %5166 = vmatpush1.msra.mxu0 %v4875
    %5167 = vmatprep.subr.mxu0 0.0
    %5168 = vmatpush2.msra.mxu0 %v4906
    %5169 = vmatprep.subr.mxu0 0.0
    %5170 = vmatpush2.msra.mxu0 %v4905
    %5171 = vmatprep.subr.mxu0 0.0
    %5172 = vmatpush2.msra.mxu0 %v4904
    %5173 = vmatprep.subr.mxu0 0.0
    %5174 = vmatpush2.msra.mxu0 %v4903
    %5175 = vmatprep.subr.mxu0 0.0
    %5176 = vmatpush2.msra.mxu0 %v4902
    %5177 = vmatprep.subr.mxu0 0.0
    %5178 = vmatpush2.msra.mxu0 %v4901
    %5179 = vmatprep.subr.mxu0 0.0
    %5180 = vmatpush2.msra.mxu0 %v4900
    %5181 = vmatprep.subr.mxu0 0.0
    %5182 = vmatpush2.msra.mxu0 %v4899
    %5183 = vmatprep.subr.mxu0 0.0
    %5184 = vmatpush2.msra.mxu0 %v4898
    %5185 = vmatprep.subr.mxu0 0.0
    %5186 = vmatpush2.msra.mxu0 %v4897
    %5187 = vmatprep.subr.mxu0 0.0
    %5188 = vmatpush2.msra.mxu0 %v4896
    %5189 = vmatprep.subr.mxu0 0.0
    %5190 = vmatpush2.msra.mxu0 %v4895
    %5191 = vmatprep.subr.mxu0 0.0
    %5192 = vmatpush2.msra.mxu0 %v4894
    %5193 = vmatprep.subr.mxu0 0.0
    %5194 = vmatpush2.msra.mxu0 %v4893
    %5195 = vmatprep.subr.mxu0 0.0
    %5196 = vmatpush2.msra.mxu0 %v4892
    %5197 = vmatprep.subr.mxu0 0.0
    %5198 = vmatpush2.msra.mxu0 %v4891
    %5199 = vmatprep.mubr.f32.mxu0 %v5029
    %5200 = vmatmul.mubr.f32.gmra.mxu0 %v5027
    %v5201 = vpop.f32.mrf.mxu0
    %v5202 = vadd.f32 %v5132, %v5201
    %v5203 = vpop.f32.mrf.mxu0
    %5204 = vdwg.mxu0
    %5205 = vmatprep.subr.mxu0 0.0
    %5206 = vmatpush1.msra.mxu0 %v4922
    %5207 = vmatprep.subr.mxu0 0.0
    %5208 = vmatpush1.msra.mxu0 %v4921
    %5209 = vmatprep.subr.mxu0 0.0
    %5210 = vmatpush1.msra.mxu0 %v4920
    %5211 = vmatprep.subr.mxu0 0.0
    %5212 = vmatpush1.msra.mxu0 %v4919
    %5213 = vmatprep.subr.mxu0 0.0
    %5214 = vmatpush1.msra.mxu0 %v4918
    %5215 = vmatprep.subr.mxu0 0.0
    %5216 = vmatpush1.msra.mxu0 %v4917
    %5217 = vmatprep.subr.mxu0 0.0
    %5218 = vmatpush1.msra.mxu0 %v4916
    %5219 = vmatprep.subr.mxu0 0.0
    %5220 = vmatpush1.msra.mxu0 %v4915
    %5221 = vmatprep.subr.mxu0 0.0
    %5222 = vmatpush1.msra.mxu0 %v4914
    %5223 = vmatprep.subr.mxu0 0.0
    %5224 = vmatpush1.msra.mxu0 %v4913
    %5225 = vmatprep.subr.mxu0 0.0
    %5226 = vmatpush1.msra.mxu0 %v4912
    %5227 = vmatprep.subr.mxu0 0.0
    %5228 = vmatpush1.msra.mxu0 %v4911
    %5229 = vmatprep.subr.mxu0 0.0
    %5230 = vmatpush1.msra.mxu0 %v4910
    %5231 = vmatprep.subr.mxu0 0.0
    %5232 = vmatpush1.msra.mxu0 %v4909
    %5233 = vmatprep.subr.mxu0 0.0
    %5234 = vmatpush1.msra.mxu0 %v4908
    %5235 = vmatprep.subr.mxu0 0.0
    %5236 = vmatpush1.msra.mxu0 %v4907
    %5237 = vmatprep.subr.mxu0 0.0
    %5238 = vmatpush2.msra.mxu0 %v4938
    %5239 = vmatprep.subr.mxu0 0.0
    %5240 = vmatpush2.msra.mxu0 %v4937
    %5241 = vmatprep.subr.mxu0 0.0
    %5242 = vmatpush2.msra.mxu0 %v4936
    %5243 = vmatprep.subr.mxu0 0.0
    %5244 = vmatpush2.msra.mxu0 %v4935
    %5245 = vmatprep.subr.mxu0 0.0
    %5246 = vmatpush2.msra.mxu0 %v4934
    %5247 = vmatprep.subr.mxu0 0.0
    %5248 = vmatpush2.msra.mxu0 %v4933
    %5249 = vmatprep.subr.mxu0 0.0
    %5250 = vmatpush2.msra.mxu0 %v4932
    %5251 = vmatprep.subr.mxu0 0.0
    %5252 = vmatpush2.msra.mxu0 %v4931
    %5253 = vmatprep.subr.mxu0 0.0
    %5254 = vmatpush2.msra.mxu0 %v4930
    %5255 = vmatprep.subr.mxu0 0.0
    %5256 = vmatpush2.msra.mxu0 %v4929
    %5257 = vmatprep.subr.mxu0 0.0
    %5258 = vmatpush2.msra.mxu0 %v4928
    %5259 = vmatprep.subr.mxu0 0.0
    %5260 = vmatpush2.msra.mxu0 %v4927
    %5261 = vmatprep.subr.mxu0 0.0
    %5262 = vmatpush2.msra.mxu0 %v4926
    %5263 = vmatprep.subr.mxu0 0.0
    %5264 = vmatpush2.msra.mxu0 %v4925
    %5265 = vmatprep.subr.mxu0 0.0
    %5266 = vmatpush2.msra.mxu0 %v4924
    %5267 = vmatprep.subr.mxu0 0.0
    %5268 = vmatpush2.msra.mxu0 %v4923
    %5269 = vmatprep.mubr.f32.mxu0 %v5045
    %5270 = vmatmul.mubr.f32.gmra.mxu0 %v5037
    %v5271 = vpop.f32.mrf.mxu0
    %v5272 = vadd.f32 %v5202, %v5271
    %v5273 = vpop.f32.mrf.mxu0
    %5274 = vdwg.mxu0
    %5275 = vmatprep.subr.mxu0 0.0
    %5276 = vmatpush1.msra.mxu0 %v4954
    %5277 = vmatprep.subr.mxu0 0.0
    %5278 = vmatpush1.msra.mxu0 %v4953
    %5279 = vmatprep.subr.mxu0 0.0
    %5280 = vmatpush1.msra.mxu0 %v4952
    %5281 = vmatprep.subr.mxu0 0.0
    %5282 = vmatpush1.msra.mxu0 %v4951
    %5283 = vmatprep.subr.mxu0 0.0
    %5284 = vmatpush1.msra.mxu0 %v4950
    %5285 = vmatprep.subr.mxu0 0.0
    %5286 = vmatpush1.msra.mxu0 %v4949
    %5287 = vmatprep.subr.mxu0 0.0
    %5288 = vmatpush1.msra.mxu0 %v4948
    %5289 = vmatprep.subr.mxu0 0.0
    %5290 = vmatpush1.msra.mxu0 %v4947
    %5291 = vmatprep.subr.mxu0 0.0
    %5292 = vmatpush1.msra.mxu0 %v4946
    %5293 = vmatprep.subr.mxu0 0.0
    %5294 = vmatpush1.msra.mxu0 %v4945
    %5295 = vmatprep.subr.mxu0 0.0
    %5296 = vmatpush1.msra.mxu0 %v4944
    %5297 = vmatprep.subr.mxu0 0.0
    %5298 = vmatpush1.msra.mxu0 %v4943
    %5299 = vmatprep.subr.mxu0 0.0
    %5300 = vmatpush1.msra.mxu0 %v4942
    %5301 = vmatprep.subr.mxu0 0.0
    %5302 = vmatpush1.msra.mxu0 %v4941
    %5303 = vmatprep.subr.mxu0 0.0
    %5304 = vmatpush1.msra.mxu0 %v4940
    %5305 = vmatprep.subr.mxu0 0.0
    %5306 = vmatpush1.msra.mxu0 %v4939
    %5307 = vmatprep.subr.mxu0 0.0
    %5308 = vmatpush2.msra.mxu0 %v4970
    %5309 = vmatprep.subr.mxu0 0.0
    %5310 = vmatpush2.msra.mxu0 %v4969
    %5311 = vmatprep.subr.mxu0 0.0
    %5312 = vmatpush2.msra.mxu0 %v4968
    %5313 = vmatprep.subr.mxu0 0.0
    %5314 = vmatpush2.msra.mxu0 %v4967
    %5315 = vmatprep.subr.mxu0 0.0
    %5316 = vmatpush2.msra.mxu0 %v4966
    %5317 = vmatprep.subr.mxu0 0.0
    %5318 = vmatpush2.msra.mxu0 %v4965
    %5319 = vmatprep.subr.mxu0 0.0
    %5320 = vmatpush2.msra.mxu0 %v4964
    %5321 = vmatprep.subr.mxu0 0.0
    %5322 = vmatpush2.msra.mxu0 %v4963
    %5323 = vmatprep.subr.mxu0 0.0
    %5324 = vmatpush2.msra.mxu0 %v4962
    %5325 = vmatprep.subr.mxu0 0.0
    %5326 = vmatpush2.msra.mxu0 %v4961
    %5327 = vmatprep.subr.mxu0 0.0
    %5328 = vmatpush2.msra.mxu0 %v4960
    %5329 = vmatprep.subr.mxu0 0.0
    %5330 = vmatpush2.msra.mxu0 %v4959
    %5331 = vmatprep.subr.mxu0 0.0
    %5332 = vmatpush2.msra.mxu0 %v4958
    %5333 = vmatprep.subr.mxu0 0.0
    %5334 = vmatpush2.msra.mxu0 %v4957
    %5335 = vmatprep.subr.mxu0 0.0
    %5336 = vmatpush2.msra.mxu0 %v4956
    %5337 = vmatprep.subr.mxu0 0.0
    %5338 = vmatpush2.msra.mxu0 %v4955
    %5339 = vmatprep.mubr.f32.mxu0 %v5046
    %5340 = vmatmul.mubr.f32.gmra.mxu0 %v5044
    %v5341 = vpop.f32.mrf.mxu0
    %v5342 = vadd.f32 %v5272, %v5341
    %v5343 = vpop.f32.mrf.mxu0
    %5344 = vdwg.mxu0
    %5345 = vmatprep.subr.mxu0 0.0
    %5346 = vmatpush1.msra.mxu0 %v4986
    %5347 = vmatprep.subr.mxu0 0.0
    %5348 = vmatpush1.msra.mxu0 %v4985
    %5349 = vmatprep.subr.mxu0 0.0
    %5350 = vmatpush1.msra.mxu0 %v4984
    %5351 = vmatprep.subr.mxu0 0.0
    %5352 = vmatpush1.msra.mxu0 %v4983
    %5353 = vmatprep.subr.mxu0 0.0
    %5354 = vmatpush1.msra.mxu0 %v4982
    %5355 = vmatprep.subr.mxu0 0.0
    %5356 = vmatpush1.msra.mxu0 %v4981
    %5357 = vmatprep.subr.mxu0 0.0
    %5358 = vmatpush1.msra.mxu0 %v4980
    %5359 = vmatprep.subr.mxu0 0.0
    %5360 = vmatpush1.msra.mxu0 %v4979
    %5361 = vmatprep.subr.mxu0 0.0
    %5362 = vmatpush1.msra.mxu0 %v4978
    %5363 = vmatprep.subr.mxu0 0.0
    %5364 = vmatpush1.msra.mxu0 %v4977
    %5365 = vmatprep.subr.mxu0 0.0
    %5366 = vmatpush1.msra.mxu0 %v4976
    %5367 = vmatprep.subr.mxu0 0.0
    %5368 = vmatpush1.msra.mxu0 %v4975
    %5369 = vmatprep.subr.mxu0 0.0
    %5370 = vmatpush1.msra.mxu0 %v4974
    %5371 = vmatprep.subr.mxu0 0.0
    %5372 = vmatpush1.msra.mxu0 %v4973
    %5373 = vmatprep.subr.mxu0 0.0
    %5374 = vmatpush1.msra.mxu0 %v4972
    %5375 = vmatprep.subr.mxu0 0.0
    %5376 = vmatpush1.msra.mxu0 %v4971
    %5377 = vmatprep.subr.mxu0 0.0
    %5378 = vmatpush2.msra.mxu0 %v5002
    %5379 = vmatprep.subr.mxu0 0.0
    %5380 = vmatpush2.msra.mxu0 %v5001
    %5381 = vmatprep.subr.mxu0 0.0
    %5382 = vmatpush2.msra.mxu0 %v5000
    %5383 = vmatprep.subr.mxu0 0.0
    %5384 = vmatpush2.msra.mxu0 %v4999
    %5385 = vmatprep.subr.mxu0 0.0
    %5386 = vmatpush2.msra.mxu0 %v4998
    %5387 = vmatprep.subr.mxu0 0.0
    %5388 = vmatpush2.msra.mxu0 %v4997
    %5389 = vmatprep.subr.mxu0 0.0
    %5390 = vmatpush2.msra.mxu0 %v4996
    %5391 = vmatprep.subr.mxu0 0.0
    %5392 = vmatpush2.msra.mxu0 %v4995
    %5393 = vmatprep.subr.mxu0 0.0
    %5394 = vmatpush2.msra.mxu0 %v4994
    %5395 = vmatprep.subr.mxu0 0.0
    %5396 = vmatpush2.msra.mxu0 %v4993
    %5397 = vmatprep.subr.mxu0 0.0
    %5398 = vmatpush2.msra.mxu0 %v4992
    %5399 = vmatprep.subr.mxu0 0.0
    %5400 = vmatpush2.msra.mxu0 %v4991
    %5401 = vmatprep.subr.mxu0 0.0
    %5402 = vmatpush2.msra.mxu0 %v4990
    %5403 = vmatprep.subr.mxu0 0.0
    %5404 = vmatpush2.msra.mxu0 %v4989
    %5405 = vmatprep.subr.mxu0 0.0
    %5406 = vmatpush2.msra.mxu0 %v4988
    %5407 = vmatprep.subr.mxu0 0.0
    %5408 = vmatpush2.msra.mxu0 %v4987
    %5409 = vmatprep.mubr.f32.mxu0 %v5054
    %5410 = vmatmul.mubr.f32.gmra.mxu0 %v5053
    %v5411 = vpop.f32.mrf.mxu0
    %v5412 = vadd.f32 %v5342, %v5411
    %v5413 = vpop.f32.mrf.mxu0
    %5414 = vdwg.mxu0
    %v5415 = vmax.f32 %v5412, 0.0
    %v5416 = vld [vmem:[#allocation18] sm:$0xff]
    %v5417 = vld [vmem:[#allocation18 + $0x8] sm:$0xff]
    %v5418 = vld [vmem:[#allocation18 + $0x10] sm:$0xff]
    %v5419 = vld [vmem:[#allocation18 + $0x18] sm:$0xff]
    %v5420 = vld [vmem:[#allocation18 + $0x20] sm:$0xff]
    %v5421 = vld [vmem:[#allocation18 + $0x28] sm:$0xff]
    %v5422 = vld [vmem:[#allocation18 + $0x30] sm:$0xff]
    %v5423 = vld [vmem:[#allocation18 + $0x38] sm:$0xff]
    %v5424 = vld [vmem:[#allocation18 + $0x40] sm:$0xff]
    %v5425 = vld [vmem:[#allocation18 + $0x48] sm:$0xff]
    %v5426 = vld [vmem:[#allocation18 + $0x50] sm:$0xff]
    %v5427 = vld [vmem:[#allocation18 + $0x58] sm:$0xff]
    %v5428 = vld [vmem:[#allocation18 + $0x60] sm:$0xff]
    %v5429 = vld [vmem:[#allocation18 + $0x68] sm:$0xff]
    %v5430 = vld [vmem:[#allocation18 + $0x70] sm:$0xff]
    %v5431 = vld [vmem:[#allocation18 + $0x78] sm:$0xff]
    %v5432 = vld [vmem:[#allocation19] sm:$0x1]
    %v5434 = vlaneseq
    %v5435 = vshrl.u32 %v5434, 7
    %v5436 = vsub.s32 0, %v5435
    %v5437 = vrot.slane %v5432, %v5436
    %5439 = vmatprep.subr.mxu0 0.0
    %5440 = vmatpush1.msra.mxu0 %v5431
    %5441 = vmatprep.subr.mxu0 0.0
    %5442 = vmatpush1.msra.mxu0 %v5430
    %5443 = vmatprep.subr.mxu0 0.0
    %5444 = vmatpush1.msra.mxu0 %v5429
    %5445 = vmatprep.subr.mxu0 0.0
    %5446 = vmatpush1.msra.mxu0 %v5428
    %5447 = vmatprep.subr.mxu0 0.0
    %5448 = vmatpush1.msra.mxu0 %v5427
    %5449 = vmatprep.subr.mxu0 0.0
    %5450 = vmatpush1.msra.mxu0 %v5426
    %5451 = vmatprep.subr.mxu0 0.0
    %5452 = vmatpush1.msra.mxu0 %v5425
    %5453 = vmatprep.subr.mxu0 0.0
    %5454 = vmatpush1.msra.mxu0 %v5424
    %5455 = vmatprep.subr.mxu0 0.0
    %5456 = vmatpush1.msra.mxu0 %v5423
    %5457 = vmatprep.subr.mxu0 0.0
    %5458 = vmatpush1.msra.mxu0 %v5422
    %5459 = vmatprep.subr.mxu0 0.0
    %5460 = vmatpush1.msra.mxu0 %v5421
    %5461 = vmatprep.subr.mxu0 0.0
    %5462 = vmatpush1.msra.mxu0 %v5420
    %5463 = vmatprep.subr.mxu0 0.0
    %5464 = vmatpush1.msra.mxu0 %v5419
    %5465 = vmatprep.subr.mxu0 0.0
    %5466 = vmatpush1.msra.mxu0 %v5418
    %5467 = vmatprep.subr.mxu0 0.0
    %5468 = vmatpush1.msra.mxu0 %v5417
    %5469 = vmatprep.subr.mxu0 0.0
    %5470 = vmatpush1.msra.mxu0 %v5416
    %5471 = vmatprep.subr.mxu0 0.0
    %5472 = vmatpush2.msra.mxu0 0.0
    %5473 = vmatprep.subr.mxu0 0.0
    %5474 = vmatpush2.msra.mxu0 0.0
    %5475 = vmatprep.subr.mxu0 0.0
    %5476 = vmatpush2.msra.mxu0 0.0
    %5477 = vmatprep.subr.mxu0 0.0
    %5478 = vmatpush2.msra.mxu0 0.0
    %5479 = vmatprep.subr.mxu0 0.0
    %5480 = vmatpush2.msra.mxu0 0.0
    %5481 = vmatprep.subr.mxu0 0.0
    %5482 = vmatpush2.msra.mxu0 0.0
    %5483 = vmatprep.subr.mxu0 0.0
    %5484 = vmatpush2.msra.mxu0 0.0
    %5485 = vmatprep.subr.mxu0 0.0
    %5486 = vmatpush2.msra.mxu0 0.0
    %5487 = vmatprep.subr.mxu0 0.0
    %5488 = vmatpush2.msra.mxu0 0.0
    %5489 = vmatprep.subr.mxu0 0.0
    %5490 = vmatpush2.msra.mxu0 0.0
    %5491 = vmatprep.subr.mxu0 0.0
    %5492 = vmatpush2.msra.mxu0 0.0
    %5493 = vmatprep.subr.mxu0 0.0
    %5494 = vmatpush2.msra.mxu0 0.0
    %5495 = vmatprep.subr.mxu0 0.0
    %5496 = vmatpush2.msra.mxu0 0.0
    %5497 = vmatprep.subr.mxu0 0.0
    %5498 = vmatpush2.msra.mxu0 0.0
    %5499 = vmatprep.subr.mxu0 0.0
    %5500 = vmatpush2.msra.mxu0 0.0
    %5501 = vmatprep.subr.mxu0 0.0
    %5502 = vmatpush2.msra.mxu0 0.0
    %5503 = vmatprep.mubr.f32.mxu0 0.0
    %5504 = vmatmul.mubr.f32.gmra.mxu0 %v5415
    %v5505 = vpop.f32.mrf.mxu0
    %v5506 = vadd.f32 %v5437, %v5505
    %v5507 = vpop.f32.mrf.mxu0
    %5508 = vdwg.mxu0
    %v5509 = vmax.f32 %v5506, 0.0
    %v5510 = vld [vmem:[#allocation21] sm:$0xff]
    %v5511 = vld [vmem:[#allocation21 + $0x8] sm:$0xff]
    %v5512 = vld [vmem:[#allocation21 + $0x10] sm:$0xff]
    %v5513 = vld [vmem:[#allocation21 + $0x18] sm:$0xff]
    %v5514 = vld [vmem:[#allocation21 + $0x20] sm:$0xff]
    %v5515 = vld [vmem:[#allocation21 + $0x28] sm:$0xff]
    %v5516 = vld [vmem:[#allocation21 + $0x30] sm:$0xff]
    %v5517 = vld [vmem:[#allocation21 + $0x38] sm:$0xff]
    %v5518 = vld [vmem:[#allocation21 + $0x40] sm:$0xff]
    %v5519 = vld [vmem:[#allocation21 + $0x48] sm:$0xff]
    %v5520 = vld [vmem:[#allocation21 + $0x50] sm:$0xff]
    %v5521 = vld [vmem:[#allocation21 + $0x58] sm:$0xff]
    %v5522 = vld [vmem:[#allocation21 + $0x60] sm:$0xff]
    %v5523 = vld [vmem:[#allocation21 + $0x68] sm:$0xff]
    %v5524 = vld [vmem:[#allocation21 + $0x70] sm:$0xff]
    %v5525 = vld [vmem:[#allocation21 + $0x78] sm:$0xff]
    %v5526 = vld [vmem:[#allocation22] sm:$0x1]
    %v5528 = vlaneseq
    %v5529 = vshrl.u32 %v5528, 7
    %v5530 = vsub.s32 0, %v5529
    %v5531 = vrot.slane %v5526, %v5530
    %5533 = vmatprep.subr.mxu0 0.0
    %5534 = vmatpush1.msra.mxu0 %v5525
    %5535 = vmatprep.subr.mxu0 0.0
    %5536 = vmatpush1.msra.mxu0 %v5524
    %5537 = vmatprep.subr.mxu0 0.0
    %5538 = vmatpush1.msra.mxu0 %v5523
    %5539 = vmatprep.subr.mxu0 0.0
    %5540 = vmatpush1.msra.mxu0 %v5522
    %5541 = vmatprep.subr.mxu0 0.0
    %5542 = vmatpush1.msra.mxu0 %v5521
    %5543 = vmatprep.subr.mxu0 0.0
    %5544 = vmatpush1.msra.mxu0 %v5520
    %5545 = vmatprep.subr.mxu0 0.0
    %5546 = vmatpush1.msra.mxu0 %v5519
    %5547 = vmatprep.subr.mxu0 0.0
    %5548 = vmatpush1.msra.mxu0 %v5518
    %5549 = vmatprep.subr.mxu0 0.0
    %5550 = vmatpush1.msra.mxu0 %v5517
    %5551 = vmatprep.subr.mxu0 0.0
    %5552 = vmatpush1.msra.mxu0 %v5516
    %5553 = vmatprep.subr.mxu0 0.0
    %5554 = vmatpush1.msra.mxu0 %v5515
    %5555 = vmatprep.subr.mxu0 0.0
    %5556 = vmatpush1.msra.mxu0 %v5514
    %5557 = vmatprep.subr.mxu0 0.0
    %5558 = vmatpush1.msra.mxu0 %v5513
    %5559 = vmatprep.subr.mxu0 0.0
    %5560 = vmatpush1.msra.mxu0 %v5512
    %5561 = vmatprep.subr.mxu0 0.0
    %5562 = vmatpush1.msra.mxu0 %v5511
    %5563 = vmatprep.subr.mxu0 0.0
    %5564 = vmatpush1.msra.mxu0 %v5510
    %5565 = vmatprep.subr.mxu0 0.0
    %5566 = vmatpush2.msra.mxu0 0.0
    %5567 = vmatprep.subr.mxu0 0.0
    %5568 = vmatpush2.msra.mxu0 0.0
    %5569 = vmatprep.subr.mxu0 0.0
    %5570 = vmatpush2.msra.mxu0 0.0
    %5571 = vmatprep.subr.mxu0 0.0
    %5572 = vmatpush2.msra.mxu0 0.0
    %5573 = vmatprep.subr.mxu0 0.0
    %5574 = vmatpush2.msra.mxu0 0.0
    %5575 = vmatprep.subr.mxu0 0.0
    %5576 = vmatpush2.msra.mxu0 0.0
    %5577 = vmatprep.subr.mxu0 0.0
    %5578 = vmatpush2.msra.mxu0 0.0
    %5579 = vmatprep.subr.mxu0 0.0
    %5580 = vmatpush2.msra.mxu0 0.0
    %5581 = vmatprep.subr.mxu0 0.0
    %5582 = vmatpush2.msra.mxu0 0.0
    %5583 = vmatprep.subr.mxu0 0.0
    %5584 = vmatpush2.msra.mxu0 0.0
    %5585 = vmatprep.subr.mxu0 0.0
    %5586 = vmatpush2.msra.mxu0 0.0
    %5587 = vmatprep.subr.mxu0 0.0
    %5588 = vmatpush2.msra.mxu0 0.0
    %5589 = vmatprep.subr.mxu0 0.0
    %5590 = vmatpush2.msra.mxu0 0.0
    %5591 = vmatprep.subr.mxu0 0.0
    %5592 = vmatpush2.msra.mxu0 0.0
    %5593 = vmatprep.subr.mxu0 0.0
    %5594 = vmatpush2.msra.mxu0 0.0
    %5595 = vmatprep.subr.mxu0 0.0
    %5596 = vmatpush2.msra.mxu0 0.0
    %5597 = vmatprep.mubr.f32.mxu0 0.0
    %5598 = vmatmul.mubr.f32.gmra.mxu0 %v5509
    %v5599 = vpop.f32.mrf.mxu0
    %v5600 = vadd.f32 %v5531, %v5599
    %v5601 = vpop.f32.mrf.mxu0
    %5602 = vdwg.mxu0
    %5603 = vst [vmem:[#allocation24] sm:$0x3] %v5600
    // Predicated region
    $region86: #{lenet_forward.1} parent=1 // pred_check
      _
    $region87: #{lenet_forward.1} parent=1 // pred_check_branch
      %5605 = sbr.rel (0) target = $region89
    $region88: #{lenet_forward.1} parent=1 // pred_region
      %s5607 = ssub.s32 32, 32
      %5608 = vsyncadd [#allocation9], %s5607
      %s5610 = sshll.u32 [#allocation24], 4
      %s5611 = int_to_ptr.vmem [resolvable:$true] %s5610
      %5613 = dma.vmem_to_hbm [thread:$0]  %s5611, 32, %s11, [#allocation9]
    $region89: #{lenet_forward.1} parent=1 // pred_fallthru
      _
    // Predicated region
    $region90: #{lenet_forward.1} parent=1 // pred_check
      _
    $region91: #{lenet_forward.1} parent=1 // pred_check_branch
      %5615 = sbr.rel (0) target = $region93
    $region92: #{lenet_forward.1} parent=1 // pred_region
      %5616 = dma.done [#allocation9], 32
    $region93: #{lenet_forward.1} parent=1 // pred_fallthru
      _
    %5617 = vsyncpa [#allocation8], 1
    %5618 = vsyncpa [#allocation11], 1
    %5619 = vsyncpa [#allocation14], 1
    %5620 = vsyncpa [#allocation17], 1
    %5621 = vsyncpa [#allocation20], 1
    %5622 = vsyncpa [#allocation23], 1
    %5623 = vsyncpa [#allocation9], 1

</llo_original>
